<compile_context>
chip_gen: v7x
topology: tpu7x:2x2x1
jax: 0.10.0
libtpu: 0.0.40
codegen_flags: <defaults>
</compile_context>

<pallas_src>
import math

import jax
import jax.numpy as jnp
from jax.experimental import pallas as pl
from jax.experimental.pallas import tpu as pltpu

# ----------------------------- config (small T5) -----------------------------
B = 2              # batch (number of (query, pos, neg) triples)
S = 8              # sequence length
D = 32             # d_model
H = 4              # num heads
DK = 8             # d_kv per head (H * DK == D)
DFF = 64           # d_ff
VOCAB = 128        # vocab size
NUM_LAYERS = 2     # encoder layers
NUM_BUCKETS = 32
MAX_DIST = 128
EPS = 1e-6

NB = 3 * B         # query + pos-doc + neg-doc examples, batched together
R = NB * S         # total token rows processed by the fused kernel
MASK = -1e9        # additive mask keeping the NB examples independent


# --------------------------- fused forward kernel ----------------------------
def t5_margin_mse_kernel(ids_ref, embed_ref, qmask_ref, bias_ref,
                         ln0_ref, wq_ref, wk_ref, wv_ref, wo_a_ref,
                         ln1_ref, wi_ref, wo_f_ref, fln_ref,
                         tpos_ref, tneg_ref,
                         hid_ref, loss_ref):
    """Whole forward in one invocation: embed + 3*B encodes + MarginMSE."""
    f32 = jnp.float32
    bf16 = jnp.bfloat16

    def rms(x, w):                       # T5LayerNorm: no mean sub, no bias
        var = jnp.mean(x * x, axis=-1, keepdims=True)
        return x * jax.lax.rsqrt(var + EPS) * w

    def mm(a_bf, b_bf):                  # bf16 operands, f32 MXU accumulation
        return jnp.dot(a_bf, b_bf, preferred_element_type=f32)

    # ---- in-kernel embedding gather: exact one-hot matmul on the MXU ----
    iota = jax.lax.broadcasted_iota(jnp.int32, (R, VOCAB), 1)
    one_hot = (ids_ref[...] == iota).astype(f32)           # (R, VOCAB)
    h = jnp.dot(one_hot, embed_ref[...],
                preferred_element_type=f32)                 # (R, D) exact gather

    qmask = qmask_ref[...]               # (H*R, D) bf16 head-lane mask
    bias = bias_ref[...]                 # (H*R, R) f32 pos-bias + example mask

    for l in range(NUM_LAYERS):
        # ---- self-attention block (pre-norm + residual), heads on sublanes ----
        n_bf = rms(h, ln0_ref[l]).astype(bf16)              # cast once
        q = mm(n_bf, wq_ref[l]).astype(bf16)                # (R, D)
        k = mm(n_bf, wk_ref[l]).astype(bf16)                # (R, D)
        v = mm(n_bf, wv_ref[l]).astype(bf16)                # (R, D)

        # Block-diagonal Q: row block hd holds q with only head-hd lanes live.
        # One matmul then produces ALL heads' scores; contraction depth D=32
        # instead of 4 separate K=8 pushes.  T5 does NOT scale by 1/sqrt(dk).
        q_big = jnp.concatenate([q] * H, axis=0) * qmask    # (H*R, D) bf16
        s = jax.lax.dot_general(q_big, k, (((1,), (1,)), ((), ())),
                                preferred_element_type=f32)  # (H*R, R)
        s = s + bias                                         # bias + -1e9 mask

        m = jnp.max(s, axis=-1, keepdims=True)
        p = jnp.exp(s - m)
        p = p / jnp.sum(p, axis=-1, keepdims=True)           # exact softmax

        ctx_big = mm(p.astype(bf16), v)                      # (H*R, D) f32
        ctx_big = ctx_big * qmask                            # keep own head lanes
        ctx = ctx_big[0:R]                                   # merge heads: sum of
        for hd in range(1, H):                               # sublane-aligned blocks
            ctx = ctx + ctx_big[hd * R:(hd + 1) * R]         # (R, D)

        h = h + mm(ctx.astype(bf16), wo_a_ref[l])            # W_o + residual

        # ---- feed-forward block (ReLU) ----
        n_bf = rms(h, ln1_ref[l]).astype(bf16)
        ff = jnp.maximum(mm(n_bf, wi_ref[l]), 0.0).astype(bf16)   # (R, DFF)
        h = h + mm(ff, wo_f_ref[l])                          # residual

    h = rms(h, fln_ref[...])                                 # final T5LayerNorm
    hid_ref[...] = h                                         # last_hidden_states

    # ---- MarginMSE head ----
    # TODO(synk): upstream encode() returns the T5 decoder's single-step
    # last_hidden_state (seq==1); the decoder stack is not implemented here,
    # so we pool encoder position 0 of each example as its dense rep.
    sq = jnp.zeros((1, 1), f32)
    for b in range(B):
        qr = h[b * S:b * S + 1, :]                           # (1, D)
        pr = h[(B + b) * S:(B + b) * S + 1, :]
        nr = h[(2 * B + b) * S:(2 * B + b) * S + 1, :]
        student = (jnp.sum(qr * pr, axis=-1, keepdims=True)
                   - jnp.sum(qr * nr, axis=-1, keepdims=True))      # (1, 1)
        teacher = tpos_ref[b] - tneg_ref[b]                  # SMEM scalar reads
        d = student - teacher
        sq = sq + d * d
    loss_ref[...] = sq * (1.0 / B)                           # MSE over the batch


def fused_forward_pallas(ids, embed, qmask, bias, ln0, wq, wk, wv, wo_a,
                         ln1, wi, wo_f, fln, tpos, tneg):
    vmem = pltpu.MemorySpace.VMEM
    smem = pltpu.MemorySpace.SMEM
    in_specs = ([pl.BlockSpec(memory_space=vmem)] * 13
                + [pl.BlockSpec(memory_space=smem)] * 2)
    return pl.pallas_call(
        t5_margin_mse_kernel,
        out_shape=(jax.ShapeDtypeStruct((R, D), jnp.float32),
                   jax.ShapeDtypeStruct((1, 1), jnp.float32)),
        in_specs=in_specs,
        out_specs=(pl.BlockSpec(memory_space=vmem),
                   pl.BlockSpec(memory_space=vmem)),
    )(ids, embed, qmask, bias, ln0, wq, wk, wv, wo_a, ln1, wi, wo_f, fln,
      tpos, tneg)


# --------------------- relative position bias (host, once) --------------------
def _relative_position_bucket(relative_position, num_buckets, max_distance):
    # Bidirectional (encoder) bucketing, exactly as HF T5.
    num_buckets //= 2
    relative_buckets = (relative_position > 0).astype(jnp.int32) * num_buckets
    n = jnp.abs(relative_position)
    max_exact = num_buckets // 2
    is_small = n < max_exact
    val_if_large = max_exact + (
        jnp.log(jnp.maximum(n, 1).astype(jnp.float32) / max_exact)
        / math.log(max_distance / max_exact)
        * (num_buckets - max_exact)
    ).astype(jnp.int32)
    val_if_large = jnp.minimum(val_if_large, num_buckets - 1)
    return relative_buckets + jnp.where(is_small, n, val_if_large)


def compute_position_bias(rel_bias_table):
    ctx_pos = jnp.arange(S)[:, None]
    mem_pos = jnp.arange(S)[None, :]
    rel_pos = mem_pos - ctx_pos                              # (S, S)
    buckets = _relative_position_bucket(rel_pos, NUM_BUCKETS, MAX_DIST)
    bias = rel_bias_table[buckets]                           # (S, S, H)
    return bias.transpose(2, 0, 1)                           # (H, S, S)


def build_block_bias(pos_bias):
    # (H, S, S) -> (H*R, R): per head, block-diagonal over the NB examples;
    # cross-example entries masked with -1e9 (f32, so pos-bias values stay exact).
    tiled = jnp.tile(pos_bias, (1, NB, NB))                  # (H, R, R)
    ex = jnp.arange(R) // S
    same = (ex[:, None] == ex[None, :])[None, :, :]
    masked = jnp.where(same, tiled, MASK)
    return masked.reshape(H * R, R).astype(jnp.float32)


def build_head_mask():
    # (H*R, D) bf16: row block hd has ones exactly on head hd's lanes.
    lane_head = jnp.arange(D) // DK                          # (D,)
    mask = (lane_head[None, :] == jnp.arange(H)[:, None]).astype(jnp.bfloat16)
    mask = jnp.broadcast_to(mask[:, None, :], (H, R, D))
    return mask.reshape(H * R, D)


# ------------------------- one-time model preparation -------------------------
def prepare_model(params):
    """Pack / pre-cast everything that depends only on params (done once)."""
    bf = jnp.bfloat16
    layers = params["layers"]
    stack = lambda name: jnp.stack([l[name] for l in layers])
    return {
        "embed": params["embed"].astype(jnp.float32),        # (VOCAB, D) f32
        "qmask": build_head_mask(),                           # (H*R, D) bf16
        "bias": build_block_bias(                             # (H*R, R) f32
            compute_position_bias(params["rel_bias"])),
        "ln0": stack("ln0")[:, None, :].astype(jnp.float32),  # (L, 1, D)
        "ln1": stack("ln1")[:, None, :].astype(jnp.float32),
        "wq": stack("wq").astype(bf),                         # (L, D, D) bf16
        "wk": stack("wk").astype(bf),
        "wv": stack("wv").astype(bf),
        "wo_attn": stack("wo_attn").astype(bf),               # (L, D, D) bf16
        "wi": stack("wi").astype(bf),                         # (L, D, DFF) bf16
        "wo_ffn": stack("wo_ffn").astype(bf),                 # (L, DFF, D) bf16
        "fln": params["final_ln"][None, :].astype(jnp.float32),
    }


@jax.jit
def forward(prep, query_ids, pos_doc_ids, neg_doc_ids,
            teacher_pos_scores, teacher_neg_scores):
    ids = jnp.concatenate([query_ids, pos_doc_ids, neg_doc_ids],
                          axis=0).reshape(R, 1).astype(jnp.int32)
    hidden, loss = fused_forward_pallas(
        ids, prep["embed"], prep["qmask"], prep["bias"],
        prep["ln0"], prep["wq"], prep["wk"], prep["wv"], prep["wo_attn"],
        prep["ln1"], prep["wi"], prep["wo_ffn"], prep["fln"],
        teacher_pos_scores.astype(jnp.float32),
        teacher_neg_scores.astype(jnp.float32))
    return hidden.reshape(NB, S, D), loss[0, 0]


# ------------------------------ pure-JAX reference -----------------------------
def ref_forward(params, query_ids, pos_doc_ids, neg_doc_ids, t_pos, t_neg):
    bf = jnp.bfloat16
    f32 = jnp.float32

    def mm(a, b):
        return jnp.dot(a.astype(bf), b.astype(bf), preferred_element_type=f32)

    def rms(x, w):
        var = jnp.mean(x * x, axis=-1, keepdims=True)
        return x * jax.lax.rsqrt(var + EPS) * w

    ids = jnp.concatenate([query_ids, pos_doc_ids, neg_doc_ids], axis=0)
    h = params["embed"][ids]                                 # (NB, S, D)
    pb = compute_position_bias(params["rel_bias"])           # (H, S, S)
    for layer in params["layers"]:
        n = rms(h, layer["ln0"])
        q = mm(n, layer["wq"]).reshape(NB, S, H, DK)
        k = mm(n, layer["wk"]).reshape(NB, S, H, DK)
        v = mm(n, layer["wv"]).reshape(NB, S, H, DK)
        s = jnp.einsum("bqhd,bkhd->bhqk", q.astype(bf), k.astype(bf),
                       preferred_element_type=f32) + pb[None]
        p = jax.nn.softmax(s, axis=-1)
        ctx = jnp.einsum("bhqk,bkhd->bqhd", p.astype(bf), v.astype(bf),
                         preferred_element_type=f32).reshape(NB, S, D)
        h = h + mm(ctx, layer["wo_attn"])
        n = rms(h, layer["ln1"])
        h = h + mm(jnp.maximum(mm(n, layer["wi"]), 0.0), layer["wo_ffn"])
    h = rms(h, params["final_ln"])
    reps = h[:, 0, :]
    qr, pr, nr = reps[:B], reps[B:2 * B], reps[2 * B:]
    student = jnp.sum(qr * pr, axis=-1) - jnp.sum(qr * nr, axis=-1)
    teacher = t_pos - t_neg
    loss = jnp.mean((student - teacher) ** 2)
    return h, loss


# --------------------------------- param init ----------------------------------
def init_params(key):
    ks = jax.random.split(key, 2 + NUM_LAYERS * 6)
    it = iter(ks)
    params = {
        "embed": jax.random.normal(next(it), (VOCAB, D), jnp.float32) * 0.05,
        "rel_bias": jax.random.normal(next(it), (NUM_BUCKETS, H), jnp.float32) * 0.05,
        "final_ln": jnp.ones((D,), jnp.float32),
        "layers": [],
    }
    for _ in range(NUM_LAYERS):
        params["layers"].append({
            "ln0": jnp.ones((D,), jnp.float32),
            "ln1": jnp.ones((D,), jnp.float32),
            "wq": jax.random.normal(next(it), (D, H * DK), jnp.float32) * 0.05,
            "wk": jax.random.normal(next(it), (D, H * DK), jnp.float32) * 0.05,
            "wv": jax.random.normal(next(it), (D, H * DK), jnp.float32) * 0.05,
            "wo_attn": jax.random.normal(next(it), (H * DK, D), jnp.float32) * 0.05,
            "wi": jax.random.normal(next(it), (D, DFF), jnp.float32) * 0.05,
            "wo_ffn": jax.random.normal(next(it), (DFF, D), jnp.float32) * 0.05,
        })
    return params


# ------------------------------------ main --------------------------------------
if __name__ == "__main__":
    root = jax.random.PRNGKey(0)
    k_param, k_q, k_p, k_n, k_tp, k_tn = jax.random.split(root, 6)
    params = init_params(k_param)
    prep = prepare_model(params)              # one-time packing / bias caching

    query_ids = jax.random.randint(k_q, (B, S), 0, VOCAB)
    pos_doc_ids = jax.random.randint(k_p, (B, S), 0, VOCAB)
    neg_doc_ids = jax.random.randint(k_n, (B, S), 0, VOCAB)
    teacher_pos = jax.random.normal(k_tp, (B,), jnp.float32)
    teacher_neg = jax.random.normal(k_tn, (B,), jnp.float32)

    hidden, loss = forward(prep, query_ids, pos_doc_ids, neg_doc_ids,
                           teacher_pos, teacher_neg)
    hidden, loss = jax.block_until_ready((hidden, loss))

    ref_hidden, ref_loss = ref_forward(params, query_ids, pos_doc_ids,
                                       neg_doc_ids, teacher_pos, teacher_neg)

    assert hidden.shape == (NB, S, D)
    assert bool(jnp.all(jnp.isfinite(hidden))) and bool(jnp.isfinite(loss))
    # Kernel and reference share the same bf16-operand / f32-accumulate math
    # and an exact softmax, so agreement is tight; tolerances keep margin.
    assert jnp.allclose(hidden, ref_hidden, rtol=1e-2, atol=1e-2), \
        float(jnp.max(jnp.abs(hidden - ref_hidden)))
    assert jnp.allclose(loss, ref_loss, rtol=5e-2, atol=5e-2), \
        (float(loss), float(ref_loss))

    print("KERNEL_OK")
</pallas_src>

<mosaic_0001>
module attributes {stable_mosaic.version = 11 : i64} {
  func.func @t5_margin_mse_kernel(%arg0: memref<48x1xi32, #tpu.memory_space<vmem>>, %arg1: memref<128x32xf32, #tpu.memory_space<vmem>>, %arg2: memref<192x32xbf16, #tpu.memory_space<vmem>>, %arg3: memref<192x48xf32, #tpu.memory_space<vmem>>, %arg4: memref<2x1x32xf32, #tpu.memory_space<vmem>>, %arg5: memref<2x32x32xbf16, #tpu.memory_space<vmem>>, %arg6: memref<2x32x32xbf16, #tpu.memory_space<vmem>>, %arg7: memref<2x32x32xbf16, #tpu.memory_space<vmem>>, %arg8: memref<2x32x32xbf16, #tpu.memory_space<vmem>>, %arg9: memref<2x1x32xf32, #tpu.memory_space<vmem>>, %arg10: memref<2x32x64xbf16, #tpu.memory_space<vmem>>, %arg11: memref<2x64x32xbf16, #tpu.memory_space<vmem>>, %arg12: memref<1x32xf32, #tpu.memory_space<vmem>>, %arg13: memref<2xf32, #tpu.memory_space<smem>>, %arg14: memref<2xf32, #tpu.memory_space<smem>>, %arg15: memref<48x32xf32, #tpu.memory_space<vmem>>, %arg16: memref<1x1xf32, #tpu.memory_space<vmem>>) attributes {dimension_semantics = [], scalar_prefetch = 0 : i64, scratch_operands = 0 : i64, tpu.core_type = #tpu.core_type<tc>} {
    %0 = tpu.iota {dimensions = array<i32: 1>} : vector<48x128xi32>
    %c0 = arith.constant 0 : index
    %c0_0 = arith.constant 0 : index
    %1 = vector.load %arg0[%c0, %c0_0] : memref<48x1xi32, #tpu.memory_space<vmem>>, vector<48x1xi32>
    %2 = vector.broadcast %1 : vector<48x1xi32> to vector<48x128xi32>
    %3 = arith.cmpi eq, %2, %0 : vector<48x128xi32>
    %4 = arith.extui %3 : vector<48x128xi1> to vector<48x128xi32>
    %5 = arith.sitofp %4 : vector<48x128xi32> to vector<48x128xf32>
    %c0_1 = arith.constant 0 : index
    %c0_2 = arith.constant 0 : index
    %6 = vector.load %arg1[%c0_1, %c0_2] : memref<128x32xf32, #tpu.memory_space<vmem>>, vector<128x32xf32>
    %cst = arith.constant dense<0.000000e+00> : vector<48x32xf32>
    %7 = tpu.matmul %5, %6, %cst {dimension_numbers = #tpu.dot_dimension_numbers<[1], [0], [0], [1], [0, 0, 1, 1], [], []>} : vector<48x128xf32>, vector<128x32xf32>, vector<48x32xf32> -> vector<48x32xf32>
    %c0_3 = arith.constant 0 : index
    %c0_4 = arith.constant 0 : index
    %8 = vector.load %arg2[%c0_3, %c0_4] : memref<192x32xbf16, #tpu.memory_space<vmem>>, vector<192x32xbf16>
    %c0_5 = arith.constant 0 : index
    %c0_6 = arith.constant 0 : index
    %9 = vector.load %arg3[%c0_5, %c0_6] : memref<192x48xf32, #tpu.memory_space<vmem>>, vector<192x48xf32>
    %c0_7 = arith.constant 0 : index
    %c0_8 = arith.constant 0 : index
    %c0_9 = arith.constant 0 : index
    %10 = vector.load %arg4[%c0_7, %c0_8, %c0_9] : memref<2x1x32xf32, #tpu.memory_space<vmem>>, vector<1x1x32xf32>
    %11 = vector.shape_cast %10 : vector<1x1x32xf32> to vector<1x32xf32>
    %12 = arith.mulf %7, %7 : vector<48x32xf32>
    %cst_10 = arith.constant dense<0.000000e+00> : vector<48xf32>
    %13 = vector.multi_reduction <add>, %12, %cst_10 [1] : vector<48x32xf32> to vector<48xf32>
    %14 = vector.shape_cast %13 : vector<48xf32> to vector<48x1xf32>
    %cst_11 = arith.constant 3.200000e+01 : f32
    %15 = vector.broadcast %cst_11 : f32 to vector<48x1xf32>
    %16 = arith.divf %14, %15 : vector<48x1xf32>
    %cst_12 = arith.constant 9.99999997E-7 : f32
    %17 = vector.broadcast %cst_12 : f32 to vector<48x1xf32>
    %18 = arith.addf %16, %17 : vector<48x1xf32>
    %19 = math.rsqrt %18 : vector<48x1xf32>
    %20 = vector.broadcast %19 : vector<48x1xf32> to vector<48x32xf32>
    %21 = arith.mulf %7, %20 : vector<48x32xf32>
    %22 = vector.broadcast %11 : vector<1x32xf32> to vector<48x32xf32>
    %23 = arith.mulf %21, %22 : vector<48x32xf32>
    %24 = arith.truncf %23 : vector<48x32xf32> to vector<48x32xbf16>
    %c0_13 = arith.constant 0 : index
    %c0_14 = arith.constant 0 : index
    %c0_15 = arith.constant 0 : index
    %25 = vector.load %arg5[%c0_13, %c0_14, %c0_15] : memref<2x32x32xbf16, #tpu.memory_space<vmem>>, vector<1x32x32xbf16>
    %26 = vector.shape_cast %25 : vector<1x32x32xbf16> to vector<32x32xbf16>
    %cst_16 = arith.constant dense<0.000000e+00> : vector<48x32xf32>
    %27 = tpu.matmul %24, %26, %cst_16 {dimension_numbers = #tpu.dot_dimension_numbers<[1], [0], [0], [1], [0, 0, 1, 1], [], []>} : vector<48x32xbf16>, vector<32x32xbf16>, vector<48x32xf32> -> vector<48x32xf32>
    %28 = arith.truncf %27 : vector<48x32xf32> to vector<48x32xbf16>
    %c0_17 = arith.constant 0 : index
    %c0_18 = arith.constant 0 : index
    %c0_19 = arith.constant 0 : index
    %29 = vector.load %arg6[%c0_17, %c0_18, %c0_19] : memref<2x32x32xbf16, #tpu.memory_space<vmem>>, vector<1x32x32xbf16>
    %30 = vector.shape_cast %29 : vector<1x32x32xbf16> to vector<32x32xbf16>
    %cst_20 = arith.constant dense<0.000000e+00> : vector<48x32xf32>
    %31 = tpu.matmul %24, %30, %cst_20 {dimension_numbers = #tpu.dot_dimension_numbers<[1], [0], [0], [1], [0, 0, 1, 1], [], []>} : vector<48x32xbf16>, vector<32x32xbf16>, vector<48x32xf32> -> vector<48x32xf32>
    %32 = arith.truncf %31 : vector<48x32xf32> to vector<48x32xbf16>
    %c0_21 = arith.constant 0 : index
    %c0_22 = arith.constant 0 : index
    %c0_23 = arith.constant 0 : index
    %33 = vector.load %arg7[%c0_21, %c0_22, %c0_23] : memref<2x32x32xbf16, #tpu.memory_space<vmem>>, vector<1x32x32xbf16>
    %34 = vector.shape_cast %33 : vector<1x32x32xbf16> to vector<32x32xbf16>
    %cst_24 = arith.constant dense<0.000000e+00> : vector<48x32xf32>
    %35 = tpu.matmul %24, %34, %cst_24 {dimension_numbers = #tpu.dot_dimension_numbers<[1], [0], [0], [1], [0, 0, 1, 1], [], []>} : vector<48x32xbf16>, vector<32x32xbf16>, vector<48x32xf32> -> vector<48x32xf32>
    %36 = arith.truncf %35 : vector<48x32xf32> to vector<48x32xbf16>
    %37 = tpu.concatenate %28, %28, %28, %28 in 0 : vector<48x32xbf16>, vector<48x32xbf16>, vector<48x32xbf16>, vector<48x32xbf16> -> vector<192x32xbf16>
    %38 = arith.mulf %37, %8 : vector<192x32xbf16>
    %cst_25 = arith.constant dense<0.000000e+00> : vector<192x48xf32>
    %39 = tpu.matmul %38, %32, %cst_25 {dimension_numbers = #tpu.dot_dimension_numbers<[1], [1], [0], [0], [0, 0, 1, 0], [], []>} : vector<192x32xbf16>, vector<48x32xbf16>, vector<192x48xf32> -> vector<192x48xf32>
    %40 = arith.addf %39, %9 : vector<192x48xf32>
    %cst_26 = arith.constant dense<0xFF800000> : vector<192xf32>
    %41 = vector.multi_reduction <maximumf>, %40, %cst_26 [1] : vector<192x48xf32> to vector<192xf32>
    %42 = vector.shape_cast %41 : vector<192xf32> to vector<192x1xf32>
    %43 = vector.broadcast %42 : vector<192x1xf32> to vector<192x48xf32>
    %44 = arith.subf %40, %43 : vector<192x48xf32>
    %45 = math.exp %44 : vector<192x48xf32>
    %cst_27 = arith.constant dense<0.000000e+00> : vector<192xf32>
    %46 = vector.multi_reduction <add>, %45, %cst_27 [1] : vector<192x48xf32> to vector<192xf32>
    %47 = vector.shape_cast %46 : vector<192xf32> to vector<192x1xf32>
    %48 = vector.broadcast %47 : vector<192x1xf32> to vector<192x48xf32>
    %49 = arith.divf %45, %48 : vector<192x48xf32>
    %50 = arith.truncf %49 : vector<192x48xf32> to vector<192x48xbf16>
    %cst_28 = arith.constant dense<0.000000e+00> : vector<192x32xf32>
    %51 = tpu.matmul %50, %36, %cst_28 {dimension_numbers = #tpu.dot_dimension_numbers<[1], [0], [0], [1], [0, 0, 1, 1], [], []>} : vector<192x48xbf16>, vector<48x32xbf16>, vector<192x32xf32> -> vector<192x32xf32>
    %52 = arith.extf %8 : vector<192x32xbf16> to vector<192x32xf32>
    %53 = arith.mulf %51, %52 : vector<192x32xf32>
    %54 = vector.extract_strided_slice %53 {offsets = [0, 0], sizes = [48, 32], strides = [1, 1]} : vector<192x32xf32> to vector<48x32xf32>
    %55 = vector.extract_strided_slice %53 {offsets = [48, 0], sizes = [48, 32], strides = [1, 1]} : vector<192x32xf32> to vector<48x32xf32>
    %56 = arith.addf %54, %55 : vector<48x32xf32>
    %57 = vector.extract_strided_slice %53 {offsets = [96, 0], sizes = [48, 32], strides = [1, 1]} : vector<192x32xf32> to vector<48x32xf32>
    %58 = arith.addf %56, %57 : vector<48x32xf32>
    %59 = vector.extract_strided_slice %53 {offsets = [144, 0], sizes = [48, 32], strides = [1, 1]} : vector<192x32xf32> to vector<48x32xf32>
    %60 = arith.addf %58, %59 : vector<48x32xf32>
    %61 = arith.truncf %60 : vector<48x32xf32> to vector<48x32xbf16>
    %c0_29 = arith.constant 0 : index
    %c0_30 = arith.constant 0 : index
    %c0_31 = arith.constant 0 : index
    %62 = vector.load %arg8[%c0_29, %c0_30, %c0_31] : memref<2x32x32xbf16, #tpu.memory_space<vmem>>, vector<1x32x32xbf16>
    %63 = vector.shape_cast %62 : vector<1x32x32xbf16> to vector<32x32xbf16>
    %cst_32 = arith.constant dense<0.000000e+00> : vector<48x32xf32>
    %64 = tpu.matmul %61, %63, %cst_32 {dimension_numbers = #tpu.dot_dimension_numbers<[1], [0], [0], [1], [0, 0, 1, 1], [], []>} : vector<48x32xbf16>, vector<32x32xbf16>, vector<48x32xf32> -> vector<48x32xf32>
    %65 = arith.addf %7, %64 : vector<48x32xf32>
    %c0_33 = arith.constant 0 : index
    %c0_34 = arith.constant 0 : index
    %c0_35 = arith.constant 0 : index
    %66 = vector.load %arg9[%c0_33, %c0_34, %c0_35] : memref<2x1x32xf32, #tpu.memory_space<vmem>>, vector<1x1x32xf32>
    %67 = vector.shape_cast %66 : vector<1x1x32xf32> to vector<1x32xf32>
    %68 = arith.mulf %65, %65 : vector<48x32xf32>
    %cst_36 = arith.constant dense<0.000000e+00> : vector<48xf32>
    %69 = vector.multi_reduction <add>, %68, %cst_36 [1] : vector<48x32xf32> to vector<48xf32>
    %70 = vector.shape_cast %69 : vector<48xf32> to vector<48x1xf32>
    %cst_37 = arith.constant 3.200000e+01 : f32
    %71 = vector.broadcast %cst_37 : f32 to vector<48x1xf32>
    %72 = arith.divf %70, %71 : vector<48x1xf32>
    %cst_38 = arith.constant 9.99999997E-7 : f32
    %73 = vector.broadcast %cst_38 : f32 to vector<48x1xf32>
    %74 = arith.addf %72, %73 : vector<48x1xf32>
    %75 = math.rsqrt %74 : vector<48x1xf32>
    %76 = vector.broadcast %75 : vector<48x1xf32> to vector<48x32xf32>
    %77 = arith.mulf %65, %76 : vector<48x32xf32>
    %78 = vector.broadcast %67 : vector<1x32xf32> to vector<48x32xf32>
    %79 = arith.mulf %77, %78 : vector<48x32xf32>
    %80 = arith.truncf %79 : vector<48x32xf32> to vector<48x32xbf16>
    %c0_39 = arith.constant 0 : index
    %c0_40 = arith.constant 0 : index
    %c0_41 = arith.constant 0 : index
    %81 = vector.load %arg10[%c0_39, %c0_40, %c0_41] : memref<2x32x64xbf16, #tpu.memory_space<vmem>>, vector<1x32x64xbf16>
    %82 = vector.shape_cast %81 : vector<1x32x64xbf16> to vector<32x64xbf16>
    %cst_42 = arith.constant dense<0.000000e+00> : vector<48x64xf32>
    %83 = tpu.matmul %80, %82, %cst_42 {dimension_numbers = #tpu.dot_dimension_numbers<[1], [0], [0], [1], [0, 0, 1, 1], [], []>} : vector<48x32xbf16>, vector<32x64xbf16>, vector<48x64xf32> -> vector<48x64xf32>
    %cst_43 = arith.constant 0.000000e+00 : f32
    %84 = vector.broadcast %cst_43 : f32 to vector<48x64xf32>
    %85 = arith.maximumf %83, %84 : vector<48x64xf32>
    %86 = arith.truncf %85 : vector<48x64xf32> to vector<48x64xbf16>
    %c0_44 = arith.constant 0 : index
    %c0_45 = arith.constant 0 : index
    %c0_46 = arith.constant 0 : index
    %87 = vector.load %arg11[%c0_44, %c0_45, %c0_46] : memref<2x64x32xbf16, #tpu.memory_space<vmem>>, vector<1x64x32xbf16>
    %88 = vector.shape_cast %87 : vector<1x64x32xbf16> to vector<64x32xbf16>
    %cst_47 = arith.constant dense<0.000000e+00> : vector<48x32xf32>
    %89 = tpu.matmul %86, %88, %cst_47 {dimension_numbers = #tpu.dot_dimension_numbers<[1], [0], [0], [1], [0, 0, 1, 1], [], []>} : vector<48x64xbf16>, vector<64x32xbf16>, vector<48x32xf32> -> vector<48x32xf32>
    %90 = arith.addf %65, %89 : vector<48x32xf32>
    %c1 = arith.constant 1 : index
    %c0_48 = arith.constant 0 : index
    %c0_49 = arith.constant 0 : index
    %91 = vector.load %arg4[%c1, %c0_48, %c0_49] : memref<2x1x32xf32, #tpu.memory_space<vmem>>, vector<1x1x32xf32>
    %92 = vector.shape_cast %91 : vector<1x1x32xf32> to vector<1x32xf32>
    %93 = arith.mulf %90, %90 : vector<48x32xf32>
    %cst_50 = arith.constant dense<0.000000e+00> : vector<48xf32>
    %94 = vector.multi_reduction <add>, %93, %cst_50 [1] : vector<48x32xf32> to vector<48xf32>
    %95 = vector.shape_cast %94 : vector<48xf32> to vector<48x1xf32>
    %cst_51 = arith.constant 3.200000e+01 : f32
    %96 = vector.broadcast %cst_51 : f32 to vector<48x1xf32>
    %97 = arith.divf %95, %96 : vector<48x1xf32>
    %cst_52 = arith.constant 9.99999997E-7 : f32
    %98 = vector.broadcast %cst_52 : f32 to vector<48x1xf32>
    %99 = arith.addf %97, %98 : vector<48x1xf32>
    %100 = math.rsqrt %99 : vector<48x1xf32>
    %101 = vector.broadcast %100 : vector<48x1xf32> to vector<48x32xf32>
    %102 = arith.mulf %90, %101 : vector<48x32xf32>
    %103 = vector.broadcast %92 : vector<1x32xf32> to vector<48x32xf32>
    %104 = arith.mulf %102, %103 : vector<48x32xf32>
    %105 = arith.truncf %104 : vector<48x32xf32> to vector<48x32xbf16>
    %c1_53 = arith.constant 1 : index
    %c0_54 = arith.constant 0 : index
    %c0_55 = arith.constant 0 : index
    %106 = vector.load %arg5[%c1_53, %c0_54, %c0_55] : memref<2x32x32xbf16, #tpu.memory_space<vmem>>, vector<1x32x32xbf16>
    %107 = vector.shape_cast %106 : vector<1x32x32xbf16> to vector<32x32xbf16>
    %cst_56 = arith.constant dense<0.000000e+00> : vector<48x32xf32>
    %108 = tpu.matmul %105, %107, %cst_56 {dimension_numbers = #tpu.dot_dimension_numbers<[1], [0], [0], [1], [0, 0, 1, 1], [], []>} : vector<48x32xbf16>, vector<32x32xbf16>, vector<48x32xf32> -> vector<48x32xf32>
    %109 = arith.truncf %108 : vector<48x32xf32> to vector<48x32xbf16>
    %c1_57 = arith.constant 1 : index
    %c0_58 = arith.constant 0 : index
    %c0_59 = arith.constant 0 : index
    %110 = vector.load %arg6[%c1_57, %c0_58, %c0_59] : memref<2x32x32xbf16, #tpu.memory_space<vmem>>, vector<1x32x32xbf16>
    %111 = vector.shape_cast %110 : vector<1x32x32xbf16> to vector<32x32xbf16>
    %cst_60 = arith.constant dense<0.000000e+00> : vector<48x32xf32>
    %112 = tpu.matmul %105, %111, %cst_60 {dimension_numbers = #tpu.dot_dimension_numbers<[1], [0], [0], [1], [0, 0, 1, 1], [], []>} : vector<48x32xbf16>, vector<32x32xbf16>, vector<48x32xf32> -> vector<48x32xf32>
    %113 = arith.truncf %112 : vector<48x32xf32> to vector<48x32xbf16>
    %c1_61 = arith.constant 1 : index
    %c0_62 = arith.constant 0 : index
    %c0_63 = arith.constant 0 : index
    %114 = vector.load %arg7[%c1_61, %c0_62, %c0_63] : memref<2x32x32xbf16, #tpu.memory_space<vmem>>, vector<1x32x32xbf16>
    %115 = vector.shape_cast %114 : vector<1x32x32xbf16> to vector<32x32xbf16>
    %cst_64 = arith.constant dense<0.000000e+00> : vector<48x32xf32>
    %116 = tpu.matmul %105, %115, %cst_64 {dimension_numbers = #tpu.dot_dimension_numbers<[1], [0], [0], [1], [0, 0, 1, 1], [], []>} : vector<48x32xbf16>, vector<32x32xbf16>, vector<48x32xf32> -> vector<48x32xf32>
    %117 = arith.truncf %116 : vector<48x32xf32> to vector<48x32xbf16>
    %118 = tpu.concatenate %109, %109, %109, %109 in 0 : vector<48x32xbf16>, vector<48x32xbf16>, vector<48x32xbf16>, vector<48x32xbf16> -> vector<192x32xbf16>
    %119 = arith.mulf %118, %8 : vector<192x32xbf16>
    %cst_65 = arith.constant dense<0.000000e+00> : vector<192x48xf32>
    %120 = tpu.matmul %119, %113, %cst_65 {dimension_numbers = #tpu.dot_dimension_numbers<[1], [1], [0], [0], [0, 0, 1, 0], [], []>} : vector<192x32xbf16>, vector<48x32xbf16>, vector<192x48xf32> -> vector<192x48xf32>
    %121 = arith.addf %120, %9 : vector<192x48xf32>
    %cst_66 = arith.constant dense<0xFF800000> : vector<192xf32>
    %122 = vector.multi_reduction <maximumf>, %121, %cst_66 [1] : vector<192x48xf32> to vector<192xf32>
    %123 = vector.shape_cast %122 : vector<192xf32> to vector<192x1xf32>
    %124 = vector.broadcast %123 : vector<192x1xf32> to vector<192x48xf32>
    %125 = arith.subf %121, %124 : vector<192x48xf32>
    %126 = math.exp %125 : vector<192x48xf32>
    %cst_67 = arith.constant dense<0.000000e+00> : vector<192xf32>
    %127 = vector.multi_reduction <add>, %126, %cst_67 [1] : vector<192x48xf32> to vector<192xf32>
    %128 = vector.shape_cast %127 : vector<192xf32> to vector<192x1xf32>
    %129 = vector.broadcast %128 : vector<192x1xf32> to vector<192x48xf32>
    %130 = arith.divf %126, %129 : vector<192x48xf32>
    %131 = arith.truncf %130 : vector<192x48xf32> to vector<192x48xbf16>
    %cst_68 = arith.constant dense<0.000000e+00> : vector<192x32xf32>
    %132 = tpu.matmul %131, %117, %cst_68 {dimension_numbers = #tpu.dot_dimension_numbers<[1], [0], [0], [1], [0, 0, 1, 1], [], []>} : vector<192x48xbf16>, vector<48x32xbf16>, vector<192x32xf32> -> vector<192x32xf32>
    %133 = arith.extf %8 : vector<192x32xbf16> to vector<192x32xf32>
    %134 = arith.mulf %132, %133 : vector<192x32xf32>
    %135 = vector.extract_strided_slice %134 {offsets = [0, 0], sizes = [48, 32], strides = [1, 1]} : vector<192x32xf32> to vector<48x32xf32>
    %136 = vector.extract_strided_slice %134 {offsets = [48, 0], sizes = [48, 32], strides = [1, 1]} : vector<192x32xf32> to vector<48x32xf32>
    %137 = arith.addf %135, %136 : vector<48x32xf32>
    %138 = vector.extract_strided_slice %134 {offsets = [96, 0], sizes = [48, 32], strides = [1, 1]} : vector<192x32xf32> to vector<48x32xf32>
    %139 = arith.addf %137, %138 : vector<48x32xf32>
    %140 = vector.extract_strided_slice %134 {offsets = [144, 0], sizes = [48, 32], strides = [1, 1]} : vector<192x32xf32> to vector<48x32xf32>
    %141 = arith.addf %139, %140 : vector<48x32xf32>
    %142 = arith.truncf %141 : vector<48x32xf32> to vector<48x32xbf16>
    %c1_69 = arith.constant 1 : index
    %c0_70 = arith.constant 0 : index
    %c0_71 = arith.constant 0 : index
    %143 = vector.load %arg8[%c1_69, %c0_70, %c0_71] : memref<2x32x32xbf16, #tpu.memory_space<vmem>>, vector<1x32x32xbf16>
    %144 = vector.shape_cast %143 : vector<1x32x32xbf16> to vector<32x32xbf16>
    %cst_72 = arith.constant dense<0.000000e+00> : vector<48x32xf32>
    %145 = tpu.matmul %142, %144, %cst_72 {dimension_numbers = #tpu.dot_dimension_numbers<[1], [0], [0], [1], [0, 0, 1, 1], [], []>} : vector<48x32xbf16>, vector<32x32xbf16>, vector<48x32xf32> -> vector<48x32xf32>
    %146 = arith.addf %90, %145 : vector<48x32xf32>
    %c1_73 = arith.constant 1 : index
    %c0_74 = arith.constant 0 : index
    %c0_75 = arith.constant 0 : index
    %147 = vector.load %arg9[%c1_73, %c0_74, %c0_75] : memref<2x1x32xf32, #tpu.memory_space<vmem>>, vector<1x1x32xf32>
    %148 = vector.shape_cast %147 : vector<1x1x32xf32> to vector<1x32xf32>
    %149 = arith.mulf %146, %146 : vector<48x32xf32>
    %cst_76 = arith.constant dense<0.000000e+00> : vector<48xf32>
    %150 = vector.multi_reduction <add>, %149, %cst_76 [1] : vector<48x32xf32> to vector<48xf32>
    %151 = vector.shape_cast %150 : vector<48xf32> to vector<48x1xf32>
    %cst_77 = arith.constant 3.200000e+01 : f32
    %152 = vector.broadcast %cst_77 : f32 to vector<48x1xf32>
    %153 = arith.divf %151, %152 : vector<48x1xf32>
    %cst_78 = arith.constant 9.99999997E-7 : f32
    %154 = vector.broadcast %cst_78 : f32 to vector<48x1xf32>
    %155 = arith.addf %153, %154 : vector<48x1xf32>
    %156 = math.rsqrt %155 : vector<48x1xf32>
    %157 = vector.broadcast %156 : vector<48x1xf32> to vector<48x32xf32>
    %158 = arith.mulf %146, %157 : vector<48x32xf32>
    %159 = vector.broadcast %148 : vector<1x32xf32> to vector<48x32xf32>
    %160 = arith.mulf %158, %159 : vector<48x32xf32>
    %161 = arith.truncf %160 : vector<48x32xf32> to vector<48x32xbf16>
    %c1_79 = arith.constant 1 : index
    %c0_80 = arith.constant 0 : index
    %c0_81 = arith.constant 0 : index
    %162 = vector.load %arg10[%c1_79, %c0_80, %c0_81] : memref<2x32x64xbf16, #tpu.memory_space<vmem>>, vector<1x32x64xbf16>
    %163 = vector.shape_cast %162 : vector<1x32x64xbf16> to vector<32x64xbf16>
    %cst_82 = arith.constant dense<0.000000e+00> : vector<48x64xf32>
    %164 = tpu.matmul %161, %163, %cst_82 {dimension_numbers = #tpu.dot_dimension_numbers<[1], [0], [0], [1], [0, 0, 1, 1], [], []>} : vector<48x32xbf16>, vector<32x64xbf16>, vector<48x64xf32> -> vector<48x64xf32>
    %cst_83 = arith.constant 0.000000e+00 : f32
    %165 = vector.broadcast %cst_83 : f32 to vector<48x64xf32>
    %166 = arith.maximumf %164, %165 : vector<48x64xf32>
    %167 = arith.truncf %166 : vector<48x64xf32> to vector<48x64xbf16>
    %c1_84 = arith.constant 1 : index
    %c0_85 = arith.constant 0 : index
    %c0_86 = arith.constant 0 : index
    %168 = vector.load %arg11[%c1_84, %c0_85, %c0_86] : memref<2x64x32xbf16, #tpu.memory_space<vmem>>, vector<1x64x32xbf16>
    %169 = vector.shape_cast %168 : vector<1x64x32xbf16> to vector<64x32xbf16>
    %cst_87 = arith.constant dense<0.000000e+00> : vector<48x32xf32>
    %170 = tpu.matmul %167, %169, %cst_87 {dimension_numbers = #tpu.dot_dimension_numbers<[1], [0], [0], [1], [0, 0, 1, 1], [], []>} : vector<48x64xbf16>, vector<64x32xbf16>, vector<48x32xf32> -> vector<48x32xf32>
    %171 = arith.addf %146, %170 : vector<48x32xf32>
    %c0_88 = arith.constant 0 : index
    %c0_89 = arith.constant 0 : index
    %172 = vector.load %arg12[%c0_88, %c0_89] : memref<1x32xf32, #tpu.memory_space<vmem>>, vector<1x32xf32>
    %173 = arith.mulf %171, %171 : vector<48x32xf32>
    %cst_90 = arith.constant dense<0.000000e+00> : vector<48xf32>
    %174 = vector.multi_reduction <add>, %173, %cst_90 [1] : vector<48x32xf32> to vector<48xf32>
    %175 = vector.shape_cast %174 : vector<48xf32> to vector<48x1xf32>
    %cst_91 = arith.constant 3.200000e+01 : f32
    %176 = vector.broadcast %cst_91 : f32 to vector<48x1xf32>
    %177 = arith.divf %175, %176 : vector<48x1xf32>
    %cst_92 = arith.constant 9.99999997E-7 : f32
    %178 = vector.broadcast %cst_92 : f32 to vector<48x1xf32>
    %179 = arith.addf %177, %178 : vector<48x1xf32>
    %180 = math.rsqrt %179 : vector<48x1xf32>
    %181 = vector.broadcast %180 : vector<48x1xf32> to vector<48x32xf32>
    %182 = arith.mulf %171, %181 : vector<48x32xf32>
    %183 = vector.broadcast %172 : vector<1x32xf32> to vector<48x32xf32>
    %184 = arith.mulf %182, %183 : vector<48x32xf32>
    %c0_93 = arith.constant 0 : index
    %c0_94 = arith.constant 0 : index
    %185 = vector.load %arg15[%c0_93, %c0_94] : memref<48x32xf32, #tpu.memory_space<vmem>>, vector<48x32xf32>
    tpu.vector_store %arg15[%c0_93, %c0_94], %184 {strides = array<i32>} : memref<48x32xf32, #tpu.memory_space<vmem>>, vector<48x32xf32>,
    %cst_95 = arith.constant 0.000000e+00 : f32
    %186 = vector.broadcast %cst_95 : f32 to vector<1x1xf32>
    %187 = vector.extract_strided_slice %184 {offsets = [0, 0], sizes = [1, 32], strides = [1, 1]} : vector<48x32xf32> to vector<1x32xf32>
    %188 = vector.extract_strided_slice %184 {offsets = [16, 0], sizes = [1, 32], strides = [1, 1]} : vector<48x32xf32> to vector<1x32xf32>
    %189 = vector.extract_strided_slice %184 {offsets = [32, 0], sizes = [1, 32], strides = [1, 1]} : vector<48x32xf32> to vector<1x32xf32>
    %190 = arith.mulf %187, %188 : vector<1x32xf32>
    %cst_96 = arith.constant dense<0.000000e+00> : vector<1xf32>
    %191 = vector.multi_reduction <add>, %190, %cst_96 [1] : vector<1x32xf32> to vector<1xf32>
    %192 = vector.shape_cast %191 : vector<1xf32> to vector<1x1xf32>
    %193 = arith.mulf %187, %189 : vector<1x32xf32>
    %cst_97 = arith.constant dense<0.000000e+00> : vector<1xf32>
    %194 = vector.multi_reduction <add>, %193, %cst_97 [1] : vector<1x32xf32> to vector<1xf32>
    %195 = vector.shape_cast %194 : vector<1xf32> to vector<1x1xf32>
    %196 = arith.subf %192, %195 : vector<1x1xf32>
    %c0_98 = arith.constant 0 : index
    %197 = memref.load %arg13[%c0_98] : memref<2xf32, #tpu.memory_space<smem>>
    %c0_99 = arith.constant 0 : index
    %198 = memref.load %arg14[%c0_99] : memref<2xf32, #tpu.memory_space<smem>>
    %199 = arith.subf %197, %198 : f32
    %200 = vector.broadcast %199 : f32 to vector<1x1xf32>
    %201 = arith.subf %196, %200 : vector<1x1xf32>
    %202 = arith.mulf %201, %201 : vector<1x1xf32>
    %203 = arith.addf %186, %202 : vector<1x1xf32>
    %204 = vector.extract_strided_slice %184 {offsets = [8, 0], sizes = [1, 32], strides = [1, 1]} : vector<48x32xf32> to vector<1x32xf32>
    %205 = vector.extract_strided_slice %184 {offsets = [24, 0], sizes = [1, 32], strides = [1, 1]} : vector<48x32xf32> to vector<1x32xf32>
    %206 = vector.extract_strided_slice %184 {offsets = [40, 0], sizes = [1, 32], strides = [1, 1]} : vector<48x32xf32> to vector<1x32xf32>
    %207 = arith.mulf %204, %205 : vector<1x32xf32>
    %cst_100 = arith.constant dense<0.000000e+00> : vector<1xf32>
    %208 = vector.multi_reduction <add>, %207, %cst_100 [1] : vector<1x32xf32> to vector<1xf32>
    %209 = vector.shape_cast %208 : vector<1xf32> to vector<1x1xf32>
    %210 = arith.mulf %204, %206 : vector<1x32xf32>
    %cst_101 = arith.constant dense<0.000000e+00> : vector<1xf32>
    %211 = vector.multi_reduction <add>, %210, %cst_101 [1] : vector<1x32xf32> to vector<1xf32>
    %212 = vector.shape_cast %211 : vector<1xf32> to vector<1x1xf32>
    %213 = arith.subf %209, %212 : vector<1x1xf32>
    %c1_102 = arith.constant 1 : index
    %214 = memref.load %arg13[%c1_102] : memref<2xf32, #tpu.memory_space<smem>>
    %c1_103 = arith.constant 1 : index
    %215 = memref.load %arg14[%c1_103] : memref<2xf32, #tpu.memory_space<smem>>
    %216 = arith.subf %214, %215 : f32
    %217 = vector.broadcast %216 : f32 to vector<1x1xf32>
    %218 = arith.subf %213, %217 : vector<1x1xf32>
    %219 = arith.mulf %218, %218 : vector<1x1xf32>
    %220 = arith.addf %203, %219 : vector<1x1xf32>
    %cst_104 = arith.constant 5.000000e-01 : f32
    %221 = vector.broadcast %cst_104 : f32 to vector<1x1xf32>
    %222 = arith.mulf %220, %221 : vector<1x1xf32>
    %c0_105 = arith.constant 0 : index
    %c0_106 = arith.constant 0 : index
    %223 = vector.load %arg16[%c0_105, %c0_106] : memref<1x1xf32, #tpu.memory_space<vmem>>, vector<1x1xf32>
    tpu.vector_store %arg16[%c0_105, %c0_106], %222 {strides = array<i32>} : memref<1x1xf32, #tpu.memory_space<vmem>>, vector<1x1xf32>,
    return
  }
}

</mosaic_0001>

<llo_original>
// kernel: forward.1
$region0: #{forward.1}
  #allocation0 [shape = 'u32[]', space=smem, size = 0x4, offset = 0x4, fixed_abs, tag = 'smem constant byte address 0x4 - core index']
  #allocation1 [shape = 'u32[144,128]{1,0:T(1,128)}', space=vmem, size = 0x12000, scoped, tag = 'internal scratch']
  %s0 = inlined_call_operand.vmem [shape: s32[48,1], index: 0, kind: input, shape index: {}]
  %s1 = inlined_call_operand.vmem [shape: f32[128,32], index: 1, kind: input, shape index: {}]
  %s2 = inlined_call_operand.vmem [shape: bf16[192,32], index: 2, kind: input, shape index: {}]
  %s3 = inlined_call_operand.vmem [shape: f32[192,48], index: 3, kind: input, shape index: {}]
  %s4 = inlined_call_operand.vmem [shape: f32[2,1,32], index: 4, kind: input, shape index: {}]
  %s5 = inlined_call_operand.vmem [shape: bf16[2,32,32], index: 5, kind: input, shape index: {}]
  %s6 = inlined_call_operand.vmem [shape: bf16[2,32,32], index: 6, kind: input, shape index: {}]
  %s7 = inlined_call_operand.vmem [shape: bf16[2,32,32], index: 7, kind: input, shape index: {}]
  %s8 = inlined_call_operand.vmem [shape: bf16[2,32,32], index: 8, kind: input, shape index: {}]
  %s9 = inlined_call_operand.vmem [shape: f32[2,1,32], index: 9, kind: input, shape index: {}]
  %s10 = inlined_call_operand.vmem [shape: bf16[2,32,64], index: 10, kind: input, shape index: {}]
  %s11 = inlined_call_operand.vmem [shape: bf16[2,64,32], index: 11, kind: input, shape index: {}]
  %s12 = inlined_call_operand.vmem [shape: f32[1,32], index: 12, kind: input, shape index: {}]
  %s13 = inlined_call_operand.vmem [shape: f32[2], index: 13, kind: input, shape index: {}]
  %s14 = inlined_call_operand.vmem [shape: f32[2], index: 14, kind: input, shape index: {}]
  %s15 = inlined_call_operand.hbm [shape: f32[48,32], index: 15, kind: output, shape index: {0}]
  %s16 = inlined_call_operand.hbm [shape: f32[1,1], index: 16, kind: output, shape index: {1}]
  %17 = xla_tuple %s15, %s16
  %s18 = sld [smem:[#allocation0]]
  $region86: #{forward.1} parent=0
    _
  %s20 = ssub.s32 1, %s18
  %s21 = scalar_select 0, %s20, %s18
  $region1: #{forward.1} parent=0
    #allocation2 [shape = 'u8[512]{0}', space=smem, size = 0x200, scoped, tag = 'input window, operand 13, single buffered']
    #allocation3 [shape = 's32[1]{0}', space=sflag, size = 0x4, scoped, tag = 'scoped memory for forward.1']
    #allocation4 [shape = 's32[1]{0}', space=sflag, size = 0x4, scoped, tag = 'scoped memory for forward.1']
    #allocation5 [shape = 'u8[512]{0}', space=smem, size = 0x200, scoped, tag = 'input window, operand 14, single buffered']
    #allocation6 [shape = 's32[1]{0}', space=sflag, size = 0x4, scoped, tag = 'scoped memory for forward.1']
    #allocation7 [shape = 'u8[24576]{0}', space=vmem, size = 0x6000, scoped, tag = 'output window, operand 0, single buffered']
    #allocation8 [shape = 'u8[512]{0}', space=vmem, size = 0x400, scoped, tag = 'output window, operand 1, single buffered']
    #allocation9 [shape = 's32[1]{0}', space=sflag, size = 0x4, scoped, tag = 'scoped memory for forward.1']
    %22 = vsyncpa [#allocation4], 0
    %23 = vsyncpa [#allocation6], 0
    %24 = vsyncpa [#allocation3], 0
    %25 = vsyncpa [#allocation9], 0
    // Predicated region
    $region2: #{forward.1} parent=1 // pred_check
      _
    $region3: #{forward.1} parent=1 // pred_check_branch
      %27 = sbr.rel (0) target = $region5
    $region4: #{forward.1} parent=1 // pred_region
      _
    $region5: #{forward.1} parent=1 // pred_fallthru
      _
    // Predicated region
    $region6: #{forward.1} parent=1 // pred_check
      _
    $region7: #{forward.1} parent=1 // pred_check_branch
      %29 = sbr.rel (0) target = $region9
    $region8: #{forward.1} parent=1 // pred_region
      _
    $region9: #{forward.1} parent=1 // pred_fallthru
      _
    // Predicated region
    $region10: #{forward.1} parent=1 // pred_check
      _
    $region11: #{forward.1} parent=1 // pred_check_branch
      %31 = sbr.rel (0) target = $region13
    $region12: #{forward.1} parent=1 // pred_region
      _
    $region13: #{forward.1} parent=1 // pred_fallthru
      _
    // Predicated region
    $region14: #{forward.1} parent=1 // pred_check
      _
    $region15: #{forward.1} parent=1 // pred_check_branch
      %33 = sbr.rel (0) target = $region17
    $region16: #{forward.1} parent=1 // pred_region
      _
    $region17: #{forward.1} parent=1 // pred_fallthru
      _
    // Predicated region
    $region18: #{forward.1} parent=1 // pred_check
      _
    $region19: #{forward.1} parent=1 // pred_check_branch
      %35 = sbr.rel (0) target = $region21
    $region20: #{forward.1} parent=1 // pred_region
      _
    $region21: #{forward.1} parent=1 // pred_fallthru
      _
    // Predicated region
    $region22: #{forward.1} parent=1 // pred_check
      _
    $region23: #{forward.1} parent=1 // pred_check_branch
      %37 = sbr.rel (0) target = $region25
    $region24: #{forward.1} parent=1 // pred_region
      _
    $region25: #{forward.1} parent=1 // pred_fallthru
      _
    // Predicated region
    $region26: #{forward.1} parent=1 // pred_check
      _
    $region27: #{forward.1} parent=1 // pred_check_branch
      %39 = sbr.rel (0) target = $region29
    $region28: #{forward.1} parent=1 // pred_region
      _
    $region29: #{forward.1} parent=1 // pred_fallthru
      _
    // Predicated region
    $region30: #{forward.1} parent=1 // pred_check
      _
    $region31: #{forward.1} parent=1 // pred_check_branch
      %41 = sbr.rel (0) target = $region33
    $region32: #{forward.1} parent=1 // pred_region
      _
    $region33: #{forward.1} parent=1 // pred_fallthru
      _
    // Predicated region
    $region34: #{forward.1} parent=1 // pred_check
      _
    $region35: #{forward.1} parent=1 // pred_check_branch
      %43 = sbr.rel (0) target = $region37
    $region36: #{forward.1} parent=1 // pred_region
      _
    $region37: #{forward.1} parent=1 // pred_fallthru
      _
    // Predicated region
    $region38: #{forward.1} parent=1 // pred_check
      _
    $region39: #{forward.1} parent=1 // pred_check_branch
      %45 = sbr.rel (0) target = $region41
    $region40: #{forward.1} parent=1 // pred_region
      _
    $region41: #{forward.1} parent=1 // pred_fallthru
      _
    // Predicated region
    $region42: #{forward.1} parent=1 // pred_check
      _
    $region43: #{forward.1} parent=1 // pred_check_branch
      %47 = sbr.rel (0) target = $region45
    $region44: #{forward.1} parent=1 // pred_region
      _
    $region45: #{forward.1} parent=1 // pred_fallthru
      _
    // Predicated region
    $region46: #{forward.1} parent=1 // pred_check
      _
    $region47: #{forward.1} parent=1 // pred_check_branch
      %49 = sbr.rel (0) target = $region49
    $region48: #{forward.1} parent=1 // pred_region
      _
    $region49: #{forward.1} parent=1 // pred_fallthru
      _
    // Predicated region
    $region50: #{forward.1} parent=1 // pred_check
      _
    $region51: #{forward.1} parent=1 // pred_check_branch
      %51 = sbr.rel (0) target = $region53
    $region52: #{forward.1} parent=1 // pred_region
      _
    $region53: #{forward.1} parent=1 // pred_fallthru
      _
    // Predicated region
    $region54: #{forward.1} parent=1 // pred_check
      _
    $region55: #{forward.1} parent=1 // pred_check_branch
      %53 = sbr.rel (0) target = $region57
    $region56: #{forward.1} parent=1 // pred_region
      %s55 = ssub.s32 16, 16
      %56 = vsyncadd [#allocation4], %s55
      %s58 = sshll.u32 %s13, 4
      %s59 = int_to_ptr.vmem [resolvable:$true] %s58
      %61 = dma.vmem_to_smem %s59, 16, [#allocation2], [#allocation4]
    $region57: #{forward.1} parent=1 // pred_fallthru
      _
    // Predicated region
    $region58: #{forward.1} parent=1 // pred_check
      _
    $region59: #{forward.1} parent=1 // pred_check_branch
      %63 = sbr.rel (0) target = $region61
    $region60: #{forward.1} parent=1 // pred_region
      %s65 = ssub.s32 16, 16
      %66 = vsyncadd [#allocation6], %s65
      %s68 = sshll.u32 %s14, 4
      %s69 = int_to_ptr.vmem [resolvable:$true] %s68
      %71 = dma.vmem_to_smem %s69, 16, [#allocation5], [#allocation6]
    $region61: #{forward.1} parent=1 // pred_fallthru
      _
    // Predicated region
    $region62: #{forward.1} parent=1 // pred_check
      _
    $region63: #{forward.1} parent=1 // pred_check_branch
      %73 = sbr.rel (0) target = $region65
    $region64: #{forward.1} parent=1 // pred_region
      %74 = dma.done [#allocation4], 16
    $region65: #{forward.1} parent=1 // pred_fallthru
      _
    // Predicated region
    $region66: #{forward.1} parent=1 // pred_check
      _
    $region67: #{forward.1} parent=1 // pred_check_branch
      %76 = sbr.rel (0) target = $region69
    $region68: #{forward.1} parent=1 // pred_region
      %77 = dma.done [#allocation6], 16
    $region69: #{forward.1} parent=1 // pred_fallthru
      _
    %78 = sfence
    %v80 = vlaneseq
    %v81 = vand.u32 %v80, 127
    %v82 = vld [vmem:[%s0] sm:$0xff]
    %v83 = vld [vmem:[%s0 + $0x8] sm:$0xff]
    %v84 = vld [vmem:[%s0 + $0x10] sm:$0xff]
    %v85 = vld [vmem:[%s0 + $0x18] sm:$0xff]
    %v86 = vld [vmem:[%s0 + $0x20] sm:$0xff]
    %v87 = vld [vmem:[%s0 + $0x28] sm:$0xff]
    %88 = vset.pattern.permute.xlu0 0
    %89 = vperm.xlu0 %88, %v82
    %v90 = vpop.permute.xlu0 %89
    %91 = vset.pattern.permute.xlu0 0
    %92 = vperm.xlu0 %91, %v83
    %v93 = vpop.permute.xlu0 %92
    %94 = vset.pattern.permute.xlu0 0
    %95 = vperm.xlu0 %94, %v84
    %v96 = vpop.permute.xlu0 %95
    %97 = vset.pattern.permute.xlu0 0
    %98 = vperm.xlu0 %97, %v85
    %v99 = vpop.permute.xlu0 %98
    %100 = vset.pattern.permute.xlu0 0
    %101 = vperm.xlu0 %100, %v86
    %v102 = vpop.permute.xlu0 %101
    %103 = vset.pattern.permute.xlu0 0
    %104 = vperm.xlu0 %103, %v87
    %v105 = vpop.permute.xlu0 %104
    %vm106 = vcmp.eq.s32.totalorder %v90, %v81
    %vm107 = vcmp.eq.s32.totalorder %v93, %v81
    %vm108 = vcmp.eq.s32.totalorder %v96, %v81
    %vm109 = vcmp.eq.s32.totalorder %v99, %v81
    %vm110 = vcmp.eq.s32.totalorder %v102, %v81
    %vm111 = vcmp.eq.s32.totalorder %v105, %v81
    %v112 = vsel %vm106, 1, 0
    %v113 = vsel %vm107, 1, 0
    %v114 = vsel %vm108, 1, 0
    %v115 = vsel %vm109, 1, 0
    %v116 = vsel %vm110, 1, 0
    %v117 = vsel %vm111, 1, 0
    %v118 = vcvt.s32.f32 %v112
    %v119 = vcvt.s32.f32 %v113
    %v120 = vcvt.s32.f32 %v114
    %v121 = vcvt.s32.f32 %v115
    %v122 = vcvt.s32.f32 %v116
    %v123 = vcvt.s32.f32 %v117
    %v124 = vld [vmem:[%s1] sm:$0xff]
    %v125 = vld [vmem:[%s1 + $0x8] sm:$0xff]
    %v126 = vld [vmem:[%s1 + $0x10] sm:$0xff]
    %v127 = vld [vmem:[%s1 + $0x18] sm:$0xff]
    %v128 = vld [vmem:[%s1 + $0x20] sm:$0xff]
    %v129 = vld [vmem:[%s1 + $0x28] sm:$0xff]
    %v130 = vld [vmem:[%s1 + $0x30] sm:$0xff]
    %v131 = vld [vmem:[%s1 + $0x38] sm:$0xff]
    %v132 = vld [vmem:[%s1 + $0x40] sm:$0xff]
    %v133 = vld [vmem:[%s1 + $0x48] sm:$0xff]
    %v134 = vld [vmem:[%s1 + $0x50] sm:$0xff]
    %v135 = vld [vmem:[%s1 + $0x58] sm:$0xff]
    %v136 = vld [vmem:[%s1 + $0x60] sm:$0xff]
    %v137 = vld [vmem:[%s1 + $0x68] sm:$0xff]
    %v138 = vld [vmem:[%s1 + $0x70] sm:$0xff]
    %v139 = vld [vmem:[%s1 + $0x78] sm:$0xff]
    %140 = vmatprep.subr.mxu0 0.0
    %141 = vmatpush1.msra.mxu0 %v124
    %142 = vmatprep.subr.mxu0 0.0
    %143 = vmatpush1.msra.mxu0 %v125
    %144 = vmatprep.subr.mxu0 0.0
    %145 = vmatpush1.msra.mxu0 %v126
    %146 = vmatprep.subr.mxu0 0.0
    %147 = vmatpush1.msra.mxu0 %v127
    %148 = vmatprep.subr.mxu0 0.0
    %149 = vmatpush1.msra.mxu0 %v128
    %150 = vmatprep.subr.mxu0 0.0
    %151 = vmatpush1.msra.mxu0 %v129
    %152 = vmatprep.subr.mxu0 0.0
    %153 = vmatpush1.msra.mxu0 %v130
    %154 = vmatprep.subr.mxu0 0.0
    %155 = vmatpush1.msra.mxu0 %v131
    %156 = vmatprep.subr.mxu0 0.0
    %157 = vmatpush1.msra.mxu0 %v132
    %158 = vmatprep.subr.mxu0 0.0
    %159 = vmatpush1.msra.mxu0 %v133
    %160 = vmatprep.subr.mxu0 0.0
    %161 = vmatpush1.msra.mxu0 %v134
    %162 = vmatprep.subr.mxu0 0.0
    %163 = vmatpush1.msra.mxu0 %v135
    %164 = vmatprep.subr.mxu0 0.0
    %165 = vmatpush1.msra.mxu0 %v136
    %166 = vmatprep.subr.mxu0 0.0
    %167 = vmatpush1.msra.mxu0 %v137
    %168 = vmatprep.subr.mxu0 0.0
    %169 = vmatpush1.msra.mxu0 %v138
    %170 = vmatprep.subr.mxu0 0.0
    %171 = vmatpush1.msra.mxu0 %v139
    %172 = vmatprep.subr.mxu0 0.0
    %173 = vmatpush1.msra.mxu0 0.0
    %174 = vmatprep.subr.mxu0 0.0
    %175 = vmatpush1.msra.mxu0 0.0
    %176 = vmatprep.subr.mxu0 0.0
    %177 = vmatpush1.msra.mxu0 0.0
    %178 = vmatprep.subr.mxu0 0.0
    %179 = vmatpush1.msra.mxu0 0.0
    %180 = vmatprep.subr.mxu0 0.0
    %181 = vmatpush1.msra.mxu0 0.0
    %182 = vmatprep.subr.mxu0 0.0
    %183 = vmatpush1.msra.mxu0 0.0
    %184 = vmatprep.subr.mxu0 0.0
    %185 = vmatpush1.msra.mxu0 0.0
    %186 = vmatprep.subr.mxu0 0.0
    %187 = vmatpush1.msra.mxu0 0.0
    %188 = vmatprep.subr.mxu0 0.0
    %189 = vmatpush1.msra.mxu0 0.0
    %190 = vmatprep.subr.mxu0 0.0
    %191 = vmatpush1.msra.mxu0 0.0
    %192 = vmatprep.subr.mxu0 0.0
    %193 = vmatpush1.msra.mxu0 0.0
    %194 = vmatprep.subr.mxu0 0.0
    %195 = vmatpush1.msra.mxu0 0.0
    %196 = vmatprep.subr.mxu0 0.0
    %197 = vmatpush1.msra.mxu0 0.0
    %198 = vmatprep.subr.mxu0 0.0
    %199 = vmatpush1.msra.mxu0 0.0
    %200 = vmatprep.subr.mxu0 0.0
    %201 = vmatpush1.msra.mxu0 0.0
    %202 = vmatprep.subr.mxu0 0.0
    %203 = vmatpush1.msra.mxu0 0.0
    %204 = vmatprep.mubr.f32.mxu0 0.0
    %205 = vmatmul.mubr.f32.gmra.mrb[0].mxu0 %v118
    %v206 = vpop.f32.mrb[0].mxu0
    %v207 = vadd.f32 0.0, %v206
    %v208 = vpop.f32.mrb[0].mxu0
    %209 = vmatprep.mubr.f32.mxu0 0.0
    %210 = vmatmul.mubr.f32.gmra.mrb[0].mxu0 %v119
    %v211 = vpop.f32.mrb[0].mxu0
    %v212 = vadd.f32 0.0, %v211
    %v213 = vpop.f32.mrb[0].mxu0
    %214 = vmatprep.mubr.f32.mxu0 0.0
    %215 = vmatmul.mubr.f32.gmra.mrb[0].mxu0 %v120
    %v216 = vpop.f32.mrb[0].mxu0
    %v217 = vadd.f32 0.0, %v216
    %v218 = vpop.f32.mrb[0].mxu0
    %219 = vmatprep.mubr.f32.mxu0 0.0
    %220 = vmatmul.mubr.f32.gmra.mrb[0].mxu0 %v121
    %v221 = vpop.f32.mrb[0].mxu0
    %v222 = vadd.f32 0.0, %v221
    %v223 = vpop.f32.mrb[0].mxu0
    %224 = vmatprep.mubr.f32.mxu0 0.0
    %225 = vmatmul.mubr.f32.gmra.mrb[0].mxu0 %v122
    %v226 = vpop.f32.mrb[0].mxu0
    %v227 = vadd.f32 0.0, %v226
    %v228 = vpop.f32.mrb[0].mxu0
    %229 = vmatprep.mubr.f32.mxu0 0.0
    %230 = vmatmul.mubr.f32.gmra.mrb[0].mxu0 %v123
    %v231 = vpop.f32.mrb[0].mxu0
    %v232 = vadd.f32 0.0, %v231
    %v233 = vpop.f32.mrb[0].mxu0
    %234 = vdwg.mxu0
    %v235 = vld [vmem:[%s2] sm:$0xf]
    %v236 = vld [vmem:[%s2 + $0x4] sm:$0xf]
    %v237 = vld [vmem:[%s2 + $0x8] sm:$0xf]
    %v238 = vld [vmem:[%s2 + $0xc] sm:$0xf]
    %v239 = vld [vmem:[%s2 + $0x10] sm:$0xf]
    %v240 = vld [vmem:[%s2 + $0x14] sm:$0xf]
    %v241 = vld [vmem:[%s2 + $0x18] sm:$0xf]
    %v242 = vld [vmem:[%s2 + $0x1c] sm:$0xf]
    %v243 = vld [vmem:[%s2 + $0x20] sm:$0xf]
    %v244 = vld [vmem:[%s2 + $0x24] sm:$0xf]
    %v245 = vld [vmem:[%s2 + $0x28] sm:$0xf]
    %v246 = vld [vmem:[%s2 + $0x2c] sm:$0xf]
    %v247 = vld [vmem:[%s2 + $0x30] sm:$0xf]
    %v248 = vld [vmem:[%s2 + $0x34] sm:$0xf]
    %v249 = vld [vmem:[%s2 + $0x38] sm:$0xf]
    %v250 = vld [vmem:[%s2 + $0x3c] sm:$0xf]
    %v251 = vld [vmem:[%s2 + $0x40] sm:$0xf]
    %v252 = vld [vmem:[%s2 + $0x44] sm:$0xf]
    %v253 = vld [vmem:[%s2 + $0x48] sm:$0xf]
    %v254 = vld [vmem:[%s2 + $0x4c] sm:$0xf]
    %v255 = vld [vmem:[%s2 + $0x50] sm:$0xf]
    %v256 = vld [vmem:[%s2 + $0x54] sm:$0xf]
    %v257 = vld [vmem:[%s2 + $0x58] sm:$0xf]
    %v258 = vld [vmem:[%s2 + $0x5c] sm:$0xf]
    %v259 = vld [vmem:[%s3] sm:$0xff]
    %v260 = vld [vmem:[%s3 + $0x8] sm:$0xff]
    %v261 = vld [vmem:[%s3 + $0x10] sm:$0xff]
    %v262 = vld [vmem:[%s3 + $0x18] sm:$0xff]
    %v263 = vld [vmem:[%s3 + $0x20] sm:$0xff]
    %v264 = vld [vmem:[%s3 + $0x28] sm:$0xff]
    %v265 = vld [vmem:[%s3 + $0x30] sm:$0xff]
    %v266 = vld [vmem:[%s3 + $0x38] sm:$0xff]
    %v267 = vld [vmem:[%s3 + $0x40] sm:$0xff]
    %v268 = vld [vmem:[%s3 + $0x48] sm:$0xff]
    %v269 = vld [vmem:[%s3 + $0x50] sm:$0xff]
    %v270 = vld [vmem:[%s3 + $0x58] sm:$0xff]
    %v271 = vld [vmem:[%s3 + $0x60] sm:$0xff]
    %v272 = vld [vmem:[%s3 + $0x68] sm:$0xff]
    %v273 = vld [vmem:[%s3 + $0x70] sm:$0xff]
    %v274 = vld [vmem:[%s3 + $0x78] sm:$0xff]
    %v275 = vld [vmem:[%s3 + $0x80] sm:$0xff]
    %v276 = vld [vmem:[%s3 + $0x88] sm:$0xff]
    %v277 = vld [vmem:[%s3 + $0x90] sm:$0xff]
    %v278 = vld [vmem:[%s3 + $0x98] sm:$0xff]
    %v279 = vld [vmem:[%s3 + $0xa0] sm:$0xff]
    %v280 = vld [vmem:[%s3 + $0xa8] sm:$0xff]
    %v281 = vld [vmem:[%s3 + $0xb0] sm:$0xff]
    %v282 = vld [vmem:[%s3 + $0xb8] sm:$0xff]
    %v283 = vld [vmem:[%s4] sm:$0x1]
    %v284 = vmul.f32 %v207, %v207
    %v285 = vmul.f32 %v212, %v212
    %v286 = vmul.f32 %v217, %v217
    %v287 = vmul.f32 %v222, %v222
    %v288 = vmul.f32 %v227, %v227
    %v289 = vmul.f32 %v232, %v232
    %vm290 = vcmask 261120
    %v291 = vsel %vm290, %v284, 0.0
    %292 = vadd.xlane.f32.xlu0 %v291
    %v293 = vpop.xlane.xlu0 %292
    %v294 = vsel %vm290, %v285, 0.0
    %295 = vadd.xlane.f32.xlu0 %v294
    %v296 = vpop.xlane.xlu0 %295
    %v297 = vsel %vm290, %v286, 0.0
    %298 = vadd.xlane.f32.xlu0 %v297
    %v299 = vpop.xlane.xlu0 %298
    %v300 = vsel %vm290, %v287, 0.0
    %301 = vadd.xlane.f32.xlu0 %v300
    %v302 = vpop.xlane.xlu0 %301
    %v303 = vsel %vm290, %v288, 0.0
    %304 = vadd.xlane.f32.xlu0 %v303
    %v305 = vpop.xlane.xlu0 %304
    %v306 = vsel %vm290, %v289, 0.0
    %307 = vadd.xlane.f32.xlu0 %v306
    %v308 = vpop.xlane.xlu0 %307
    %v309 = vrcp.pop 32.0
    %v310 = vmul.f32 %v293, %v309
    %v311 = vmul.f32 %v296, %v309
    %v312 = vmul.f32 %v299, %v309
    %v313 = vmul.f32 %v302, %v309
    %v314 = vmul.f32 %v305, %v309
    %v315 = vmul.f32 %v308, %v309
    %v316 = vadd.f32 %v310, 1e-06
    %v317 = vadd.f32 %v311, 1e-06
    %v318 = vadd.f32 %v312, 1e-06
    %v319 = vadd.f32 %v313, 1e-06
    %v320 = vadd.f32 %v314, 1e-06
    %v321 = vadd.f32 %v315, 1e-06
    %v322 = vrsqrt.pop %v316
    %v323 = vrsqrt.pop %v317
    %v324 = vrsqrt.pop %v318
    %v325 = vrsqrt.pop %v319
    %v326 = vrsqrt.pop %v320
    %v327 = vrsqrt.pop %v321
    %v328 = vmul.f32 %v207, %v322
    %v329 = vmul.f32 %v212, %v323
    %v330 = vmul.f32 %v217, %v324
    %v331 = vmul.f32 %v222, %v325
    %v332 = vmul.f32 %v227, %v326
    %v333 = vmul.f32 %v232, %v327
    %v335 = vlaneseq
    %v336 = vshrl.u32 %v335, 7
    %v337 = vsub.s32 0, %v336
    %v338 = vrot.slane %v283, %v337
    %v340 = vmul.f32 %v328, %v338
    %v341 = vmul.f32 %v329, %v338
    %v342 = vmul.f32 %v330, %v338
    %v343 = vmul.f32 %v331, %v338
    %v344 = vmul.f32 %v332, %v338
    %v345 = vmul.f32 %v333, %v338
    %v346 = vpack.c.bf16 %v341, %v340
    %v347 = vpack.c.bf16 %v343, %v342
    %v348 = vpack.c.bf16 %v345, %v344
    %v349 = vld [vmem:[%s5] sm:$0xf]
    %v350 = vld [vmem:[%s5 + $0x4] sm:$0xf]
    %v351 = vld [vmem:[%s5 + $0x8] sm:$0xf]
    %v352 = vld [vmem:[%s5 + $0xc] sm:$0xf]
    %v357 = vunpack.c.l.b16 %v349
    %v358 = vunpack.c.l.b16 %v350
    %v359 = vunpack.c.l.b16 %v351
    %v360 = vunpack.c.l.b16 %v352
    %v361 = vpack.c.b16 %v358, %v357
    %v362 = vpack.c.b16 %v360, %v359
    %v366 = vsel %vm290, %v346, 0
    %v369 = vsel %vm290, %v347, 0
    %v372 = vsel %vm290, %v348, 0
    %374 = vmatprep.subr.bf16.mxu0 0
    %375 = vmatpush1.bf16.msra.mxu0 %v361
    %376 = vmatprep.subr.bf16.mxu0 0
    %377 = vmatpush1.bf16.msra.mxu0 %v362
    %378 = vmatprep.subr.bf16.mxu0 0
    %379 = vmatpush1.bf16.msra.mxu0 0
    %380 = vmatprep.subr.bf16.mxu0 0
    %381 = vmatpush1.bf16.msra.mxu0 0
    %382 = vmatprep.subr.bf16.mxu0 0
    %383 = vmatpush1.bf16.msra.mxu0 0
    %384 = vmatprep.subr.bf16.mxu0 0
    %385 = vmatpush1.bf16.msra.mxu0 0
    %386 = vmatprep.subr.bf16.mxu0 0
    %387 = vmatpush1.bf16.msra.mxu0 0
    %388 = vmatprep.subr.bf16.mxu0 0
    %389 = vmatpush1.bf16.msra.mxu0 0
    %390 = vmatprep.subr.bf16.mxu0 0
    %391 = vmatpush1.bf16.msra.mxu0 0
    %392 = vmatprep.subr.bf16.mxu0 0
    %393 = vmatpush1.bf16.msra.mxu0 0
    %394 = vmatprep.subr.bf16.mxu0 0
    %395 = vmatpush1.bf16.msra.mxu0 0
    %396 = vmatprep.subr.bf16.mxu0 0
    %397 = vmatpush1.bf16.msra.mxu0 0
    %398 = vmatprep.subr.bf16.mxu0 0
    %399 = vmatpush1.bf16.msra.mxu0 0
    %400 = vmatprep.subr.bf16.mxu0 0
    %401 = vmatpush1.bf16.msra.mxu0 0
    %402 = vmatprep.subr.bf16.mxu0 0
    %403 = vmatpush1.bf16.msra.mxu0 0
    %404 = vmatprep.subr.bf16.mxu0 0
    %405 = vmatpush1.bf16.msra.mxu0 0
    %406 = vmatprep.mubr.bf16.mxu0 0
    %407 = vmatmul.mubr.bf16.gmra.mrb[0].mxu0 %v366
    %v408 = vpop.f32.mrb[0].mxu0
    %v409 = vadd.f32 0.0, %v408
    %v410 = vpop.f32.mrb[0].mxu0
    %v411 = vpop.f32.mrb[0].mxu0
    %v412 = vadd.f32 0.0, %v411
    %v413 = vpop.f32.mrb[0].mxu0
    %414 = vmatprep.mubr.bf16.mxu0 0
    %415 = vmatmul.mubr.bf16.gmra.mrb[0].mxu0 %v369
    %v416 = vpop.f32.mrb[0].mxu0
    %v417 = vadd.f32 0.0, %v416
    %v418 = vpop.f32.mrb[0].mxu0
    %v419 = vpop.f32.mrb[0].mxu0
    %v420 = vadd.f32 0.0, %v419
    %v421 = vpop.f32.mrb[0].mxu0
    %422 = vmatprep.mubr.bf16.mxu0 0
    %423 = vmatmul.mubr.bf16.gmra.mrb[0].mxu0 %v372
    %v424 = vpop.f32.mrb[0].mxu0
    %v425 = vadd.f32 0.0, %v424
    %v426 = vpop.f32.mrb[0].mxu0
    %v427 = vpop.f32.mrb[0].mxu0
    %v428 = vadd.f32 0.0, %v427
    %v429 = vpop.f32.mrb[0].mxu0
    %430 = vdwg.mxu0
    %v431 = vpack.c.bf16 %v412, %v409
    %v432 = vpack.c.bf16 %v420, %v417
    %v433 = vpack.c.bf16 %v428, %v425
    %v434 = vld [vmem:[%s6] sm:$0xf]
    %v435 = vld [vmem:[%s6 + $0x4] sm:$0xf]
    %v436 = vld [vmem:[%s6 + $0x8] sm:$0xf]
    %v437 = vld [vmem:[%s6 + $0xc] sm:$0xf]
    %v442 = vunpack.c.l.b16 %v434
    %v443 = vunpack.c.l.b16 %v435
    %v444 = vunpack.c.l.b16 %v436
    %v445 = vunpack.c.l.b16 %v437
    %v446 = vpack.c.b16 %v443, %v442
    %v447 = vpack.c.b16 %v445, %v444
    %450 = vmatprep.subr.bf16.mxu0 0
    %451 = vmatpush1.bf16.msra.mxu0 %v446
    %452 = vmatprep.subr.bf16.mxu0 0
    %453 = vmatpush1.bf16.msra.mxu0 %v447
    %454 = vmatprep.subr.bf16.mxu0 0
    %455 = vmatpush1.bf16.msra.mxu0 0
    %456 = vmatprep.subr.bf16.mxu0 0
    %457 = vmatpush1.bf16.msra.mxu0 0
    %458 = vmatprep.subr.bf16.mxu0 0
    %459 = vmatpush1.bf16.msra.mxu0 0
    %460 = vmatprep.subr.bf16.mxu0 0
    %461 = vmatpush1.bf16.msra.mxu0 0
    %462 = vmatprep.subr.bf16.mxu0 0
    %463 = vmatpush1.bf16.msra.mxu0 0
    %464 = vmatprep.subr.bf16.mxu0 0
    %465 = vmatpush1.bf16.msra.mxu0 0
    %466 = vmatprep.subr.bf16.mxu0 0
    %467 = vmatpush1.bf16.msra.mxu0 0
    %468 = vmatprep.subr.bf16.mxu0 0
    %469 = vmatpush1.bf16.msra.mxu0 0
    %470 = vmatprep.subr.bf16.mxu0 0
    %471 = vmatpush1.bf16.msra.mxu0 0
    %472 = vmatprep.subr.bf16.mxu0 0
    %473 = vmatpush1.bf16.msra.mxu0 0
    %474 = vmatprep.subr.bf16.mxu0 0
    %475 = vmatpush1.bf16.msra.mxu0 0
    %476 = vmatprep.subr.bf16.mxu0 0
    %477 = vmatpush1.bf16.msra.mxu0 0
    %478 = vmatprep.subr.bf16.mxu0 0
    %479 = vmatpush1.bf16.msra.mxu0 0
    %480 = vmatprep.subr.bf16.mxu0 0
    %481 = vmatpush1.bf16.msra.mxu0 0
    %482 = vmatprep.mubr.bf16.mxu0 0
    %483 = vmatmul.mubr.bf16.gmra.mrb[0].mxu0 %v366
    %v484 = vpop.f32.mrb[0].mxu0
    %v485 = vadd.f32 0.0, %v484
    %v486 = vpop.f32.mrb[0].mxu0
    %v487 = vpop.f32.mrb[0].mxu0
    %v488 = vadd.f32 0.0, %v487
    %v489 = vpop.f32.mrb[0].mxu0
    %490 = vmatprep.mubr.bf16.mxu0 0
    %491 = vmatmul.mubr.bf16.gmra.mrb[0].mxu0 %v369
    %v492 = vpop.f32.mrb[0].mxu0
    %v493 = vadd.f32 0.0, %v492
    %v494 = vpop.f32.mrb[0].mxu0
    %v495 = vpop.f32.mrb[0].mxu0
    %v496 = vadd.f32 0.0, %v495
    %v497 = vpop.f32.mrb[0].mxu0
    %498 = vmatprep.mubr.bf16.mxu0 0
    %499 = vmatmul.mubr.bf16.gmra.mrb[0].mxu0 %v372
    %v500 = vpop.f32.mrb[0].mxu0
    %v501 = vadd.f32 0.0, %v500
    %v502 = vpop.f32.mrb[0].mxu0
    %v503 = vpop.f32.mrb[0].mxu0
    %v504 = vadd.f32 0.0, %v503
    %v505 = vpop.f32.mrb[0].mxu0
    %506 = vdwg.mxu0
    %v507 = vpack.c.bf16 %v488, %v485
    %v508 = vpack.c.bf16 %v496, %v493
    %v509 = vpack.c.bf16 %v504, %v501
    %v510 = vld [vmem:[%s7] sm:$0xf]
    %v511 = vld [vmem:[%s7 + $0x4] sm:$0xf]
    %v512 = vld [vmem:[%s7 + $0x8] sm:$0xf]
    %v513 = vld [vmem:[%s7 + $0xc] sm:$0xf]
    %v518 = vunpack.c.l.b16 %v510
    %v519 = vunpack.c.l.b16 %v511
    %v520 = vunpack.c.l.b16 %v512
    %v521 = vunpack.c.l.b16 %v513
    %v522 = vpack.c.b16 %v519, %v518
    %v523 = vpack.c.b16 %v521, %v520
    %526 = vmatprep.subr.bf16.mxu0 0
    %527 = vmatpush1.bf16.msra.mxu0 %v522
    %528 = vmatprep.subr.bf16.mxu0 0
    %529 = vmatpush1.bf16.msra.mxu0 %v523
    %530 = vmatprep.subr.bf16.mxu0 0
    %531 = vmatpush1.bf16.msra.mxu0 0
    %532 = vmatprep.subr.bf16.mxu0 0
    %533 = vmatpush1.bf16.msra.mxu0 0
    %534 = vmatprep.subr.bf16.mxu0 0
    %535 = vmatpush1.bf16.msra.mxu0 0
    %536 = vmatprep.subr.bf16.mxu0 0
    %537 = vmatpush1.bf16.msra.mxu0 0
    %538 = vmatprep.subr.bf16.mxu0 0
    %539 = vmatpush1.bf16.msra.mxu0 0
    %540 = vmatprep.subr.bf16.mxu0 0
    %541 = vmatpush1.bf16.msra.mxu0 0
    %542 = vmatprep.subr.bf16.mxu0 0
    %543 = vmatpush1.bf16.msra.mxu0 0
    %544 = vmatprep.subr.bf16.mxu0 0
    %545 = vmatpush1.bf16.msra.mxu0 0
    %546 = vmatprep.subr.bf16.mxu0 0
    %547 = vmatpush1.bf16.msra.mxu0 0
    %548 = vmatprep.subr.bf16.mxu0 0
    %549 = vmatpush1.bf16.msra.mxu0 0
    %550 = vmatprep.subr.bf16.mxu0 0
    %551 = vmatpush1.bf16.msra.mxu0 0
    %552 = vmatprep.subr.bf16.mxu0 0
    %553 = vmatpush1.bf16.msra.mxu0 0
    %554 = vmatprep.subr.bf16.mxu0 0
    %555 = vmatpush1.bf16.msra.mxu0 0
    %556 = vmatprep.subr.bf16.mxu0 0
    %557 = vmatpush1.bf16.msra.mxu0 0
    %558 = vmatprep.mubr.bf16.mxu0 0
    %559 = vmatmul.mubr.bf16.gmra.mrb[0].mxu0 %v366
    %v560 = vpop.f32.mrb[0].mxu0
    %v561 = vadd.f32 0.0, %v560
    %v562 = vpop.f32.mrb[0].mxu0
    %v563 = vpop.f32.mrb[0].mxu0
    %v564 = vadd.f32 0.0, %v563
    %v565 = vpop.f32.mrb[0].mxu0
    %566 = vmatprep.mubr.bf16.mxu0 0
    %567 = vmatmul.mubr.bf16.gmra.mrb[0].mxu0 %v369
    %v568 = vpop.f32.mrb[0].mxu0
    %v569 = vadd.f32 0.0, %v568
    %v570 = vpop.f32.mrb[0].mxu0
    %v571 = vpop.f32.mrb[0].mxu0
    %v572 = vadd.f32 0.0, %v571
    %v573 = vpop.f32.mrb[0].mxu0
    %574 = vmatprep.mubr.bf16.mxu0 0
    %575 = vmatmul.mubr.bf16.gmra.mrb[0].mxu0 %v372
    %v576 = vpop.f32.mrb[0].mxu0
    %v577 = vadd.f32 0.0, %v576
    %v578 = vpop.f32.mrb[0].mxu0
    %v579 = vpop.f32.mrb[0].mxu0
    %v580 = vadd.f32 0.0, %v579
    %v581 = vpop.f32.mrb[0].mxu0
    %582 = vdwg.mxu0
    %v583 = vpack.c.bf16 %v564, %v561
    %v584 = vpack.c.bf16 %v572, %v569
    %v585 = vpack.c.bf16 %v580, %v577
    %v610 = vunpack.c.l.b16 %v235
    %v611 = vunpack.c.l.b16 %v236
    %v612 = vunpack.c.l.b16 %v237
    %v613 = vunpack.c.l.b16 %v238
    %v614 = vunpack.c.l.b16 %v239
    %v615 = vunpack.c.l.b16 %v240
    %v616 = vunpack.c.l.b16 %v241
    %v617 = vunpack.c.l.b16 %v242
    %v618 = vunpack.c.l.b16 %v243
    %v619 = vunpack.c.l.b16 %v244
    %v620 = vunpack.c.l.b16 %v245
    %v621 = vunpack.c.l.b16 %v246
    %v622 = vunpack.c.l.b16 %v247
    %v623 = vunpack.c.l.b16 %v248
    %v624 = vunpack.c.l.b16 %v249
    %v625 = vunpack.c.l.b16 %v250
    %v626 = vunpack.c.l.b16 %v251
    %v627 = vunpack.c.l.b16 %v252
    %v628 = vunpack.c.l.b16 %v253
    %v629 = vunpack.c.l.b16 %v254
    %v630 = vunpack.c.l.b16 %v255
    %v631 = vunpack.c.l.b16 %v256
    %v632 = vunpack.c.l.b16 %v257
    %v633 = vunpack.c.l.b16 %v258
    %v634 = vpack.c.b16 %v611, %v610
    %v635 = vpack.c.b16 %v613, %v612
    %v636 = vpack.c.b16 %v615, %v614
    %v637 = vpack.c.b16 %v617, %v616
    %v638 = vpack.c.b16 %v619, %v618
    %v639 = vpack.c.b16 %v621, %v620
    %v640 = vpack.c.b16 %v623, %v622
    %v641 = vpack.c.b16 %v625, %v624
    %v642 = vpack.c.b16 %v627, %v626
    %v643 = vpack.c.b16 %v629, %v628
    %v644 = vpack.c.b16 %v631, %v630
    %v645 = vpack.c.b16 %v633, %v632
    %v658 = vmul.bf16 %v431, %v634
    %v659 = vmul.bf16 %v432, %v635
    %v660 = vmul.bf16 %v433, %v636
    %v661 = vmul.bf16 %v431, %v637
    %v662 = vmul.bf16 %v432, %v638
    %v663 = vmul.bf16 %v433, %v639
    %v664 = vmul.bf16 %v431, %v640
    %v665 = vmul.bf16 %v432, %v641
    %v666 = vmul.bf16 %v433, %v642
    %v667 = vmul.bf16 %v431, %v643
    %v668 = vmul.bf16 %v432, %v644
    %v669 = vmul.bf16 %v433, %v645
    %v671 = vsel %vm290, %v658, 0
    %v674 = vsel %vm290, %v659, 0
    %v677 = vsel %vm290, %v660, 0
    %v680 = vsel %vm290, %v661, 0
    %v683 = vsel %vm290, %v662, 0
    %v686 = vsel %vm290, %v663, 0
    %v689 = vsel %vm290, %v664, 0
    %v692 = vsel %vm290, %v665, 0
    %v695 = vsel %vm290, %v666, 0
    %v698 = vsel %vm290, %v667, 0
    %v701 = vsel %vm290, %v668, 0
    %v704 = vsel %vm290, %v669, 0
    %v707 = vsel %vm290, %v507, 0
    %v710 = vsel %vm290, %v508, 0
    %v713 = vsel %vm290, %v509, 0
    %715 = vmatprep.subr.bf16.mxu0 0
    %716 = vmatpush1.bf16.xpose.msra.mxu0 %v707
    %717 = vmatprep.subr.bf16.mxu0 0
    %718 = vmatpush1.bf16.xpose.msra.mxu0 %v710
    %719 = vmatprep.subr.bf16.mxu0 0
    %720 = vmatpush1.bf16.xpose.msra.mxu0 %v713
    %721 = vmatprep.subr.bf16.mxu0 0
    %722 = vmatpush1.bf16.xpose.msra.mxu0 0
    %723 = vmatprep.subr.bf16.mxu0 0
    %724 = vmatpush1.bf16.xpose.msra.mxu0 0
    %725 = vmatprep.subr.bf16.mxu0 0
    %726 = vmatpush1.bf16.xpose.msra.mxu0 0
    %727 = vmatprep.subr.bf16.mxu0 0
    %728 = vmatpush1.bf16.xpose.msra.mxu0 0
    %729 = vmatprep.subr.bf16.mxu0 0
    %730 = vmatpush1.bf16.xpose.msra.mxu0 0
    %731 = vmatprep.subr.bf16.mxu0 0
    %732 = vmatpush1.bf16.xpose.msra.mxu0 0
    %733 = vmatprep.subr.bf16.mxu0 0
    %734 = vmatpush1.bf16.xpose.msra.mxu0 0
    %735 = vmatprep.subr.bf16.mxu0 0
    %736 = vmatpush1.bf16.xpose.msra.mxu0 0
    %737 = vmatprep.subr.bf16.mxu0 0
    %738 = vmatpush1.bf16.xpose.msra.mxu0 0
    %739 = vmatprep.subr.bf16.mxu0 0
    %740 = vmatpush1.bf16.xpose.msra.mxu0 0
    %741 = vmatprep.subr.bf16.mxu0 0
    %742 = vmatpush1.bf16.xpose.msra.mxu0 0
    %743 = vmatprep.subr.bf16.mxu0 0
    %744 = vmatpush1.bf16.xpose.msra.mxu0 0
    %745 = vmatprep.subr.bf16.mxu0 0
    %746 = vmatpush1.bf16.xpose.msra.mxu0 0
    %747 = vmatprep.mubr.bf16.mxu0 0
    %748 = vmatmul.mubr.bf16.gmra.mrb[0].mxu0 %v671
    %v749 = vpop.f32.mrb[0].mxu0
    %v750 = vadd.f32 %v259, %v749
    %v751 = vpop.f32.mrb[0].mxu0
    %v752 = vpop.f32.mrb[0].mxu0
    %v753 = vadd.f32 %v260, %v752
    %v754 = vpop.f32.mrb[0].mxu0
    %755 = vmatprep.mubr.bf16.mxu0 0
    %756 = vmatmul.mubr.bf16.gmra.mrb[0].mxu0 %v674
    %v757 = vpop.f32.mrb[0].mxu0
    %v758 = vadd.f32 %v261, %v757
    %v759 = vpop.f32.mrb[0].mxu0
    %v760 = vpop.f32.mrb[0].mxu0
    %v761 = vadd.f32 %v262, %v760
    %v762 = vpop.f32.mrb[0].mxu0
    %763 = vmatprep.mubr.bf16.mxu0 0
    %764 = vmatmul.mubr.bf16.gmra.mrb[0].mxu0 %v677
    %v765 = vpop.f32.mrb[0].mxu0
    %v766 = vadd.f32 %v263, %v765
    %v767 = vpop.f32.mrb[0].mxu0
    %v768 = vpop.f32.mrb[0].mxu0
    %v769 = vadd.f32 %v264, %v768
    %v770 = vpop.f32.mrb[0].mxu0
    %771 = vmatprep.mubr.bf16.mxu0 0
    %772 = vmatmul.mubr.bf16.gmra.mrb[0].mxu0 %v680
    %v773 = vpop.f32.mrb[0].mxu0
    %v774 = vadd.f32 %v265, %v773
    %v775 = vpop.f32.mrb[0].mxu0
    %v776 = vpop.f32.mrb[0].mxu0
    %v777 = vadd.f32 %v266, %v776
    %v778 = vpop.f32.mrb[0].mxu0
    %779 = vmatprep.mubr.bf16.mxu0 0
    %780 = vmatmul.mubr.bf16.gmra.mrb[0].mxu0 %v683
    %v781 = vpop.f32.mrb[0].mxu0
    %v782 = vadd.f32 %v267, %v781
    %v783 = vpop.f32.mrb[0].mxu0
    %v784 = vpop.f32.mrb[0].mxu0
    %v785 = vadd.f32 %v268, %v784
    %v786 = vpop.f32.mrb[0].mxu0
    %787 = vmatprep.mubr.bf16.mxu0 0
    %788 = vmatmul.mubr.bf16.gmra.mrb[0].mxu0 %v686
    %v789 = vpop.f32.mrb[0].mxu0
    %v790 = vadd.f32 %v269, %v789
    %v791 = vpop.f32.mrb[0].mxu0
    %v792 = vpop.f32.mrb[0].mxu0
    %v793 = vadd.f32 %v270, %v792
    %v794 = vpop.f32.mrb[0].mxu0
    %795 = vmatprep.mubr.bf16.mxu0 0
    %796 = vmatmul.mubr.bf16.gmra.mrb[0].mxu0 %v689
    %v797 = vpop.f32.mrb[0].mxu0
    %v798 = vadd.f32 %v271, %v797
    %v799 = vpop.f32.mrb[0].mxu0
    %v800 = vpop.f32.mrb[0].mxu0
    %v801 = vadd.f32 %v272, %v800
    %v802 = vpop.f32.mrb[0].mxu0
    %803 = vmatprep.mubr.bf16.mxu0 0
    %804 = vmatmul.mubr.bf16.gmra.mrb[0].mxu0 %v692
    %v805 = vpop.f32.mrb[0].mxu0
    %v806 = vadd.f32 %v273, %v805
    %v807 = vpop.f32.mrb[0].mxu0
    %v808 = vpop.f32.mrb[0].mxu0
    %v809 = vadd.f32 %v274, %v808
    %v810 = vpop.f32.mrb[0].mxu0
    %811 = vmatprep.mubr.bf16.mxu0 0
    %812 = vmatmul.mubr.bf16.gmra.mrb[0].mxu0 %v695
    %v813 = vpop.f32.mrb[0].mxu0
    %v814 = vadd.f32 %v275, %v813
    %v815 = vpop.f32.mrb[0].mxu0
    %v816 = vpop.f32.mrb[0].mxu0
    %v817 = vadd.f32 %v276, %v816
    %v818 = vpop.f32.mrb[0].mxu0
    %819 = vmatprep.mubr.bf16.mxu0 0
    %820 = vmatmul.mubr.bf16.gmra.mrb[0].mxu0 %v698
    %v821 = vpop.f32.mrb[0].mxu0
    %v822 = vadd.f32 %v277, %v821
    %v823 = vpop.f32.mrb[0].mxu0
    %v824 = vpop.f32.mrb[0].mxu0
    %v825 = vadd.f32 %v278, %v824
    %v826 = vpop.f32.mrb[0].mxu0
    %827 = vmatprep.mubr.bf16.mxu0 0
    %828 = vmatmul.mubr.bf16.gmra.mrb[0].mxu0 %v701
    %v829 = vpop.f32.mrb[0].mxu0
    %v830 = vadd.f32 %v279, %v829
    %v831 = vpop.f32.mrb[0].mxu0
    %v832 = vpop.f32.mrb[0].mxu0
    %v833 = vadd.f32 %v280, %v832
    %v834 = vpop.f32.mrb[0].mxu0
    %835 = vmatprep.mubr.bf16.mxu0 0
    %836 = vmatmul.mubr.bf16.gmra.mrb[0].mxu0 %v704
    %v837 = vpop.f32.mrb[0].mxu0
    %v838 = vadd.f32 %v281, %v837
    %v839 = vpop.f32.mrb[0].mxu0
    %v840 = vpop.f32.mrb[0].mxu0
    %v841 = vadd.f32 %v282, %v840
    %v842 = vpop.f32.mrb[0].mxu0
    %843 = vdwg.mxu0
    %vm844 = vcmask 392192
    %v845 = vsel %vm844, %v750, -inf
    %846 = vmax.xlane.f32.xlu0 %v845
    %v847 = vpop.xlane.xlu0 %846
    %v848 = vsel %vm844, %v753, -inf
    %849 = vmax.xlane.f32.xlu0 %v848
    %v850 = vpop.xlane.xlu0 %849
    %v851 = vsel %vm844, %v758, -inf
    %852 = vmax.xlane.f32.xlu0 %v851
    %v853 = vpop.xlane.xlu0 %852
    %v854 = vsel %vm844, %v761, -inf
    %855 = vmax.xlane.f32.xlu0 %v854
    %v856 = vpop.xlane.xlu0 %855
    %v857 = vsel %vm844, %v766, -inf
    %858 = vmax.xlane.f32.xlu0 %v857
    %v859 = vpop.xlane.xlu0 %858
    %v860 = vsel %vm844, %v769, -inf
    %861 = vmax.xlane.f32.xlu0 %v860
    %v862 = vpop.xlane.xlu0 %861
    %v863 = vsel %vm844, %v774, -inf
    %864 = vmax.xlane.f32.xlu0 %v863
    %v865 = vpop.xlane.xlu0 %864
    %v866 = vsel %vm844, %v777, -inf
    %867 = vmax.xlane.f32.xlu0 %v866
    %v868 = vpop.xlane.xlu0 %867
    %v869 = vsel %vm844, %v782, -inf
    %870 = vmax.xlane.f32.xlu0 %v869
    %v871 = vpop.xlane.xlu0 %870
    %v872 = vsel %vm844, %v785, -inf
    %873 = vmax.xlane.f32.xlu0 %v872
    %v874 = vpop.xlane.xlu0 %873
    %v875 = vsel %vm844, %v790, -inf
    %876 = vmax.xlane.f32.xlu0 %v875
    %v877 = vpop.xlane.xlu0 %876
    %v878 = vsel %vm844, %v793, -inf
    %879 = vmax.xlane.f32.xlu0 %v878
    %v880 = vpop.xlane.xlu0 %879
    %v881 = vsel %vm844, %v798, -inf
    %882 = vmax.xlane.f32.xlu0 %v881
    %v883 = vpop.xlane.xlu0 %882
    %v884 = vsel %vm844, %v801, -inf
    %885 = vmax.xlane.f32.xlu0 %v884
    %v886 = vpop.xlane.xlu0 %885
    %v887 = vsel %vm844, %v806, -inf
    %888 = vmax.xlane.f32.xlu0 %v887
    %v889 = vpop.xlane.xlu0 %888
    %v890 = vsel %vm844, %v809, -inf
    %891 = vmax.xlane.f32.xlu0 %v890
    %v892 = vpop.xlane.xlu0 %891
    %v893 = vsel %vm844, %v814, -inf
    %894 = vmax.xlane.f32.xlu0 %v893
    %v895 = vpop.xlane.xlu0 %894
    %v896 = vsel %vm844, %v817, -inf
    %897 = vmax.xlane.f32.xlu0 %v896
    %v898 = vpop.xlane.xlu0 %897
    %v899 = vsel %vm844, %v822, -inf
    %900 = vmax.xlane.f32.xlu0 %v899
    %v901 = vpop.xlane.xlu0 %900
    %v902 = vsel %vm844, %v825, -inf
    %903 = vmax.xlane.f32.xlu0 %v902
    %v904 = vpop.xlane.xlu0 %903
    %v905 = vsel %vm844, %v830, -inf
    %906 = vmax.xlane.f32.xlu0 %v905
    %v907 = vpop.xlane.xlu0 %906
    %v908 = vsel %vm844, %v833, -inf
    %909 = vmax.xlane.f32.xlu0 %v908
    %v910 = vpop.xlane.xlu0 %909
    %v911 = vsel %vm844, %v838, -inf
    %912 = vmax.xlane.f32.xlu0 %v911
    %v913 = vpop.xlane.xlu0 %912
    %v914 = vsel %vm844, %v841, -inf
    %915 = vmax.xlane.f32.xlu0 %v914
    %v916 = vpop.xlane.xlu0 %915
    %v917 = vsub.f32 %v750, %v847
    %v918 = vsub.f32 %v753, %v850
    %v919 = vsub.f32 %v758, %v853
    %v920 = vsub.f32 %v761, %v856
    %v921 = vsub.f32 %v766, %v859
    %v922 = vsub.f32 %v769, %v862
    %v923 = vsub.f32 %v774, %v865
    %v924 = vsub.f32 %v777, %v868
    %v925 = vsub.f32 %v782, %v871
    %v926 = vsub.f32 %v785, %v874
    %v927 = vsub.f32 %v790, %v877
    %v928 = vsub.f32 %v793, %v880
    %v929 = vsub.f32 %v798, %v883
    %v930 = vsub.f32 %v801, %v886
    %v931 = vsub.f32 %v806, %v889
    %v932 = vsub.f32 %v809, %v892
    %v933 = vsub.f32 %v814, %v895
    %v934 = vsub.f32 %v817, %v898
    %v935 = vsub.f32 %v822, %v901
    %v936 = vsub.f32 %v825, %v904
    %v937 = vsub.f32 %v830, %v907
    %v938 = vsub.f32 %v833, %v910
    %v939 = vsub.f32 %v838, %v913
    %v940 = vsub.f32 %v841, %v916
    %v941 = vmul.f32 %v917, 1.442695
    %v942 = vpow.pop %v941
    %v943 = vmul.f32 %v918, 1.442695
    %v944 = vpow.pop %v943
    %v945 = vmul.f32 %v919, 1.442695
    %v946 = vpow.pop %v945
    %v947 = vmul.f32 %v920, 1.442695
    %v948 = vpow.pop %v947
    %v949 = vmul.f32 %v921, 1.442695
    %v950 = vpow.pop %v949
    %v951 = vmul.f32 %v922, 1.442695
    %v952 = vpow.pop %v951
    %v953 = vmul.f32 %v923, 1.442695
    %v954 = vpow.pop %v953
    %v955 = vmul.f32 %v924, 1.442695
    %v956 = vpow.pop %v955
    %v957 = vmul.f32 %v925, 1.442695
    %v958 = vpow.pop %v957
    %v959 = vmul.f32 %v926, 1.442695
    %v960 = vpow.pop %v959
    %v961 = vmul.f32 %v927, 1.442695
    %v962 = vpow.pop %v961
    %v963 = vmul.f32 %v928, 1.442695
    %v964 = vpow.pop %v963
    %v965 = vmul.f32 %v929, 1.442695
    %v966 = vpow.pop %v965
    %v967 = vmul.f32 %v930, 1.442695
    %v968 = vpow.pop %v967
    %v969 = vmul.f32 %v931, 1.442695
    %v970 = vpow.pop %v969
    %v971 = vmul.f32 %v932, 1.442695
    %v972 = vpow.pop %v971
    %v973 = vmul.f32 %v933, 1.442695
    %v974 = vpow.pop %v973
    %v975 = vmul.f32 %v934, 1.442695
    %v976 = vpow.pop %v975
    %v977 = vmul.f32 %v935, 1.442695
    %v978 = vpow.pop %v977
    %v979 = vmul.f32 %v936, 1.442695
    %v980 = vpow.pop %v979
    %v981 = vmul.f32 %v937, 1.442695
    %v982 = vpow.pop %v981
    %v983 = vmul.f32 %v938, 1.442695
    %v984 = vpow.pop %v983
    %v985 = vmul.f32 %v939, 1.442695
    %v986 = vpow.pop %v985
    %v987 = vmul.f32 %v940, 1.442695
    %v988 = vpow.pop %v987
    %v989 = vsel %vm844, %v942, 0.0
    %990 = vadd.xlane.f32.xlu0 %v989
    %v991 = vpop.xlane.xlu0 %990
    %v992 = vsel %vm844, %v944, 0.0
    %993 = vadd.xlane.f32.xlu0 %v992
    %v994 = vpop.xlane.xlu0 %993
    %v995 = vsel %vm844, %v946, 0.0
    %996 = vadd.xlane.f32.xlu0 %v995
    %v997 = vpop.xlane.xlu0 %996
    %v998 = vsel %vm844, %v948, 0.0
    %999 = vadd.xlane.f32.xlu0 %v998
    %v1000 = vpop.xlane.xlu0 %999
    %v1001 = vsel %vm844, %v950, 0.0
    %1002 = vadd.xlane.f32.xlu0 %v1001
    %v1003 = vpop.xlane.xlu0 %1002
    %v1004 = vsel %vm844, %v952, 0.0
    %1005 = vadd.xlane.f32.xlu0 %v1004
    %v1006 = vpop.xlane.xlu0 %1005
    %v1007 = vsel %vm844, %v954, 0.0
    %1008 = vadd.xlane.f32.xlu0 %v1007
    %v1009 = vpop.xlane.xlu0 %1008
    %v1010 = vsel %vm844, %v956, 0.0
    %1011 = vadd.xlane.f32.xlu0 %v1010
    %v1012 = vpop.xlane.xlu0 %1011
    %v1013 = vsel %vm844, %v958, 0.0
    %1014 = vadd.xlane.f32.xlu0 %v1013
    %v1015 = vpop.xlane.xlu0 %1014
    %v1016 = vsel %vm844, %v960, 0.0
    %1017 = vadd.xlane.f32.xlu0 %v1016
    %v1018 = vpop.xlane.xlu0 %1017
    %v1019 = vsel %vm844, %v962, 0.0
    %1020 = vadd.xlane.f32.xlu0 %v1019
    %v1021 = vpop.xlane.xlu0 %1020
    %v1022 = vsel %vm844, %v964, 0.0
    %1023 = vadd.xlane.f32.xlu0 %v1022
    %v1024 = vpop.xlane.xlu0 %1023
    %v1025 = vsel %vm844, %v966, 0.0
    %1026 = vadd.xlane.f32.xlu0 %v1025
    %v1027 = vpop.xlane.xlu0 %1026
    %v1028 = vsel %vm844, %v968, 0.0
    %1029 = vadd.xlane.f32.xlu0 %v1028
    %v1030 = vpop.xlane.xlu0 %1029
    %v1031 = vsel %vm844, %v970, 0.0
    %1032 = vadd.xlane.f32.xlu0 %v1031
    %v1033 = vpop.xlane.xlu0 %1032
    %v1034 = vsel %vm844, %v972, 0.0
    %1035 = vadd.xlane.f32.xlu0 %v1034
    %v1036 = vpop.xlane.xlu0 %1035
    %v1037 = vsel %vm844, %v974, 0.0
    %1038 = vadd.xlane.f32.xlu0 %v1037
    %v1039 = vpop.xlane.xlu0 %1038
    %v1040 = vsel %vm844, %v976, 0.0
    %1041 = vadd.xlane.f32.xlu0 %v1040
    %v1042 = vpop.xlane.xlu0 %1041
    %v1043 = vsel %vm844, %v978, 0.0
    %1044 = vadd.xlane.f32.xlu0 %v1043
    %v1045 = vpop.xlane.xlu0 %1044
    %v1046 = vsel %vm844, %v980, 0.0
    %1047 = vadd.xlane.f32.xlu0 %v1046
    %v1048 = vpop.xlane.xlu0 %1047
    %v1049 = vsel %vm844, %v982, 0.0
    %1050 = vadd.xlane.f32.xlu0 %v1049
    %v1051 = vpop.xlane.xlu0 %1050
    %v1052 = vsel %vm844, %v984, 0.0
    %1053 = vadd.xlane.f32.xlu0 %v1052
    %v1054 = vpop.xlane.xlu0 %1053
    %v1055 = vsel %vm844, %v986, 0.0
    %1056 = vadd.xlane.f32.xlu0 %v1055
    %v1057 = vpop.xlane.xlu0 %1056
    %v1058 = vsel %vm844, %v988, 0.0
    %1059 = vadd.xlane.f32.xlu0 %v1058
    %v1060 = vpop.xlane.xlu0 %1059
    %v1061 = vrcp.pop %v991
    %v1062 = vmul.f32 %v942, %v1061
    %v1063 = vrcp.pop %v994
    %v1064 = vmul.f32 %v944, %v1063
    %v1065 = vrcp.pop %v997
    %v1066 = vmul.f32 %v946, %v1065
    %v1067 = vrcp.pop %v1000
    %v1068 = vmul.f32 %v948, %v1067
    %v1069 = vrcp.pop %v1003
    %v1070 = vmul.f32 %v950, %v1069
    %v1071 = vrcp.pop %v1006
    %v1072 = vmul.f32 %v952, %v1071
    %v1073 = vrcp.pop %v1009
    %v1074 = vmul.f32 %v954, %v1073
    %v1075 = vrcp.pop %v1012
    %v1076 = vmul.f32 %v956, %v1075
    %v1077 = vrcp.pop %v1015
    %v1078 = vmul.f32 %v958, %v1077
    %v1079 = vrcp.pop %v1018
    %v1080 = vmul.f32 %v960, %v1079
    %v1081 = vrcp.pop %v1021
    %v1082 = vmul.f32 %v962, %v1081
    %v1083 = vrcp.pop %v1024
    %v1084 = vmul.f32 %v964, %v1083
    %v1085 = vrcp.pop %v1027
    %v1086 = vmul.f32 %v966, %v1085
    %v1087 = vrcp.pop %v1030
    %v1088 = vmul.f32 %v968, %v1087
    %v1089 = vrcp.pop %v1033
    %v1090 = vmul.f32 %v970, %v1089
    %v1091 = vrcp.pop %v1036
    %v1092 = vmul.f32 %v972, %v1091
    %v1093 = vrcp.pop %v1039
    %v1094 = vmul.f32 %v974, %v1093
    %v1095 = vrcp.pop %v1042
    %v1096 = vmul.f32 %v976, %v1095
    %v1097 = vrcp.pop %v1045
    %v1098 = vmul.f32 %v978, %v1097
    %v1099 = vrcp.pop %v1048
    %v1100 = vmul.f32 %v980, %v1099
    %v1101 = vrcp.pop %v1051
    %v1102 = vmul.f32 %v982, %v1101
    %v1103 = vrcp.pop %v1054
    %v1104 = vmul.f32 %v984, %v1103
    %v1105 = vrcp.pop %v1057
    %v1106 = vmul.f32 %v986, %v1105
    %v1107 = vrcp.pop %v1060
    %v1108 = vmul.f32 %v988, %v1107
    %v1109 = vpack.c.bf16 %v1064, %v1062
    %v1110 = vpack.c.bf16 %v1068, %v1066
    %v1111 = vpack.c.bf16 %v1072, %v1070
    %v1112 = vpack.c.bf16 %v1076, %v1074
    %v1113 = vpack.c.bf16 %v1080, %v1078
    %v1114 = vpack.c.bf16 %v1084, %v1082
    %v1115 = vpack.c.bf16 %v1088, %v1086
    %v1116 = vpack.c.bf16 %v1092, %v1090
    %v1117 = vpack.c.bf16 %v1096, %v1094
    %v1118 = vpack.c.bf16 %v1100, %v1098
    %v1119 = vpack.c.bf16 %v1104, %v1102
    %v1120 = vpack.c.bf16 %v1108, %v1106
    %v1122 = vsel %vm844, %v1109, 0
    %v1125 = vsel %vm844, %v1110, 0
    %v1128 = vsel %vm844, %v1111, 0
    %v1131 = vsel %vm844, %v1112, 0
    %v1134 = vsel %vm844, %v1113, 0
    %v1137 = vsel %vm844, %v1114, 0
    %v1140 = vsel %vm844, %v1115, 0
    %v1143 = vsel %vm844, %v1116, 0
    %v1146 = vsel %vm844, %v1117, 0
    %v1149 = vsel %vm844, %v1118, 0
    %v1152 = vsel %vm844, %v1119, 0
    %v1155 = vsel %vm844, %v1120, 0
    %1157 = vmatprep.subr.bf16.mxu0 0
    %1158 = vmatpush1.bf16.msra.mxu0 %v583
    %1159 = vmatprep.subr.bf16.mxu0 0
    %1160 = vmatpush1.bf16.msra.mxu0 %v584
    %1161 = vmatprep.subr.bf16.mxu0 0
    %1162 = vmatpush1.bf16.msra.mxu0 %v585
    %1163 = vmatprep.subr.bf16.mxu0 0
    %1164 = vmatpush1.bf16.msra.mxu0 0
    %1165 = vmatprep.subr.bf16.mxu0 0
    %1166 = vmatpush1.bf16.msra.mxu0 0
    %1167 = vmatprep.subr.bf16.mxu0 0
    %1168 = vmatpush1.bf16.msra.mxu0 0
    %1169 = vmatprep.subr.bf16.mxu0 0
    %1170 = vmatpush1.bf16.msra.mxu0 0
    %1171 = vmatprep.subr.bf16.mxu0 0
    %1172 = vmatpush1.bf16.msra.mxu0 0
    %1173 = vmatprep.subr.bf16.mxu0 0
    %1174 = vmatpush1.bf16.msra.mxu0 0
    %1175 = vmatprep.subr.bf16.mxu0 0
    %1176 = vmatpush1.bf16.msra.mxu0 0
    %1177 = vmatprep.subr.bf16.mxu0 0
    %1178 = vmatpush1.bf16.msra.mxu0 0
    %1179 = vmatprep.subr.bf16.mxu0 0
    %1180 = vmatpush1.bf16.msra.mxu0 0
    %1181 = vmatprep.subr.bf16.mxu0 0
    %1182 = vmatpush1.bf16.msra.mxu0 0
    %1183 = vmatprep.subr.bf16.mxu0 0
    %1184 = vmatpush1.bf16.msra.mxu0 0
    %1185 = vmatprep.subr.bf16.mxu0 0
    %1186 = vmatpush1.bf16.msra.mxu0 0
    %1187 = vmatprep.subr.bf16.mxu0 0
    %1188 = vmatpush1.bf16.msra.mxu0 0
    %1189 = vmatprep.mubr.bf16.mxu0 0
    %1190 = vmatmul.mubr.bf16.gmra.mrb[0].mxu0 %v1122
    %v1191 = vpop.f32.mrb[0].mxu0
    %v1192 = vadd.f32 0.0, %v1191
    %v1193 = vpop.f32.mrb[0].mxu0
    %v1194 = vpop.f32.mrb[0].mxu0
    %v1195 = vadd.f32 0.0, %v1194
    %v1196 = vpop.f32.mrb[0].mxu0
    %1197 = vmatprep.mubr.bf16.mxu0 0
    %1198 = vmatmul.mubr.bf16.gmra.mrb[0].mxu0 %v1125
    %v1199 = vpop.f32.mrb[0].mxu0
    %v1200 = vadd.f32 0.0, %v1199
    %v1201 = vpop.f32.mrb[0].mxu0
    %v1202 = vpop.f32.mrb[0].mxu0
    %v1203 = vadd.f32 0.0, %v1202
    %v1204 = vpop.f32.mrb[0].mxu0
    %1205 = vmatprep.mubr.bf16.mxu0 0
    %1206 = vmatmul.mubr.bf16.gmra.mrb[0].mxu0 %v1128
    %v1207 = vpop.f32.mrb[0].mxu0
    %v1208 = vadd.f32 0.0, %v1207
    %v1209 = vpop.f32.mrb[0].mxu0
    %v1210 = vpop.f32.mrb[0].mxu0
    %v1211 = vadd.f32 0.0, %v1210
    %v1212 = vpop.f32.mrb[0].mxu0
    %1213 = vmatprep.mubr.bf16.mxu0 0
    %1214 = vmatmul.mubr.bf16.gmra.mrb[0].mxu0 %v1131
    %v1215 = vpop.f32.mrb[0].mxu0
    %v1216 = vadd.f32 0.0, %v1215
    %v1217 = vpop.f32.mrb[0].mxu0
    %v1218 = vpop.f32.mrb[0].mxu0
    %v1219 = vadd.f32 0.0, %v1218
    %v1220 = vpop.f32.mrb[0].mxu0
    %1221 = vmatprep.mubr.bf16.mxu0 0
    %1222 = vmatmul.mubr.bf16.gmra.mrb[0].mxu0 %v1134
    %v1223 = vpop.f32.mrb[0].mxu0
    %v1224 = vadd.f32 0.0, %v1223
    %v1225 = vpop.f32.mrb[0].mxu0
    %v1226 = vpop.f32.mrb[0].mxu0
    %v1227 = vadd.f32 0.0, %v1226
    %v1228 = vpop.f32.mrb[0].mxu0
    %1229 = vmatprep.mubr.bf16.mxu0 0
    %1230 = vmatmul.mubr.bf16.gmra.mrb[0].mxu0 %v1137
    %v1231 = vpop.f32.mrb[0].mxu0
    %v1232 = vadd.f32 0.0, %v1231
    %v1233 = vpop.f32.mrb[0].mxu0
    %v1234 = vpop.f32.mrb[0].mxu0
    %v1235 = vadd.f32 0.0, %v1234
    %v1236 = vpop.f32.mrb[0].mxu0
    %1237 = vmatprep.mubr.bf16.mxu0 0
    %1238 = vmatmul.mubr.bf16.gmra.mrb[0].mxu0 %v1140
    %v1239 = vpop.f32.mrb[0].mxu0
    %v1240 = vadd.f32 0.0, %v1239
    %v1241 = vpop.f32.mrb[0].mxu0
    %v1242 = vpop.f32.mrb[0].mxu0
    %v1243 = vadd.f32 0.0, %v1242
    %v1244 = vpop.f32.mrb[0].mxu0
    %1245 = vmatprep.mubr.bf16.mxu0 0
    %1246 = vmatmul.mubr.bf16.gmra.mrb[0].mxu0 %v1143
    %v1247 = vpop.f32.mrb[0].mxu0
    %v1248 = vadd.f32 0.0, %v1247
    %v1249 = vpop.f32.mrb[0].mxu0
    %v1250 = vpop.f32.mrb[0].mxu0
    %v1251 = vadd.f32 0.0, %v1250
    %v1252 = vpop.f32.mrb[0].mxu0
    %1253 = vmatprep.mubr.bf16.mxu0 0
    %1254 = vmatmul.mubr.bf16.gmra.mrb[0].mxu0 %v1146
    %v1255 = vpop.f32.mrb[0].mxu0
    %v1256 = vadd.f32 0.0, %v1255
    %v1257 = vpop.f32.mrb[0].mxu0
    %v1258 = vpop.f32.mrb[0].mxu0
    %v1259 = vadd.f32 0.0, %v1258
    %v1260 = vpop.f32.mrb[0].mxu0
    %1261 = vmatprep.mubr.bf16.mxu0 0
    %1262 = vmatmul.mubr.bf16.gmra.mrb[0].mxu0 %v1149
    %v1263 = vpop.f32.mrb[0].mxu0
    %v1264 = vadd.f32 0.0, %v1263
    %v1265 = vpop.f32.mrb[0].mxu0
    %v1266 = vpop.f32.mrb[0].mxu0
    %v1267 = vadd.f32 0.0, %v1266
    %v1268 = vpop.f32.mrb[0].mxu0
    %1269 = vmatprep.mubr.bf16.mxu0 0
    %1270 = vmatmul.mubr.bf16.gmra.mrb[0].mxu0 %v1152
    %v1271 = vpop.f32.mrb[0].mxu0
    %v1272 = vadd.f32 0.0, %v1271
    %v1273 = vpop.f32.mrb[0].mxu0
    %v1274 = vpop.f32.mrb[0].mxu0
    %v1275 = vadd.f32 0.0, %v1274
    %v1276 = vpop.f32.mrb[0].mxu0
    %1277 = vmatprep.mubr.bf16.mxu0 0
    %1278 = vmatmul.mubr.bf16.gmra.mrb[0].mxu0 %v1155
    %v1279 = vpop.f32.mrb[0].mxu0
    %v1280 = vadd.f32 0.0, %v1279
    %v1281 = vpop.f32.mrb[0].mxu0
    %v1282 = vpop.f32.mrb[0].mxu0
    %v1283 = vadd.f32 0.0, %v1282
    %v1284 = vpop.f32.mrb[0].mxu0
    %1285 = vdwg.mxu0
    %v1286 = vunpack.c.l.bf16 %v235
    %v1287 = vunpack.c.l.bf16 %v236
    %v1288 = vunpack.c.l.bf16 %v237
    %v1289 = vunpack.c.l.bf16 %v238
    %v1290 = vunpack.c.l.bf16 %v239
    %v1291 = vunpack.c.l.bf16 %v240
    %v1292 = vunpack.c.l.bf16 %v241
    %v1293 = vunpack.c.l.bf16 %v242
    %v1294 = vunpack.c.l.bf16 %v243
    %v1295 = vunpack.c.l.bf16 %v244
    %v1296 = vunpack.c.l.bf16 %v245
    %v1297 = vunpack.c.l.bf16 %v246
    %v1298 = vunpack.c.l.bf16 %v247
    %v1299 = vunpack.c.l.bf16 %v248
    %v1300 = vunpack.c.l.bf16 %v249
    %v1301 = vunpack.c.l.bf16 %v250
    %v1302 = vunpack.c.l.bf16 %v251
    %v1303 = vunpack.c.l.bf16 %v252
    %v1304 = vunpack.c.l.bf16 %v253
    %v1305 = vunpack.c.l.bf16 %v254
    %v1306 = vunpack.c.l.bf16 %v255
    %v1307 = vunpack.c.l.bf16 %v256
    %v1308 = vunpack.c.l.bf16 %v257
    %v1309 = vunpack.c.l.bf16 %v258
    %v1310 = vmul.f32 %v1192, %v1286
    %v1311 = vmul.f32 %v1195, %v1287
    %v1312 = vmul.f32 %v1200, %v1288
    %v1313 = vmul.f32 %v1203, %v1289
    %v1314 = vmul.f32 %v1208, %v1290
    %v1315 = vmul.f32 %v1211, %v1291
    %v1316 = vmul.f32 %v1216, %v1292
    %v1317 = vmul.f32 %v1219, %v1293
    %v1318 = vmul.f32 %v1224, %v1294
    %v1319 = vmul.f32 %v1227, %v1295
    %v1320 = vmul.f32 %v1232, %v1296
    %v1321 = vmul.f32 %v1235, %v1297
    %v1322 = vmul.f32 %v1240, %v1298
    %v1323 = vmul.f32 %v1243, %v1299
    %v1324 = vmul.f32 %v1248, %v1300
    %v1325 = vmul.f32 %v1251, %v1301
    %v1326 = vmul.f32 %v1256, %v1302
    %v1327 = vmul.f32 %v1259, %v1303
    %v1328 = vmul.f32 %v1264, %v1304
    %v1329 = vmul.f32 %v1267, %v1305
    %v1330 = vmul.f32 %v1272, %v1306
    %v1331 = vmul.f32 %v1275, %v1307
    %v1332 = vmul.f32 %v1280, %v1308
    %v1333 = vmul.f32 %v1283, %v1309
    %v1334 = vadd.f32 %v1310, %v1316
    %v1335 = vadd.f32 %v1311, %v1317
    %v1336 = vadd.f32 %v1312, %v1318
    %v1337 = vadd.f32 %v1313, %v1319
    %v1338 = vadd.f32 %v1314, %v1320
    %v1339 = vadd.f32 %v1315, %v1321
    %v1340 = vadd.f32 %v1334, %v1322
    %v1341 = vadd.f32 %v1335, %v1323
    %v1342 = vadd.f32 %v1336, %v1324
    %v1343 = vadd.f32 %v1337, %v1325
    %v1344 = vadd.f32 %v1338, %v1326
    %v1345 = vadd.f32 %v1339, %v1327
    %v1346 = vadd.f32 %v1340, %v1328
    %v1347 = vadd.f32 %v1341, %v1329
    %v1348 = vadd.f32 %v1342, %v1330
    %v1349 = vadd.f32 %v1343, %v1331
    %v1350 = vadd.f32 %v1344, %v1332
    %v1351 = vadd.f32 %v1345, %v1333
    %v1352 = vpack.c.bf16 %v1347, %v1346
    %v1353 = vpack.c.bf16 %v1349, %v1348
    %v1354 = vpack.c.bf16 %v1351, %v1350
    %v1355 = vld [vmem:[%s8] sm:$0xf]
    %v1356 = vld [vmem:[%s8 + $0x4] sm:$0xf]
    %v1357 = vld [vmem:[%s8 + $0x8] sm:$0xf]
    %v1358 = vld [vmem:[%s8 + $0xc] sm:$0xf]
    %v1363 = vunpack.c.l.b16 %v1355
    %v1364 = vunpack.c.l.b16 %v1356
    %v1365 = vunpack.c.l.b16 %v1357
    %v1366 = vunpack.c.l.b16 %v1358
    %v1367 = vpack.c.b16 %v1364, %v1363
    %v1368 = vpack.c.b16 %v1366, %v1365
    %v1372 = vsel %vm290, %v1352, 0
    %v1375 = vsel %vm290, %v1353, 0
    %v1378 = vsel %vm290, %v1354, 0
    %1380 = vmatprep.subr.bf16.mxu0 0
    %1381 = vmatpush1.bf16.msra.mxu0 %v1367
    %1382 = vmatprep.subr.bf16.mxu0 0
    %1383 = vmatpush1.bf16.msra.mxu0 %v1368
    %1384 = vmatprep.subr.bf16.mxu0 0
    %1385 = vmatpush1.bf16.msra.mxu0 0
    %1386 = vmatprep.subr.bf16.mxu0 0
    %1387 = vmatpush1.bf16.msra.mxu0 0
    %1388 = vmatprep.subr.bf16.mxu0 0
    %1389 = vmatpush1.bf16.msra.mxu0 0
    %1390 = vmatprep.subr.bf16.mxu0 0
    %1391 = vmatpush1.bf16.msra.mxu0 0
    %1392 = vmatprep.subr.bf16.mxu0 0
    %1393 = vmatpush1.bf16.msra.mxu0 0
    %1394 = vmatprep.subr.bf16.mxu0 0
    %1395 = vmatpush1.bf16.msra.mxu0 0
    %1396 = vmatprep.subr.bf16.mxu0 0
    %1397 = vmatpush1.bf16.msra.mxu0 0
    %1398 = vmatprep.subr.bf16.mxu0 0
    %1399 = vmatpush1.bf16.msra.mxu0 0
    %1400 = vmatprep.subr.bf16.mxu0 0
    %1401 = vmatpush1.bf16.msra.mxu0 0
    %1402 = vmatprep.subr.bf16.mxu0 0
    %1403 = vmatpush1.bf16.msra.mxu0 0
    %1404 = vmatprep.subr.bf16.mxu0 0
    %1405 = vmatpush1.bf16.msra.mxu0 0
    %1406 = vmatprep.subr.bf16.mxu0 0
    %1407 = vmatpush1.bf16.msra.mxu0 0
    %1408 = vmatprep.subr.bf16.mxu0 0
    %1409 = vmatpush1.bf16.msra.mxu0 0
    %1410 = vmatprep.subr.bf16.mxu0 0
    %1411 = vmatpush1.bf16.msra.mxu0 0
    %1412 = vmatprep.mubr.bf16.mxu0 0
    %1413 = vmatmul.mubr.bf16.gmra.mrb[0].mxu0 %v1372
    %v1414 = vpop.f32.mrb[0].mxu0
    %v1415 = vadd.f32 0.0, %v1414
    %v1416 = vpop.f32.mrb[0].mxu0
    %v1417 = vpop.f32.mrb[0].mxu0
    %v1418 = vadd.f32 0.0, %v1417
    %v1419 = vpop.f32.mrb[0].mxu0
    %1420 = vmatprep.mubr.bf16.mxu0 0
    %1421 = vmatmul.mubr.bf16.gmra.mrb[0].mxu0 %v1375
    %v1422 = vpop.f32.mrb[0].mxu0
    %v1423 = vadd.f32 0.0, %v1422
    %v1424 = vpop.f32.mrb[0].mxu0
    %v1425 = vpop.f32.mrb[0].mxu0
    %v1426 = vadd.f32 0.0, %v1425
    %v1427 = vpop.f32.mrb[0].mxu0
    %1428 = vmatprep.mubr.bf16.mxu0 0
    %1429 = vmatmul.mubr.bf16.gmra.mrb[0].mxu0 %v1378
    %v1430 = vpop.f32.mrb[0].mxu0
    %v1431 = vadd.f32 0.0, %v1430
    %v1432 = vpop.f32.mrb[0].mxu0
    %v1433 = vpop.f32.mrb[0].mxu0
    %v1434 = vadd.f32 0.0, %v1433
    %v1435 = vpop.f32.mrb[0].mxu0
    %1436 = vdwg.mxu0
    %v1437 = vadd.f32 %v207, %v1415
    %v1438 = vadd.f32 %v212, %v1418
    %v1439 = vadd.f32 %v217, %v1423
    %v1440 = vadd.f32 %v222, %v1426
    %v1441 = vadd.f32 %v227, %v1431
    %v1442 = vadd.f32 %v232, %v1434
    %v1443 = vld [vmem:[%s9] sm:$0x1]
    %v1444 = vmul.f32 %v1437, %v1437
    %v1445 = vmul.f32 %v1438, %v1438
    %v1446 = vmul.f32 %v1439, %v1439
    %v1447 = vmul.f32 %v1440, %v1440
    %v1448 = vmul.f32 %v1441, %v1441
    %v1449 = vmul.f32 %v1442, %v1442
    %v1450 = vsel %vm290, %v1444, 0.0
    %1451 = vadd.xlane.f32.xlu0 %v1450
    %v1452 = vpop.xlane.xlu0 %1451
    %v1453 = vsel %vm290, %v1445, 0.0
    %1454 = vadd.xlane.f32.xlu0 %v1453
    %v1455 = vpop.xlane.xlu0 %1454
    %v1456 = vsel %vm290, %v1446, 0.0
    %1457 = vadd.xlane.f32.xlu0 %v1456
    %v1458 = vpop.xlane.xlu0 %1457
    %v1459 = vsel %vm290, %v1447, 0.0
    %1460 = vadd.xlane.f32.xlu0 %v1459
    %v1461 = vpop.xlane.xlu0 %1460
    %v1462 = vsel %vm290, %v1448, 0.0
    %1463 = vadd.xlane.f32.xlu0 %v1462
    %v1464 = vpop.xlane.xlu0 %1463
    %v1465 = vsel %vm290, %v1449, 0.0
    %1466 = vadd.xlane.f32.xlu0 %v1465
    %v1467 = vpop.xlane.xlu0 %1466
    %v1468 = vmul.f32 %v1452, %v309
    %v1469 = vmul.f32 %v1455, %v309
    %v1470 = vmul.f32 %v1458, %v309
    %v1471 = vmul.f32 %v1461, %v309
    %v1472 = vmul.f32 %v1464, %v309
    %v1473 = vmul.f32 %v1467, %v309
    %v1474 = vadd.f32 %v1468, 1e-06
    %v1475 = vadd.f32 %v1469, 1e-06
    %v1476 = vadd.f32 %v1470, 1e-06
    %v1477 = vadd.f32 %v1471, 1e-06
    %v1478 = vadd.f32 %v1472, 1e-06
    %v1479 = vadd.f32 %v1473, 1e-06
    %v1480 = vrsqrt.pop %v1474
    %v1481 = vrsqrt.pop %v1475
    %v1482 = vrsqrt.pop %v1476
    %v1483 = vrsqrt.pop %v1477
    %v1484 = vrsqrt.pop %v1478
    %v1485 = vrsqrt.pop %v1479
    %v1486 = vmul.f32 %v1437, %v1480
    %v1487 = vmul.f32 %v1438, %v1481
    %v1488 = vmul.f32 %v1439, %v1482
    %v1489 = vmul.f32 %v1440, %v1483
    %v1490 = vmul.f32 %v1441, %v1484
    %v1491 = vmul.f32 %v1442, %v1485
    %v1493 = vlaneseq
    %v1494 = vshrl.u32 %v1493, 7
    %v1495 = vsub.s32 0, %v1494
    %v1496 = vrot.slane %v1443, %v1495
    %v1498 = vmul.f32 %v1486, %v1496
    %v1499 = vmul.f32 %v1487, %v1496
    %v1500 = vmul.f32 %v1488, %v1496
    %v1501 = vmul.f32 %v1489, %v1496
    %v1502 = vmul.f32 %v1490, %v1496
    %v1503 = vmul.f32 %v1491, %v1496
    %v1504 = vpack.c.bf16 %v1499, %v1498
    %v1505 = vpack.c.bf16 %v1501, %v1500
    %v1506 = vpack.c.bf16 %v1503, %v1502
    %v1507 = vld [vmem:[%s10] sm:$0xf]
    %v1508 = vld [vmem:[%s10 + $0x4] sm:$0xf]
    %v1509 = vld [vmem:[%s10 + $0x8] sm:$0xf]
    %v1510 = vld [vmem:[%s10 + $0xc] sm:$0xf]
    %v1515 = vunpack.c.l.b16 %v1507
    %v1516 = vunpack.c.l.b16 %v1508
    %v1517 = vunpack.c.l.b16 %v1509
    %v1518 = vunpack.c.l.b16 %v1510
    %v1519 = vpack.c.b16 %v1516, %v1515
    %v1520 = vpack.c.b16 %v1518, %v1517
    %v1524 = vsel %vm290, %v1504, 0
    %v1527 = vsel %vm290, %v1505, 0
    %v1530 = vsel %vm290, %v1506, 0
    %1532 = vmatprep.subr.bf16.mxu0 0
    %1533 = vmatpush1.bf16.msra.mxu0 %v1519
    %1534 = vmatprep.subr.bf16.mxu0 0
    %1535 = vmatpush1.bf16.msra.mxu0 %v1520
    %1536 = vmatprep.subr.bf16.mxu0 0
    %1537 = vmatpush1.bf16.msra.mxu0 0
    %1538 = vmatprep.subr.bf16.mxu0 0
    %1539 = vmatpush1.bf16.msra.mxu0 0
    %1540 = vmatprep.subr.bf16.mxu0 0
    %1541 = vmatpush1.bf16.msra.mxu0 0
    %1542 = vmatprep.subr.bf16.mxu0 0
    %1543 = vmatpush1.bf16.msra.mxu0 0
    %1544 = vmatprep.subr.bf16.mxu0 0
    %1545 = vmatpush1.bf16.msra.mxu0 0
    %1546 = vmatprep.subr.bf16.mxu0 0
    %1547 = vmatpush1.bf16.msra.mxu0 0
    %1548 = vmatprep.subr.bf16.mxu0 0
    %1549 = vmatpush1.bf16.msra.mxu0 0
    %1550 = vmatprep.subr.bf16.mxu0 0
    %1551 = vmatpush1.bf16.msra.mxu0 0
    %1552 = vmatprep.subr.bf16.mxu0 0
    %1553 = vmatpush1.bf16.msra.mxu0 0
    %1554 = vmatprep.subr.bf16.mxu0 0
    %1555 = vmatpush1.bf16.msra.mxu0 0
    %1556 = vmatprep.subr.bf16.mxu0 0
    %1557 = vmatpush1.bf16.msra.mxu0 0
    %1558 = vmatprep.subr.bf16.mxu0 0
    %1559 = vmatpush1.bf16.msra.mxu0 0
    %1560 = vmatprep.subr.bf16.mxu0 0
    %1561 = vmatpush1.bf16.msra.mxu0 0
    %1562 = vmatprep.subr.bf16.mxu0 0
    %1563 = vmatpush1.bf16.msra.mxu0 0
    %1564 = vmatprep.mubr.bf16.mxu0 0
    %1565 = vmatmul.mubr.bf16.gmra.mrb[0].mxu0 %v1524
    %v1566 = vpop.f32.mrb[0].mxu0
    %v1567 = vadd.f32 0.0, %v1566
    %v1568 = vpop.f32.mrb[0].mxu0
    %v1569 = vpop.f32.mrb[0].mxu0
    %v1570 = vadd.f32 0.0, %v1569
    %v1571 = vpop.f32.mrb[0].mxu0
    %1572 = vmatprep.mubr.bf16.mxu0 0
    %1573 = vmatmul.mubr.bf16.gmra.mrb[0].mxu0 %v1527
    %v1574 = vpop.f32.mrb[0].mxu0
    %v1575 = vadd.f32 0.0, %v1574
    %v1576 = vpop.f32.mrb[0].mxu0
    %v1577 = vpop.f32.mrb[0].mxu0
    %v1578 = vadd.f32 0.0, %v1577
    %v1579 = vpop.f32.mrb[0].mxu0
    %1580 = vmatprep.mubr.bf16.mxu0 0
    %1581 = vmatmul.mubr.bf16.gmra.mrb[0].mxu0 %v1530
    %v1582 = vpop.f32.mrb[0].mxu0
    %v1583 = vadd.f32 0.0, %v1582
    %v1584 = vpop.f32.mrb[0].mxu0
    %v1585 = vpop.f32.mrb[0].mxu0
    %v1586 = vadd.f32 0.0, %v1585
    %v1587 = vpop.f32.mrb[0].mxu0
    %1588 = vdwg.mxu0
    %v1589 = vmax.f32 %v1567, 0.0
    %v1590 = vmax.f32 %v1570, 0.0
    %v1591 = vmax.f32 %v1575, 0.0
    %v1592 = vmax.f32 %v1578, 0.0
    %v1593 = vmax.f32 %v1583, 0.0
    %v1594 = vmax.f32 %v1586, 0.0
    %v1595 = vpack.c.bf16 %v1590, %v1589
    %v1596 = vpack.c.bf16 %v1592, %v1591
    %v1597 = vpack.c.bf16 %v1594, %v1593
    %v1598 = vld [vmem:[%s11] sm:$0xf]
    %v1599 = vld [vmem:[%s11 + $0x4] sm:$0xf]
    %v1600 = vld [vmem:[%s11 + $0x8] sm:$0xf]
    %v1601 = vld [vmem:[%s11 + $0xc] sm:$0xf]
    %v1602 = vld [vmem:[%s11 + $0x10] sm:$0xf]
    %v1603 = vld [vmem:[%s11 + $0x14] sm:$0xf]
    %v1604 = vld [vmem:[%s11 + $0x18] sm:$0xf]
    %v1605 = vld [vmem:[%s11 + $0x1c] sm:$0xf]
    %v1614 = vunpack.c.l.b16 %v1598
    %v1615 = vunpack.c.l.b16 %v1599
    %v1616 = vunpack.c.l.b16 %v1600
    %v1617 = vunpack.c.l.b16 %v1601
    %v1618 = vunpack.c.l.b16 %v1602
    %v1619 = vunpack.c.l.b16 %v1603
    %v1620 = vunpack.c.l.b16 %v1604
    %v1621 = vunpack.c.l.b16 %v1605
    %v1622 = vpack.c.b16 %v1615, %v1614
    %v1623 = vpack.c.b16 %v1617, %v1616
    %v1624 = vpack.c.b16 %v1619, %v1618
    %v1625 = vpack.c.b16 %v1621, %v1620
    %vm1630 = vcmask 523264
    %v1632 = vsel %vm1630, %v1595, 0
    %v1635 = vsel %vm1630, %v1596, 0
    %v1638 = vsel %vm1630, %v1597, 0
    %1640 = vmatprep.subr.bf16.mxu0 0
    %1641 = vmatpush1.bf16.msra.mxu0 %v1622
    %1642 = vmatprep.subr.bf16.mxu0 0
    %1643 = vmatpush1.bf16.msra.mxu0 %v1623
    %1644 = vmatprep.subr.bf16.mxu0 0
    %1645 = vmatpush1.bf16.msra.mxu0 %v1624
    %1646 = vmatprep.subr.bf16.mxu0 0
    %1647 = vmatpush1.bf16.msra.mxu0 %v1625
    %1648 = vmatprep.subr.bf16.mxu0 0
    %1649 = vmatpush1.bf16.msra.mxu0 0
    %1650 = vmatprep.subr.bf16.mxu0 0
    %1651 = vmatpush1.bf16.msra.mxu0 0
    %1652 = vmatprep.subr.bf16.mxu0 0
    %1653 = vmatpush1.bf16.msra.mxu0 0
    %1654 = vmatprep.subr.bf16.mxu0 0
    %1655 = vmatpush1.bf16.msra.mxu0 0
    %1656 = vmatprep.subr.bf16.mxu0 0
    %1657 = vmatpush1.bf16.msra.mxu0 0
    %1658 = vmatprep.subr.bf16.mxu0 0
    %1659 = vmatpush1.bf16.msra.mxu0 0
    %1660 = vmatprep.subr.bf16.mxu0 0
    %1661 = vmatpush1.bf16.msra.mxu0 0
    %1662 = vmatprep.subr.bf16.mxu0 0
    %1663 = vmatpush1.bf16.msra.mxu0 0
    %1664 = vmatprep.subr.bf16.mxu0 0
    %1665 = vmatpush1.bf16.msra.mxu0 0
    %1666 = vmatprep.subr.bf16.mxu0 0
    %1667 = vmatpush1.bf16.msra.mxu0 0
    %1668 = vmatprep.subr.bf16.mxu0 0
    %1669 = vmatpush1.bf16.msra.mxu0 0
    %1670 = vmatprep.subr.bf16.mxu0 0
    %1671 = vmatpush1.bf16.msra.mxu0 0
    %1672 = vmatprep.mubr.bf16.mxu0 0
    %1673 = vmatmul.mubr.bf16.gmra.mrb[0].mxu0 %v1632
    %v1674 = vpop.f32.mrb[0].mxu0
    %v1675 = vadd.f32 0.0, %v1674
    %v1676 = vpop.f32.mrb[0].mxu0
    %v1677 = vpop.f32.mrb[0].mxu0
    %v1678 = vadd.f32 0.0, %v1677
    %v1679 = vpop.f32.mrb[0].mxu0
    %1680 = vmatprep.mubr.bf16.mxu0 0
    %1681 = vmatmul.mubr.bf16.gmra.mrb[0].mxu0 %v1635
    %v1682 = vpop.f32.mrb[0].mxu0
    %v1683 = vadd.f32 0.0, %v1682
    %v1684 = vpop.f32.mrb[0].mxu0
    %v1685 = vpop.f32.mrb[0].mxu0
    %v1686 = vadd.f32 0.0, %v1685
    %v1687 = vpop.f32.mrb[0].mxu0
    %1688 = vmatprep.mubr.bf16.mxu0 0
    %1689 = vmatmul.mubr.bf16.gmra.mrb[0].mxu0 %v1638
    %v1690 = vpop.f32.mrb[0].mxu0
    %v1691 = vadd.f32 0.0, %v1690
    %v1692 = vpop.f32.mrb[0].mxu0
    %v1693 = vpop.f32.mrb[0].mxu0
    %v1694 = vadd.f32 0.0, %v1693
    %v1695 = vpop.f32.mrb[0].mxu0
    %1696 = vdwg.mxu0
    %v1697 = vadd.f32 %v1437, %v1675
    %v1698 = vadd.f32 %v1438, %v1678
    %v1699 = vadd.f32 %v1439, %v1683
    %v1700 = vadd.f32 %v1440, %v1686
    %v1701 = vadd.f32 %v1441, %v1691
    %v1702 = vadd.f32 %v1442, %v1694
    %s1703 = scalar_lea.vmem %s4, 1
    %v1704 = vld [vmem:[%s1703] sm:$0x1]
    %v1705 = vmul.f32 %v1697, %v1697
    %v1706 = vmul.f32 %v1698, %v1698
    %v1707 = vmul.f32 %v1699, %v1699
    %v1708 = vmul.f32 %v1700, %v1700
    %v1709 = vmul.f32 %v1701, %v1701
    %v1710 = vmul.f32 %v1702, %v1702
    %v1711 = vsel %vm290, %v1705, 0.0
    %1712 = vadd.xlane.f32.xlu0 %v1711
    %v1713 = vpop.xlane.xlu0 %1712
    %v1714 = vsel %vm290, %v1706, 0.0
    %1715 = vadd.xlane.f32.xlu0 %v1714
    %v1716 = vpop.xlane.xlu0 %1715
    %v1717 = vsel %vm290, %v1707, 0.0
    %1718 = vadd.xlane.f32.xlu0 %v1717
    %v1719 = vpop.xlane.xlu0 %1718
    %v1720 = vsel %vm290, %v1708, 0.0
    %1721 = vadd.xlane.f32.xlu0 %v1720
    %v1722 = vpop.xlane.xlu0 %1721
    %v1723 = vsel %vm290, %v1709, 0.0
    %1724 = vadd.xlane.f32.xlu0 %v1723
    %v1725 = vpop.xlane.xlu0 %1724
    %v1726 = vsel %vm290, %v1710, 0.0
    %1727 = vadd.xlane.f32.xlu0 %v1726
    %v1728 = vpop.xlane.xlu0 %1727
    %v1729 = vmul.f32 %v1713, %v309
    %v1730 = vmul.f32 %v1716, %v309
    %v1731 = vmul.f32 %v1719, %v309
    %v1732 = vmul.f32 %v1722, %v309
    %v1733 = vmul.f32 %v1725, %v309
    %v1734 = vmul.f32 %v1728, %v309
    %v1735 = vadd.f32 %v1729, 1e-06
    %v1736 = vadd.f32 %v1730, 1e-06
    %v1737 = vadd.f32 %v1731, 1e-06
    %v1738 = vadd.f32 %v1732, 1e-06
    %v1739 = vadd.f32 %v1733, 1e-06
    %v1740 = vadd.f32 %v1734, 1e-06
    %v1741 = vrsqrt.pop %v1735
    %v1742 = vrsqrt.pop %v1736
    %v1743 = vrsqrt.pop %v1737
    %v1744 = vrsqrt.pop %v1738
    %v1745 = vrsqrt.pop %v1739
    %v1746 = vrsqrt.pop %v1740
    %v1747 = vmul.f32 %v1697, %v1741
    %v1748 = vmul.f32 %v1698, %v1742
    %v1749 = vmul.f32 %v1699, %v1743
    %v1750 = vmul.f32 %v1700, %v1744
    %v1751 = vmul.f32 %v1701, %v1745
    %v1752 = vmul.f32 %v1702, %v1746
    %v1754 = vlaneseq
    %v1755 = vshrl.u32 %v1754, 7
    %v1756 = vsub.s32 0, %v1755
    %v1757 = vrot.slane %v1704, %v1756
    %v1759 = vmul.f32 %v1747, %v1757
    %v1760 = vmul.f32 %v1748, %v1757
    %v1761 = vmul.f32 %v1749, %v1757
    %v1762 = vmul.f32 %v1750, %v1757
    %v1763 = vmul.f32 %v1751, %v1757
    %v1764 = vmul.f32 %v1752, %v1757
    %v1765 = vpack.c.bf16 %v1760, %v1759
    %v1766 = vpack.c.bf16 %v1762, %v1761
    %v1767 = vpack.c.bf16 %v1764, %v1763
    %s1768 = scalar_lea.vmem %s5, 16
    %v1769 = vld [vmem:[%s1768] sm:$0xf]
    %v1770 = vld [vmem:[%s1768 + $0x4] sm:$0xf]
    %v1771 = vld [vmem:[%s1768 + $0x8] sm:$0xf]
    %v1772 = vld [vmem:[%s1768 + $0xc] sm:$0xf]
    %v1777 = vunpack.c.l.b16 %v1769
    %v1778 = vunpack.c.l.b16 %v1770
    %v1779 = vunpack.c.l.b16 %v1771
    %v1780 = vunpack.c.l.b16 %v1772
    %v1781 = vpack.c.b16 %v1778, %v1777
    %v1782 = vpack.c.b16 %v1780, %v1779
    %v1786 = vsel %vm290, %v1765, 0
    %v1789 = vsel %vm290, %v1766, 0
    %v1792 = vsel %vm290, %v1767, 0
    %1794 = vmatprep.subr.bf16.mxu0 0
    %1795 = vmatpush1.bf16.msra.mxu0 %v1781
    %1796 = vmatprep.subr.bf16.mxu0 0
    %1797 = vmatpush1.bf16.msra.mxu0 %v1782
    %1798 = vmatprep.subr.bf16.mxu0 0
    %1799 = vmatpush1.bf16.msra.mxu0 0
    %1800 = vmatprep.subr.bf16.mxu0 0
    %1801 = vmatpush1.bf16.msra.mxu0 0
    %1802 = vmatprep.subr.bf16.mxu0 0
    %1803 = vmatpush1.bf16.msra.mxu0 0
    %1804 = vmatprep.subr.bf16.mxu0 0
    %1805 = vmatpush1.bf16.msra.mxu0 0
    %1806 = vmatprep.subr.bf16.mxu0 0
    %1807 = vmatpush1.bf16.msra.mxu0 0
    %1808 = vmatprep.subr.bf16.mxu0 0
    %1809 = vmatpush1.bf16.msra.mxu0 0
    %1810 = vmatprep.subr.bf16.mxu0 0
    %1811 = vmatpush1.bf16.msra.mxu0 0
    %1812 = vmatprep.subr.bf16.mxu0 0
    %1813 = vmatpush1.bf16.msra.mxu0 0
    %1814 = vmatprep.subr.bf16.mxu0 0
    %1815 = vmatpush1.bf16.msra.mxu0 0
    %1816 = vmatprep.subr.bf16.mxu0 0
    %1817 = vmatpush1.bf16.msra.mxu0 0
    %1818 = vmatprep.subr.bf16.mxu0 0
    %1819 = vmatpush1.bf16.msra.mxu0 0
    %1820 = vmatprep.subr.bf16.mxu0 0
    %1821 = vmatpush1.bf16.msra.mxu0 0
    %1822 = vmatprep.subr.bf16.mxu0 0
    %1823 = vmatpush1.bf16.msra.mxu0 0
    %1824 = vmatprep.subr.bf16.mxu0 0
    %1825 = vmatpush1.bf16.msra.mxu0 0
    %1826 = vmatprep.mubr.bf16.mxu0 0
    %1827 = vmatmul.mubr.bf16.gmra.mrb[0].mxu0 %v1786
    %v1828 = vpop.f32.mrb[0].mxu0
    %v1829 = vadd.f32 0.0, %v1828
    %v1830 = vpop.f32.mrb[0].mxu0
    %v1831 = vpop.f32.mrb[0].mxu0
    %v1832 = vadd.f32 0.0, %v1831
    %v1833 = vpop.f32.mrb[0].mxu0
    %1834 = vmatprep.mubr.bf16.mxu0 0
    %1835 = vmatmul.mubr.bf16.gmra.mrb[0].mxu0 %v1789
    %v1836 = vpop.f32.mrb[0].mxu0
    %v1837 = vadd.f32 0.0, %v1836
    %v1838 = vpop.f32.mrb[0].mxu0
    %v1839 = vpop.f32.mrb[0].mxu0
    %v1840 = vadd.f32 0.0, %v1839
    %v1841 = vpop.f32.mrb[0].mxu0
    %1842 = vmatprep.mubr.bf16.mxu0 0
    %1843 = vmatmul.mubr.bf16.gmra.mrb[0].mxu0 %v1792
    %v1844 = vpop.f32.mrb[0].mxu0
    %v1845 = vadd.f32 0.0, %v1844
    %v1846 = vpop.f32.mrb[0].mxu0
    %v1847 = vpop.f32.mrb[0].mxu0
    %v1848 = vadd.f32 0.0, %v1847
    %v1849 = vpop.f32.mrb[0].mxu0
    %1850 = vdwg.mxu0
    %v1851 = vpack.c.bf16 %v1832, %v1829
    %v1852 = vpack.c.bf16 %v1840, %v1837
    %v1853 = vpack.c.bf16 %v1848, %v1845
    %s1854 = scalar_lea.vmem %s6, 16
    %v1855 = vld [vmem:[%s1854] sm:$0xf]
    %v1856 = vld [vmem:[%s1854 + $0x4] sm:$0xf]
    %v1857 = vld [vmem:[%s1854 + $0x8] sm:$0xf]
    %v1858 = vld [vmem:[%s1854 + $0xc] sm:$0xf]
    %v1863 = vunpack.c.l.b16 %v1855
    %v1864 = vunpack.c.l.b16 %v1856
    %v1865 = vunpack.c.l.b16 %v1857
    %v1866 = vunpack.c.l.b16 %v1858
    %v1867 = vpack.c.b16 %v1864, %v1863
    %v1868 = vpack.c.b16 %v1866, %v1865
    %1871 = vmatprep.subr.bf16.mxu0 0
    %1872 = vmatpush1.bf16.msra.mxu0 %v1867
    %1873 = vmatprep.subr.bf16.mxu0 0
    %1874 = vmatpush1.bf16.msra.mxu0 %v1868
    %1875 = vmatprep.subr.bf16.mxu0 0
    %1876 = vmatpush1.bf16.msra.mxu0 0
    %1877 = vmatprep.subr.bf16.mxu0 0
    %1878 = vmatpush1.bf16.msra.mxu0 0
    %1879 = vmatprep.subr.bf16.mxu0 0
    %1880 = vmatpush1.bf16.msra.mxu0 0
    %1881 = vmatprep.subr.bf16.mxu0 0
    %1882 = vmatpush1.bf16.msra.mxu0 0
    %1883 = vmatprep.subr.bf16.mxu0 0
    %1884 = vmatpush1.bf16.msra.mxu0 0
    %1885 = vmatprep.subr.bf16.mxu0 0
    %1886 = vmatpush1.bf16.msra.mxu0 0
    %1887 = vmatprep.subr.bf16.mxu0 0
    %1888 = vmatpush1.bf16.msra.mxu0 0
    %1889 = vmatprep.subr.bf16.mxu0 0
    %1890 = vmatpush1.bf16.msra.mxu0 0
    %1891 = vmatprep.subr.bf16.mxu0 0
    %1892 = vmatpush1.bf16.msra.mxu0 0
    %1893 = vmatprep.subr.bf16.mxu0 0
    %1894 = vmatpush1.bf16.msra.mxu0 0
    %1895 = vmatprep.subr.bf16.mxu0 0
    %1896 = vmatpush1.bf16.msra.mxu0 0
    %1897 = vmatprep.subr.bf16.mxu0 0
    %1898 = vmatpush1.bf16.msra.mxu0 0
    %1899 = vmatprep.subr.bf16.mxu0 0
    %1900 = vmatpush1.bf16.msra.mxu0 0
    %1901 = vmatprep.subr.bf16.mxu0 0
    %1902 = vmatpush1.bf16.msra.mxu0 0
    %1903 = vmatprep.mubr.bf16.mxu0 0
    %1904 = vmatmul.mubr.bf16.gmra.mrb[0].mxu0 %v1786
    %v1905 = vpop.f32.mrb[0].mxu0
    %v1906 = vadd.f32 0.0, %v1905
    %v1907 = vpop.f32.mrb[0].mxu0
    %v1908 = vpop.f32.mrb[0].mxu0
    %v1909 = vadd.f32 0.0, %v1908
    %v1910 = vpop.f32.mrb[0].mxu0
    %1911 = vmatprep.mubr.bf16.mxu0 0
    %1912 = vmatmul.mubr.bf16.gmra.mrb[0].mxu0 %v1789
    %v1913 = vpop.f32.mrb[0].mxu0
    %v1914 = vadd.f32 0.0, %v1913
    %v1915 = vpop.f32.mrb[0].mxu0
    %v1916 = vpop.f32.mrb[0].mxu0
    %v1917 = vadd.f32 0.0, %v1916
    %v1918 = vpop.f32.mrb[0].mxu0
    %1919 = vmatprep.mubr.bf16.mxu0 0
    %1920 = vmatmul.mubr.bf16.gmra.mrb[0].mxu0 %v1792
    %v1921 = vpop.f32.mrb[0].mxu0
    %v1922 = vadd.f32 0.0, %v1921
    %v1923 = vpop.f32.mrb[0].mxu0
    %v1924 = vpop.f32.mrb[0].mxu0
    %v1925 = vadd.f32 0.0, %v1924
    %v1926 = vpop.f32.mrb[0].mxu0
    %1927 = vdwg.mxu0
    %v1928 = vpack.c.bf16 %v1909, %v1906
    %v1929 = vpack.c.bf16 %v1917, %v1914
    %v1930 = vpack.c.bf16 %v1925, %v1922
    %s1931 = scalar_lea.vmem %s7, 16
    %v1932 = vld [vmem:[%s1931] sm:$0xf]
    %v1933 = vld [vmem:[%s1931 + $0x4] sm:$0xf]
    %v1934 = vld [vmem:[%s1931 + $0x8] sm:$0xf]
    %v1935 = vld [vmem:[%s1931 + $0xc] sm:$0xf]
    %v1940 = vunpack.c.l.b16 %v1932
    %v1941 = vunpack.c.l.b16 %v1933
    %v1942 = vunpack.c.l.b16 %v1934
    %v1943 = vunpack.c.l.b16 %v1935
    %v1944 = vpack.c.b16 %v1941, %v1940
    %v1945 = vpack.c.b16 %v1943, %v1942
    %1948 = vmatprep.subr.bf16.mxu0 0
    %1949 = vmatpush1.bf16.msra.mxu0 %v1944
    %1950 = vmatprep.subr.bf16.mxu0 0
    %1951 = vmatpush1.bf16.msra.mxu0 %v1945
    %1952 = vmatprep.subr.bf16.mxu0 0
    %1953 = vmatpush1.bf16.msra.mxu0 0
    %1954 = vmatprep.subr.bf16.mxu0 0
    %1955 = vmatpush1.bf16.msra.mxu0 0
    %1956 = vmatprep.subr.bf16.mxu0 0
    %1957 = vmatpush1.bf16.msra.mxu0 0
    %1958 = vmatprep.subr.bf16.mxu0 0
    %1959 = vmatpush1.bf16.msra.mxu0 0
    %1960 = vmatprep.subr.bf16.mxu0 0
    %1961 = vmatpush1.bf16.msra.mxu0 0
    %1962 = vmatprep.subr.bf16.mxu0 0
    %1963 = vmatpush1.bf16.msra.mxu0 0
    %1964 = vmatprep.subr.bf16.mxu0 0
    %1965 = vmatpush1.bf16.msra.mxu0 0
    %1966 = vmatprep.subr.bf16.mxu0 0
    %1967 = vmatpush1.bf16.msra.mxu0 0
    %1968 = vmatprep.subr.bf16.mxu0 0
    %1969 = vmatpush1.bf16.msra.mxu0 0
    %1970 = vmatprep.subr.bf16.mxu0 0
    %1971 = vmatpush1.bf16.msra.mxu0 0
    %1972 = vmatprep.subr.bf16.mxu0 0
    %1973 = vmatpush1.bf16.msra.mxu0 0
    %1974 = vmatprep.subr.bf16.mxu0 0
    %1975 = vmatpush1.bf16.msra.mxu0 0
    %1976 = vmatprep.subr.bf16.mxu0 0
    %1977 = vmatpush1.bf16.msra.mxu0 0
    %1978 = vmatprep.subr.bf16.mxu0 0
    %1979 = vmatpush1.bf16.msra.mxu0 0
    %1980 = vmatprep.mubr.bf16.mxu0 0
    %1981 = vmatmul.mubr.bf16.gmra.mrb[0].mxu0 %v1786
    %v1982 = vpop.f32.mrb[0].mxu0
    %v1983 = vadd.f32 0.0, %v1982
    %v1984 = vpop.f32.mrb[0].mxu0
    %v1985 = vpop.f32.mrb[0].mxu0
    %v1986 = vadd.f32 0.0, %v1985
    %v1987 = vpop.f32.mrb[0].mxu0
    %1988 = vmatprep.mubr.bf16.mxu0 0
    %1989 = vmatmul.mubr.bf16.gmra.mrb[0].mxu0 %v1789
    %v1990 = vpop.f32.mrb[0].mxu0
    %v1991 = vadd.f32 0.0, %v1990
    %v1992 = vpop.f32.mrb[0].mxu0
    %v1993 = vpop.f32.mrb[0].mxu0
    %v1994 = vadd.f32 0.0, %v1993
    %v1995 = vpop.f32.mrb[0].mxu0
    %1996 = vmatprep.mubr.bf16.mxu0 0
    %1997 = vmatmul.mubr.bf16.gmra.mrb[0].mxu0 %v1792
    %v1998 = vpop.f32.mrb[0].mxu0
    %v1999 = vadd.f32 0.0, %v1998
    %v2000 = vpop.f32.mrb[0].mxu0
    %v2001 = vpop.f32.mrb[0].mxu0
    %v2002 = vadd.f32 0.0, %v2001
    %v2003 = vpop.f32.mrb[0].mxu0
    %2004 = vdwg.mxu0
    %v2005 = vpack.c.bf16 %v1986, %v1983
    %v2006 = vpack.c.bf16 %v1994, %v1991
    %v2007 = vpack.c.bf16 %v2002, %v1999
    %v2008 = vmul.bf16 %v1851, %v634
    %v2009 = vmul.bf16 %v1852, %v635
    %v2010 = vmul.bf16 %v1853, %v636
    %v2011 = vmul.bf16 %v1851, %v637
    %v2012 = vmul.bf16 %v1852, %v638
    %v2013 = vmul.bf16 %v1853, %v639
    %v2014 = vmul.bf16 %v1851, %v640
    %v2015 = vmul.bf16 %v1852, %v641
    %v2016 = vmul.bf16 %v1853, %v642
    %v2017 = vmul.bf16 %v1851, %v643
    %v2018 = vmul.bf16 %v1852, %v644
    %v2019 = vmul.bf16 %v1853, %v645
    %v2021 = vsel %vm290, %v2008, 0
    %v2024 = vsel %vm290, %v2009, 0
    %v2027 = vsel %vm290, %v2010, 0
    %v2030 = vsel %vm290, %v2011, 0
    %v2033 = vsel %vm290, %v2012, 0
    %v2036 = vsel %vm290, %v2013, 0
    %v2039 = vsel %vm290, %v2014, 0
    %v2042 = vsel %vm290, %v2015, 0
    %v2045 = vsel %vm290, %v2016, 0
    %v2048 = vsel %vm290, %v2017, 0
    %v2051 = vsel %vm290, %v2018, 0
    %v2054 = vsel %vm290, %v2019, 0
    %v2057 = vsel %vm290, %v1928, 0
    %v2060 = vsel %vm290, %v1929, 0
    %v2063 = vsel %vm290, %v1930, 0
    %2065 = vmatprep.subr.bf16.mxu0 0
    %2066 = vmatpush1.bf16.xpose.msra.mxu0 %v2057
    %2067 = vmatprep.subr.bf16.mxu0 0
    %2068 = vmatpush1.bf16.xpose.msra.mxu0 %v2060
    %2069 = vmatprep.subr.bf16.mxu0 0
    %2070 = vmatpush1.bf16.xpose.msra.mxu0 %v2063
    %2071 = vmatprep.subr.bf16.mxu0 0
    %2072 = vmatpush1.bf16.xpose.msra.mxu0 0
    %2073 = vmatprep.subr.bf16.mxu0 0
    %2074 = vmatpush1.bf16.xpose.msra.mxu0 0
    %2075 = vmatprep.subr.bf16.mxu0 0
    %2076 = vmatpush1.bf16.xpose.msra.mxu0 0
    %2077 = vmatprep.subr.bf16.mxu0 0
    %2078 = vmatpush1.bf16.xpose.msra.mxu0 0
    %2079 = vmatprep.subr.bf16.mxu0 0
    %2080 = vmatpush1.bf16.xpose.msra.mxu0 0
    %2081 = vmatprep.subr.bf16.mxu0 0
    %2082 = vmatpush1.bf16.xpose.msra.mxu0 0
    %2083 = vmatprep.subr.bf16.mxu0 0
    %2084 = vmatpush1.bf16.xpose.msra.mxu0 0
    %2085 = vmatprep.subr.bf16.mxu0 0
    %2086 = vmatpush1.bf16.xpose.msra.mxu0 0
    %2087 = vmatprep.subr.bf16.mxu0 0
    %2088 = vmatpush1.bf16.xpose.msra.mxu0 0
    %2089 = vmatprep.subr.bf16.mxu0 0
    %2090 = vmatpush1.bf16.xpose.msra.mxu0 0
    %2091 = vmatprep.subr.bf16.mxu0 0
    %2092 = vmatpush1.bf16.xpose.msra.mxu0 0
    %2093 = vmatprep.subr.bf16.mxu0 0
    %2094 = vmatpush1.bf16.xpose.msra.mxu0 0
    %2095 = vmatprep.subr.bf16.mxu0 0
    %2096 = vmatpush1.bf16.xpose.msra.mxu0 0
    %2097 = vmatprep.mubr.bf16.mxu0 0
    %2098 = vmatmul.mubr.bf16.gmra.mrb[0].mxu0 %v2021
    %v2099 = vpop.f32.mrb[0].mxu0
    %v2100 = vadd.f32 %v259, %v2099
    %v2101 = vpop.f32.mrb[0].mxu0
    %v2102 = vpop.f32.mrb[0].mxu0
    %v2103 = vadd.f32 %v260, %v2102
    %v2104 = vpop.f32.mrb[0].mxu0
    %2105 = vmatprep.mubr.bf16.mxu0 0
    %2106 = vmatmul.mubr.bf16.gmra.mrb[0].mxu0 %v2024
    %v2107 = vpop.f32.mrb[0].mxu0
    %v2108 = vadd.f32 %v261, %v2107
    %v2109 = vpop.f32.mrb[0].mxu0
    %v2110 = vpop.f32.mrb[0].mxu0
    %v2111 = vadd.f32 %v262, %v2110
    %v2112 = vpop.f32.mrb[0].mxu0
    %2113 = vmatprep.mubr.bf16.mxu0 0
    %2114 = vmatmul.mubr.bf16.gmra.mrb[0].mxu0 %v2027
    %v2115 = vpop.f32.mrb[0].mxu0
    %v2116 = vadd.f32 %v263, %v2115
    %v2117 = vpop.f32.mrb[0].mxu0
    %v2118 = vpop.f32.mrb[0].mxu0
    %v2119 = vadd.f32 %v264, %v2118
    %v2120 = vpop.f32.mrb[0].mxu0
    %2121 = vmatprep.mubr.bf16.mxu0 0
    %2122 = vmatmul.mubr.bf16.gmra.mrb[0].mxu0 %v2030
    %v2123 = vpop.f32.mrb[0].mxu0
    %v2124 = vadd.f32 %v265, %v2123
    %v2125 = vpop.f32.mrb[0].mxu0
    %v2126 = vpop.f32.mrb[0].mxu0
    %v2127 = vadd.f32 %v266, %v2126
    %v2128 = vpop.f32.mrb[0].mxu0
    %2129 = vmatprep.mubr.bf16.mxu0 0
    %2130 = vmatmul.mubr.bf16.gmra.mrb[0].mxu0 %v2033
    %v2131 = vpop.f32.mrb[0].mxu0
    %v2132 = vadd.f32 %v267, %v2131
    %v2133 = vpop.f32.mrb[0].mxu0
    %v2134 = vpop.f32.mrb[0].mxu0
    %v2135 = vadd.f32 %v268, %v2134
    %v2136 = vpop.f32.mrb[0].mxu0
    %2137 = vmatprep.mubr.bf16.mxu0 0
    %2138 = vmatmul.mubr.bf16.gmra.mrb[0].mxu0 %v2036
    %v2139 = vpop.f32.mrb[0].mxu0
    %v2140 = vadd.f32 %v269, %v2139
    %v2141 = vpop.f32.mrb[0].mxu0
    %v2142 = vpop.f32.mrb[0].mxu0
    %v2143 = vadd.f32 %v270, %v2142
    %v2144 = vpop.f32.mrb[0].mxu0
    %2145 = vmatprep.mubr.bf16.mxu0 0
    %2146 = vmatmul.mubr.bf16.gmra.mrb[0].mxu0 %v2039
    %v2147 = vpop.f32.mrb[0].mxu0
    %v2148 = vadd.f32 %v271, %v2147
    %v2149 = vpop.f32.mrb[0].mxu0
    %v2150 = vpop.f32.mrb[0].mxu0
    %v2151 = vadd.f32 %v272, %v2150
    %v2152 = vpop.f32.mrb[0].mxu0
    %2153 = vmatprep.mubr.bf16.mxu0 0
    %2154 = vmatmul.mubr.bf16.gmra.mrb[0].mxu0 %v2042
    %v2155 = vpop.f32.mrb[0].mxu0
    %v2156 = vadd.f32 %v273, %v2155
    %v2157 = vpop.f32.mrb[0].mxu0
    %v2158 = vpop.f32.mrb[0].mxu0
    %v2159 = vadd.f32 %v274, %v2158
    %v2160 = vpop.f32.mrb[0].mxu0
    %2161 = vmatprep.mubr.bf16.mxu0 0
    %2162 = vmatmul.mubr.bf16.gmra.mrb[0].mxu0 %v2045
    %v2163 = vpop.f32.mrb[0].mxu0
    %v2164 = vadd.f32 %v275, %v2163
    %v2165 = vpop.f32.mrb[0].mxu0
    %v2166 = vpop.f32.mrb[0].mxu0
    %v2167 = vadd.f32 %v276, %v2166
    %v2168 = vpop.f32.mrb[0].mxu0
    %2169 = vmatprep.mubr.bf16.mxu0 0
    %2170 = vmatmul.mubr.bf16.gmra.mrb[0].mxu0 %v2048
    %v2171 = vpop.f32.mrb[0].mxu0
    %v2172 = vadd.f32 %v277, %v2171
    %v2173 = vpop.f32.mrb[0].mxu0
    %v2174 = vpop.f32.mrb[0].mxu0
    %v2175 = vadd.f32 %v278, %v2174
    %v2176 = vpop.f32.mrb[0].mxu0
    %2177 = vmatprep.mubr.bf16.mxu0 0
    %2178 = vmatmul.mubr.bf16.gmra.mrb[0].mxu0 %v2051
    %v2179 = vpop.f32.mrb[0].mxu0
    %v2180 = vadd.f32 %v279, %v2179
    %v2181 = vpop.f32.mrb[0].mxu0
    %v2182 = vpop.f32.mrb[0].mxu0
    %v2183 = vadd.f32 %v280, %v2182
    %v2184 = vpop.f32.mrb[0].mxu0
    %2185 = vmatprep.mubr.bf16.mxu0 0
    %2186 = vmatmul.mubr.bf16.gmra.mrb[0].mxu0 %v2054
    %v2187 = vpop.f32.mrb[0].mxu0
    %v2188 = vadd.f32 %v281, %v2187
    %v2189 = vpop.f32.mrb[0].mxu0
    %v2190 = vpop.f32.mrb[0].mxu0
    %v2191 = vadd.f32 %v282, %v2190
    %v2192 = vpop.f32.mrb[0].mxu0
    %2193 = vdwg.mxu0
    %v2194 = vsel %vm844, %v2100, -inf
    %2195 = vmax.xlane.f32.xlu0 %v2194
    %v2196 = vpop.xlane.xlu0 %2195
    %v2197 = vsel %vm844, %v2103, -inf
    %2198 = vmax.xlane.f32.xlu0 %v2197
    %v2199 = vpop.xlane.xlu0 %2198
    %v2200 = vsel %vm844, %v2108, -inf
    %2201 = vmax.xlane.f32.xlu0 %v2200
    %v2202 = vpop.xlane.xlu0 %2201
    %v2203 = vsel %vm844, %v2111, -inf
    %2204 = vmax.xlane.f32.xlu0 %v2203
    %v2205 = vpop.xlane.xlu0 %2204
    %v2206 = vsel %vm844, %v2116, -inf
    %2207 = vmax.xlane.f32.xlu0 %v2206
    %v2208 = vpop.xlane.xlu0 %2207
    %v2209 = vsel %vm844, %v2119, -inf
    %2210 = vmax.xlane.f32.xlu0 %v2209
    %v2211 = vpop.xlane.xlu0 %2210
    %v2212 = vsel %vm844, %v2124, -inf
    %2213 = vmax.xlane.f32.xlu0 %v2212
    %v2214 = vpop.xlane.xlu0 %2213
    %v2215 = vsel %vm844, %v2127, -inf
    %2216 = vmax.xlane.f32.xlu0 %v2215
    %v2217 = vpop.xlane.xlu0 %2216
    %v2218 = vsel %vm844, %v2132, -inf
    %2219 = vmax.xlane.f32.xlu0 %v2218
    %v2220 = vpop.xlane.xlu0 %2219
    %v2221 = vsel %vm844, %v2135, -inf
    %2222 = vmax.xlane.f32.xlu0 %v2221
    %v2223 = vpop.xlane.xlu0 %2222
    %v2224 = vsel %vm844, %v2140, -inf
    %2225 = vmax.xlane.f32.xlu0 %v2224
    %v2226 = vpop.xlane.xlu0 %2225
    %v2227 = vsel %vm844, %v2143, -inf
    %2228 = vmax.xlane.f32.xlu0 %v2227
    %v2229 = vpop.xlane.xlu0 %2228
    %v2230 = vsel %vm844, %v2148, -inf
    %2231 = vmax.xlane.f32.xlu0 %v2230
    %v2232 = vpop.xlane.xlu0 %2231
    %v2233 = vsel %vm844, %v2151, -inf
    %2234 = vmax.xlane.f32.xlu0 %v2233
    %v2235 = vpop.xlane.xlu0 %2234
    %v2236 = vsel %vm844, %v2156, -inf
    %2237 = vmax.xlane.f32.xlu0 %v2236
    %v2238 = vpop.xlane.xlu0 %2237
    %v2239 = vsel %vm844, %v2159, -inf
    %2240 = vmax.xlane.f32.xlu0 %v2239
    %v2241 = vpop.xlane.xlu0 %2240
    %v2242 = vsel %vm844, %v2164, -inf
    %2243 = vmax.xlane.f32.xlu0 %v2242
    %v2244 = vpop.xlane.xlu0 %2243
    %v2245 = vsel %vm844, %v2167, -inf
    %2246 = vmax.xlane.f32.xlu0 %v2245
    %v2247 = vpop.xlane.xlu0 %2246
    %v2248 = vsel %vm844, %v2172, -inf
    %2249 = vmax.xlane.f32.xlu0 %v2248
    %v2250 = vpop.xlane.xlu0 %2249
    %v2251 = vsel %vm844, %v2175, -inf
    %2252 = vmax.xlane.f32.xlu0 %v2251
    %v2253 = vpop.xlane.xlu0 %2252
    %v2254 = vsel %vm844, %v2180, -inf
    %2255 = vmax.xlane.f32.xlu0 %v2254
    %v2256 = vpop.xlane.xlu0 %2255
    %v2257 = vsel %vm844, %v2183, -inf
    %2258 = vmax.xlane.f32.xlu0 %v2257
    %v2259 = vpop.xlane.xlu0 %2258
    %v2260 = vsel %vm844, %v2188, -inf
    %2261 = vmax.xlane.f32.xlu0 %v2260
    %v2262 = vpop.xlane.xlu0 %2261
    %v2263 = vsel %vm844, %v2191, -inf
    %2264 = vmax.xlane.f32.xlu0 %v2263
    %v2265 = vpop.xlane.xlu0 %2264
    %v2266 = vsub.f32 %v2100, %v2196
    %v2267 = vsub.f32 %v2103, %v2199
    %v2268 = vsub.f32 %v2108, %v2202
    %v2269 = vsub.f32 %v2111, %v2205
    %v2270 = vsub.f32 %v2116, %v2208
    %v2271 = vsub.f32 %v2119, %v2211
    %v2272 = vsub.f32 %v2124, %v2214
    %v2273 = vsub.f32 %v2127, %v2217
    %v2274 = vsub.f32 %v2132, %v2220
    %v2275 = vsub.f32 %v2135, %v2223
    %v2276 = vsub.f32 %v2140, %v2226
    %v2277 = vsub.f32 %v2143, %v2229
    %v2278 = vsub.f32 %v2148, %v2232
    %v2279 = vsub.f32 %v2151, %v2235
    %v2280 = vsub.f32 %v2156, %v2238
    %v2281 = vsub.f32 %v2159, %v2241
    %v2282 = vsub.f32 %v2164, %v2244
    %v2283 = vsub.f32 %v2167, %v2247
    %v2284 = vsub.f32 %v2172, %v2250
    %v2285 = vsub.f32 %v2175, %v2253
    %v2286 = vsub.f32 %v2180, %v2256
    %v2287 = vsub.f32 %v2183, %v2259
    %v2288 = vsub.f32 %v2188, %v2262
    %v2289 = vsub.f32 %v2191, %v2265
    %v2290 = vmul.f32 %v2266, 1.442695
    %v2291 = vpow.pop %v2290
    %v2292 = vmul.f32 %v2267, 1.442695
    %v2293 = vpow.pop %v2292
    %v2294 = vmul.f32 %v2268, 1.442695
    %v2295 = vpow.pop %v2294
    %v2296 = vmul.f32 %v2269, 1.442695
    %v2297 = vpow.pop %v2296
    %v2298 = vmul.f32 %v2270, 1.442695
    %v2299 = vpow.pop %v2298
    %v2300 = vmul.f32 %v2271, 1.442695
    %v2301 = vpow.pop %v2300
    %v2302 = vmul.f32 %v2272, 1.442695
    %v2303 = vpow.pop %v2302
    %v2304 = vmul.f32 %v2273, 1.442695
    %v2305 = vpow.pop %v2304
    %v2306 = vmul.f32 %v2274, 1.442695
    %v2307 = vpow.pop %v2306
    %v2308 = vmul.f32 %v2275, 1.442695
    %v2309 = vpow.pop %v2308
    %v2310 = vmul.f32 %v2276, 1.442695
    %v2311 = vpow.pop %v2310
    %v2312 = vmul.f32 %v2277, 1.442695
    %v2313 = vpow.pop %v2312
    %v2314 = vmul.f32 %v2278, 1.442695
    %v2315 = vpow.pop %v2314
    %v2316 = vmul.f32 %v2279, 1.442695
    %v2317 = vpow.pop %v2316
    %v2318 = vmul.f32 %v2280, 1.442695
    %v2319 = vpow.pop %v2318
    %v2320 = vmul.f32 %v2281, 1.442695
    %v2321 = vpow.pop %v2320
    %v2322 = vmul.f32 %v2282, 1.442695
    %v2323 = vpow.pop %v2322
    %v2324 = vmul.f32 %v2283, 1.442695
    %v2325 = vpow.pop %v2324
    %v2326 = vmul.f32 %v2284, 1.442695
    %v2327 = vpow.pop %v2326
    %v2328 = vmul.f32 %v2285, 1.442695
    %v2329 = vpow.pop %v2328
    %v2330 = vmul.f32 %v2286, 1.442695
    %v2331 = vpow.pop %v2330
    %v2332 = vmul.f32 %v2287, 1.442695
    %v2333 = vpow.pop %v2332
    %v2334 = vmul.f32 %v2288, 1.442695
    %v2335 = vpow.pop %v2334
    %v2336 = vmul.f32 %v2289, 1.442695
    %v2337 = vpow.pop %v2336
    %v2338 = vsel %vm844, %v2291, 0.0
    %2339 = vadd.xlane.f32.xlu0 %v2338
    %v2340 = vpop.xlane.xlu0 %2339
    %v2341 = vsel %vm844, %v2293, 0.0
    %2342 = vadd.xlane.f32.xlu0 %v2341
    %v2343 = vpop.xlane.xlu0 %2342
    %v2344 = vsel %vm844, %v2295, 0.0
    %2345 = vadd.xlane.f32.xlu0 %v2344
    %v2346 = vpop.xlane.xlu0 %2345
    %v2347 = vsel %vm844, %v2297, 0.0
    %2348 = vadd.xlane.f32.xlu0 %v2347
    %v2349 = vpop.xlane.xlu0 %2348
    %v2350 = vsel %vm844, %v2299, 0.0
    %2351 = vadd.xlane.f32.xlu0 %v2350
    %v2352 = vpop.xlane.xlu0 %2351
    %v2353 = vsel %vm844, %v2301, 0.0
    %2354 = vadd.xlane.f32.xlu0 %v2353
    %v2355 = vpop.xlane.xlu0 %2354
    %v2356 = vsel %vm844, %v2303, 0.0
    %2357 = vadd.xlane.f32.xlu0 %v2356
    %v2358 = vpop.xlane.xlu0 %2357
    %v2359 = vsel %vm844, %v2305, 0.0
    %2360 = vadd.xlane.f32.xlu0 %v2359
    %v2361 = vpop.xlane.xlu0 %2360
    %v2362 = vsel %vm844, %v2307, 0.0
    %2363 = vadd.xlane.f32.xlu0 %v2362
    %v2364 = vpop.xlane.xlu0 %2363
    %v2365 = vsel %vm844, %v2309, 0.0
    %2366 = vadd.xlane.f32.xlu0 %v2365
    %v2367 = vpop.xlane.xlu0 %2366
    %v2368 = vsel %vm844, %v2311, 0.0
    %2369 = vadd.xlane.f32.xlu0 %v2368
    %v2370 = vpop.xlane.xlu0 %2369
    %v2371 = vsel %vm844, %v2313, 0.0
    %2372 = vadd.xlane.f32.xlu0 %v2371
    %v2373 = vpop.xlane.xlu0 %2372
    %v2374 = vsel %vm844, %v2315, 0.0
    %2375 = vadd.xlane.f32.xlu0 %v2374
    %v2376 = vpop.xlane.xlu0 %2375
    %v2377 = vsel %vm844, %v2317, 0.0
    %2378 = vadd.xlane.f32.xlu0 %v2377
    %v2379 = vpop.xlane.xlu0 %2378
    %v2380 = vsel %vm844, %v2319, 0.0
    %2381 = vadd.xlane.f32.xlu0 %v2380
    %v2382 = vpop.xlane.xlu0 %2381
    %v2383 = vsel %vm844, %v2321, 0.0
    %2384 = vadd.xlane.f32.xlu0 %v2383
    %v2385 = vpop.xlane.xlu0 %2384
    %v2386 = vsel %vm844, %v2323, 0.0
    %2387 = vadd.xlane.f32.xlu0 %v2386
    %v2388 = vpop.xlane.xlu0 %2387
    %v2389 = vsel %vm844, %v2325, 0.0
    %2390 = vadd.xlane.f32.xlu0 %v2389
    %v2391 = vpop.xlane.xlu0 %2390
    %v2392 = vsel %vm844, %v2327, 0.0
    %2393 = vadd.xlane.f32.xlu0 %v2392
    %v2394 = vpop.xlane.xlu0 %2393
    %v2395 = vsel %vm844, %v2329, 0.0
    %2396 = vadd.xlane.f32.xlu0 %v2395
    %v2397 = vpop.xlane.xlu0 %2396
    %v2398 = vsel %vm844, %v2331, 0.0
    %2399 = vadd.xlane.f32.xlu0 %v2398
    %v2400 = vpop.xlane.xlu0 %2399
    %v2401 = vsel %vm844, %v2333, 0.0
    %2402 = vadd.xlane.f32.xlu0 %v2401
    %v2403 = vpop.xlane.xlu0 %2402
    %v2404 = vsel %vm844, %v2335, 0.0
    %2405 = vadd.xlane.f32.xlu0 %v2404
    %v2406 = vpop.xlane.xlu0 %2405
    %v2407 = vsel %vm844, %v2337, 0.0
    %2408 = vadd.xlane.f32.xlu0 %v2407
    %v2409 = vpop.xlane.xlu0 %2408
    %v2410 = vrcp.pop %v2340
    %v2411 = vmul.f32 %v2291, %v2410
    %v2412 = vrcp.pop %v2343
    %v2413 = vmul.f32 %v2293, %v2412
    %v2414 = vrcp.pop %v2346
    %v2415 = vmul.f32 %v2295, %v2414
    %v2416 = vrcp.pop %v2349
    %v2417 = vmul.f32 %v2297, %v2416
    %v2418 = vrcp.pop %v2352
    %v2419 = vmul.f32 %v2299, %v2418
    %v2420 = vrcp.pop %v2355
    %v2421 = vmul.f32 %v2301, %v2420
    %v2422 = vrcp.pop %v2358
    %v2423 = vmul.f32 %v2303, %v2422
    %v2424 = vrcp.pop %v2361
    %v2425 = vmul.f32 %v2305, %v2424
    %v2426 = vrcp.pop %v2364
    %v2427 = vmul.f32 %v2307, %v2426
    %v2428 = vrcp.pop %v2367
    %v2429 = vmul.f32 %v2309, %v2428
    %v2430 = vrcp.pop %v2370
    %v2431 = vmul.f32 %v2311, %v2430
    %v2432 = vrcp.pop %v2373
    %v2433 = vmul.f32 %v2313, %v2432
    %v2434 = vrcp.pop %v2376
    %v2435 = vmul.f32 %v2315, %v2434
    %v2436 = vrcp.pop %v2379
    %v2437 = vmul.f32 %v2317, %v2436
    %v2438 = vrcp.pop %v2382
    %v2439 = vmul.f32 %v2319, %v2438
    %v2440 = vrcp.pop %v2385
    %v2441 = vmul.f32 %v2321, %v2440
    %v2442 = vrcp.pop %v2388
    %v2443 = vmul.f32 %v2323, %v2442
    %v2444 = vrcp.pop %v2391
    %v2445 = vmul.f32 %v2325, %v2444
    %v2446 = vrcp.pop %v2394
    %v2447 = vmul.f32 %v2327, %v2446
    %v2448 = vrcp.pop %v2397
    %v2449 = vmul.f32 %v2329, %v2448
    %v2450 = vrcp.pop %v2400
    %v2451 = vmul.f32 %v2331, %v2450
    %v2452 = vrcp.pop %v2403
    %v2453 = vmul.f32 %v2333, %v2452
    %v2454 = vrcp.pop %v2406
    %v2455 = vmul.f32 %v2335, %v2454
    %v2456 = vrcp.pop %v2409
    %v2457 = vmul.f32 %v2337, %v2456
    %v2458 = vpack.c.bf16 %v2413, %v2411
    %v2459 = vpack.c.bf16 %v2417, %v2415
    %v2460 = vpack.c.bf16 %v2421, %v2419
    %v2461 = vpack.c.bf16 %v2425, %v2423
    %v2462 = vpack.c.bf16 %v2429, %v2427
    %v2463 = vpack.c.bf16 %v2433, %v2431
    %v2464 = vpack.c.bf16 %v2437, %v2435
    %v2465 = vpack.c.bf16 %v2441, %v2439
    %v2466 = vpack.c.bf16 %v2445, %v2443
    %v2467 = vpack.c.bf16 %v2449, %v2447
    %v2468 = vpack.c.bf16 %v2453, %v2451
    %v2469 = vpack.c.bf16 %v2457, %v2455
    %v2471 = vsel %vm844, %v2458, 0
    %v2474 = vsel %vm844, %v2459, 0
    %v2477 = vsel %vm844, %v2460, 0
    %v2480 = vsel %vm844, %v2461, 0
    %v2483 = vsel %vm844, %v2462, 0
    %v2486 = vsel %vm844, %v2463, 0
    %v2489 = vsel %vm844, %v2464, 0
    %v2492 = vsel %vm844, %v2465, 0
    %v2495 = vsel %vm844, %v2466, 0
    %v2498 = vsel %vm844, %v2467, 0
    %v2501 = vsel %vm844, %v2468, 0
    %v2504 = vsel %vm844, %v2469, 0
    %2506 = vmatprep.subr.bf16.mxu0 0
    %2507 = vmatpush1.bf16.msra.mxu0 %v2005
    %2508 = vmatprep.subr.bf16.mxu0 0
    %2509 = vmatpush1.bf16.msra.mxu0 %v2006
    %2510 = vmatprep.subr.bf16.mxu0 0
    %2511 = vmatpush1.bf16.msra.mxu0 %v2007
    %2512 = vmatprep.subr.bf16.mxu0 0
    %2513 = vmatpush1.bf16.msra.mxu0 0
    %2514 = vmatprep.subr.bf16.mxu0 0
    %2515 = vmatpush1.bf16.msra.mxu0 0
    %2516 = vmatprep.subr.bf16.mxu0 0
    %2517 = vmatpush1.bf16.msra.mxu0 0
    %2518 = vmatprep.subr.bf16.mxu0 0
    %2519 = vmatpush1.bf16.msra.mxu0 0
    %2520 = vmatprep.subr.bf16.mxu0 0
    %2521 = vmatpush1.bf16.msra.mxu0 0
    %2522 = vmatprep.subr.bf16.mxu0 0
    %2523 = vmatpush1.bf16.msra.mxu0 0
    %2524 = vmatprep.subr.bf16.mxu0 0
    %2525 = vmatpush1.bf16.msra.mxu0 0
    %2526 = vmatprep.subr.bf16.mxu0 0
    %2527 = vmatpush1.bf16.msra.mxu0 0
    %2528 = vmatprep.subr.bf16.mxu0 0
    %2529 = vmatpush1.bf16.msra.mxu0 0
    %2530 = vmatprep.subr.bf16.mxu0 0
    %2531 = vmatpush1.bf16.msra.mxu0 0
    %2532 = vmatprep.subr.bf16.mxu0 0
    %2533 = vmatpush1.bf16.msra.mxu0 0
    %2534 = vmatprep.subr.bf16.mxu0 0
    %2535 = vmatpush1.bf16.msra.mxu0 0
    %2536 = vmatprep.subr.bf16.mxu0 0
    %2537 = vmatpush1.bf16.msra.mxu0 0
    %2538 = vmatprep.mubr.bf16.mxu0 0
    %2539 = vmatmul.mubr.bf16.gmra.mrb[0].mxu0 %v2471
    %v2540 = vpop.f32.mrb[0].mxu0
    %v2541 = vadd.f32 0.0, %v2540
    %v2542 = vpop.f32.mrb[0].mxu0
    %v2543 = vpop.f32.mrb[0].mxu0
    %v2544 = vadd.f32 0.0, %v2543
    %v2545 = vpop.f32.mrb[0].mxu0
    %2546 = vmatprep.mubr.bf16.mxu0 0
    %2547 = vmatmul.mubr.bf16.gmra.mrb[0].mxu0 %v2474
    %v2548 = vpop.f32.mrb[0].mxu0
    %v2549 = vadd.f32 0.0, %v2548
    %v2550 = vpop.f32.mrb[0].mxu0
    %v2551 = vpop.f32.mrb[0].mxu0
    %v2552 = vadd.f32 0.0, %v2551
    %v2553 = vpop.f32.mrb[0].mxu0
    %2554 = vmatprep.mubr.bf16.mxu0 0
    %2555 = vmatmul.mubr.bf16.gmra.mrb[0].mxu0 %v2477
    %v2556 = vpop.f32.mrb[0].mxu0
    %v2557 = vadd.f32 0.0, %v2556
    %v2558 = vpop.f32.mrb[0].mxu0
    %v2559 = vpop.f32.mrb[0].mxu0
    %v2560 = vadd.f32 0.0, %v2559
    %v2561 = vpop.f32.mrb[0].mxu0
    %2562 = vmatprep.mubr.bf16.mxu0 0
    %2563 = vmatmul.mubr.bf16.gmra.mrb[0].mxu0 %v2480
    %v2564 = vpop.f32.mrb[0].mxu0
    %v2565 = vadd.f32 0.0, %v2564
    %v2566 = vpop.f32.mrb[0].mxu0
    %v2567 = vpop.f32.mrb[0].mxu0
    %v2568 = vadd.f32 0.0, %v2567
    %v2569 = vpop.f32.mrb[0].mxu0
    %2570 = vmatprep.mubr.bf16.mxu0 0
    %2571 = vmatmul.mubr.bf16.gmra.mrb[0].mxu0 %v2483
    %v2572 = vpop.f32.mrb[0].mxu0
    %v2573 = vadd.f32 0.0, %v2572
    %v2574 = vpop.f32.mrb[0].mxu0
    %v2575 = vpop.f32.mrb[0].mxu0
    %v2576 = vadd.f32 0.0, %v2575
    %v2577 = vpop.f32.mrb[0].mxu0
    %2578 = vmatprep.mubr.bf16.mxu0 0
    %2579 = vmatmul.mubr.bf16.gmra.mrb[0].mxu0 %v2486
    %v2580 = vpop.f32.mrb[0].mxu0
    %v2581 = vadd.f32 0.0, %v2580
    %v2582 = vpop.f32.mrb[0].mxu0
    %v2583 = vpop.f32.mrb[0].mxu0
    %v2584 = vadd.f32 0.0, %v2583
    %v2585 = vpop.f32.mrb[0].mxu0
    %2586 = vmatprep.mubr.bf16.mxu0 0
    %2587 = vmatmul.mubr.bf16.gmra.mrb[0].mxu0 %v2489
    %v2588 = vpop.f32.mrb[0].mxu0
    %v2589 = vadd.f32 0.0, %v2588
    %v2590 = vpop.f32.mrb[0].mxu0
    %v2591 = vpop.f32.mrb[0].mxu0
    %v2592 = vadd.f32 0.0, %v2591
    %v2593 = vpop.f32.mrb[0].mxu0
    %2594 = vmatprep.mubr.bf16.mxu0 0
    %2595 = vmatmul.mubr.bf16.gmra.mrb[0].mxu0 %v2492
    %v2596 = vpop.f32.mrb[0].mxu0
    %v2597 = vadd.f32 0.0, %v2596
    %v2598 = vpop.f32.mrb[0].mxu0
    %v2599 = vpop.f32.mrb[0].mxu0
    %v2600 = vadd.f32 0.0, %v2599
    %v2601 = vpop.f32.mrb[0].mxu0
    %2602 = vmatprep.mubr.bf16.mxu0 0
    %2603 = vmatmul.mubr.bf16.gmra.mrb[0].mxu0 %v2495
    %v2604 = vpop.f32.mrb[0].mxu0
    %v2605 = vadd.f32 0.0, %v2604
    %v2606 = vpop.f32.mrb[0].mxu0
    %v2607 = vpop.f32.mrb[0].mxu0
    %v2608 = vadd.f32 0.0, %v2607
    %v2609 = vpop.f32.mrb[0].mxu0
    %2610 = vmatprep.mubr.bf16.mxu0 0
    %2611 = vmatmul.mubr.bf16.gmra.mrb[0].mxu0 %v2498
    %v2612 = vpop.f32.mrb[0].mxu0
    %v2613 = vadd.f32 0.0, %v2612
    %v2614 = vpop.f32.mrb[0].mxu0
    %v2615 = vpop.f32.mrb[0].mxu0
    %v2616 = vadd.f32 0.0, %v2615
    %v2617 = vpop.f32.mrb[0].mxu0
    %2618 = vmatprep.mubr.bf16.mxu0 0
    %2619 = vmatmul.mubr.bf16.gmra.mrb[0].mxu0 %v2501
    %v2620 = vpop.f32.mrb[0].mxu0
    %v2621 = vadd.f32 0.0, %v2620
    %v2622 = vpop.f32.mrb[0].mxu0
    %v2623 = vpop.f32.mrb[0].mxu0
    %v2624 = vadd.f32 0.0, %v2623
    %v2625 = vpop.f32.mrb[0].mxu0
    %2626 = vmatprep.mubr.bf16.mxu0 0
    %2627 = vmatmul.mubr.bf16.gmra.mrb[0].mxu0 %v2504
    %v2628 = vpop.f32.mrb[0].mxu0
    %v2629 = vadd.f32 0.0, %v2628
    %v2630 = vpop.f32.mrb[0].mxu0
    %v2631 = vpop.f32.mrb[0].mxu0
    %v2632 = vadd.f32 0.0, %v2631
    %v2633 = vpop.f32.mrb[0].mxu0
    %2634 = vdwg.mxu0
    %v2635 = vmul.f32 %v2541, %v1286
    %v2636 = vmul.f32 %v2544, %v1287
    %v2637 = vmul.f32 %v2549, %v1288
    %v2638 = vmul.f32 %v2552, %v1289
    %v2639 = vmul.f32 %v2557, %v1290
    %v2640 = vmul.f32 %v2560, %v1291
    %v2641 = vmul.f32 %v2565, %v1292
    %v2642 = vmul.f32 %v2568, %v1293
    %v2643 = vmul.f32 %v2573, %v1294
    %v2644 = vmul.f32 %v2576, %v1295
    %v2645 = vmul.f32 %v2581, %v1296
    %v2646 = vmul.f32 %v2584, %v1297
    %v2647 = vmul.f32 %v2589, %v1298
    %v2648 = vmul.f32 %v2592, %v1299
    %v2649 = vmul.f32 %v2597, %v1300
    %v2650 = vmul.f32 %v2600, %v1301
    %v2651 = vmul.f32 %v2605, %v1302
    %v2652 = vmul.f32 %v2608, %v1303
    %v2653 = vmul.f32 %v2613, %v1304
    %v2654 = vmul.f32 %v2616, %v1305
    %v2655 = vmul.f32 %v2621, %v1306
    %v2656 = vmul.f32 %v2624, %v1307
    %v2657 = vmul.f32 %v2629, %v1308
    %v2658 = vmul.f32 %v2632, %v1309
    %v2659 = vadd.f32 %v2635, %v2641
    %v2660 = vadd.f32 %v2636, %v2642
    %v2661 = vadd.f32 %v2637, %v2643
    %v2662 = vadd.f32 %v2638, %v2644
    %v2663 = vadd.f32 %v2639, %v2645
    %v2664 = vadd.f32 %v2640, %v2646
    %v2665 = vadd.f32 %v2659, %v2647
    %v2666 = vadd.f32 %v2660, %v2648
    %v2667 = vadd.f32 %v2661, %v2649
    %v2668 = vadd.f32 %v2662, %v2650
    %v2669 = vadd.f32 %v2663, %v2651
    %v2670 = vadd.f32 %v2664, %v2652
    %v2671 = vadd.f32 %v2665, %v2653
    %v2672 = vadd.f32 %v2666, %v2654
    %v2673 = vadd.f32 %v2667, %v2655
    %v2674 = vadd.f32 %v2668, %v2656
    %v2675 = vadd.f32 %v2669, %v2657
    %v2676 = vadd.f32 %v2670, %v2658
    %v2677 = vpack.c.bf16 %v2672, %v2671
    %v2678 = vpack.c.bf16 %v2674, %v2673
    %v2679 = vpack.c.bf16 %v2676, %v2675
    %s2680 = scalar_lea.vmem %s8, 16
    %v2681 = vld [vmem:[%s2680] sm:$0xf]
    %v2682 = vld [vmem:[%s2680 + $0x4] sm:$0xf]
    %v2683 = vld [vmem:[%s2680 + $0x8] sm:$0xf]
    %v2684 = vld [vmem:[%s2680 + $0xc] sm:$0xf]
    %v2689 = vunpack.c.l.b16 %v2681
    %v2690 = vunpack.c.l.b16 %v2682
    %v2691 = vunpack.c.l.b16 %v2683
    %v2692 = vunpack.c.l.b16 %v2684
    %v2693 = vpack.c.b16 %v2690, %v2689
    %v2694 = vpack.c.b16 %v2692, %v2691
    %v2698 = vsel %vm290, %v2677, 0
    %v2701 = vsel %vm290, %v2678, 0
    %v2704 = vsel %vm290, %v2679, 0
    %2706 = vmatprep.subr.bf16.mxu0 0
    %2707 = vmatpush1.bf16.msra.mxu0 %v2693
    %2708 = vmatprep.subr.bf16.mxu0 0
    %2709 = vmatpush1.bf16.msra.mxu0 %v2694
    %2710 = vmatprep.subr.bf16.mxu0 0
    %2711 = vmatpush1.bf16.msra.mxu0 0
    %2712 = vmatprep.subr.bf16.mxu0 0
    %2713 = vmatpush1.bf16.msra.mxu0 0
    %2714 = vmatprep.subr.bf16.mxu0 0
    %2715 = vmatpush1.bf16.msra.mxu0 0
    %2716 = vmatprep.subr.bf16.mxu0 0
    %2717 = vmatpush1.bf16.msra.mxu0 0
    %2718 = vmatprep.subr.bf16.mxu0 0
    %2719 = vmatpush1.bf16.msra.mxu0 0
    %2720 = vmatprep.subr.bf16.mxu0 0
    %2721 = vmatpush1.bf16.msra.mxu0 0
    %2722 = vmatprep.subr.bf16.mxu0 0
    %2723 = vmatpush1.bf16.msra.mxu0 0
    %2724 = vmatprep.subr.bf16.mxu0 0
    %2725 = vmatpush1.bf16.msra.mxu0 0
    %2726 = vmatprep.subr.bf16.mxu0 0
    %2727 = vmatpush1.bf16.msra.mxu0 0
    %2728 = vmatprep.subr.bf16.mxu0 0
    %2729 = vmatpush1.bf16.msra.mxu0 0
    %2730 = vmatprep.subr.bf16.mxu0 0
    %2731 = vmatpush1.bf16.msra.mxu0 0
    %2732 = vmatprep.subr.bf16.mxu0 0
    %2733 = vmatpush1.bf16.msra.mxu0 0
    %2734 = vmatprep.subr.bf16.mxu0 0
    %2735 = vmatpush1.bf16.msra.mxu0 0
    %2736 = vmatprep.subr.bf16.mxu0 0
    %2737 = vmatpush1.bf16.msra.mxu0 0
    %2738 = vmatprep.mubr.bf16.mxu0 0
    %2739 = vmatmul.mubr.bf16.gmra.mrb[0].mxu0 %v2698
    %v2740 = vpop.f32.mrb[0].mxu0
    %v2741 = vadd.f32 0.0, %v2740
    %v2742 = vpop.f32.mrb[0].mxu0
    %v2743 = vpop.f32.mrb[0].mxu0
    %v2744 = vadd.f32 0.0, %v2743
    %v2745 = vpop.f32.mrb[0].mxu0
    %2746 = vmatprep.mubr.bf16.mxu0 0
    %2747 = vmatmul.mubr.bf16.gmra.mrb[0].mxu0 %v2701
    %v2748 = vpop.f32.mrb[0].mxu0
    %v2749 = vadd.f32 0.0, %v2748
    %v2750 = vpop.f32.mrb[0].mxu0
    %v2751 = vpop.f32.mrb[0].mxu0
    %v2752 = vadd.f32 0.0, %v2751
    %v2753 = vpop.f32.mrb[0].mxu0
    %2754 = vmatprep.mubr.bf16.mxu0 0
    %2755 = vmatmul.mubr.bf16.gmra.mrb[0].mxu0 %v2704
    %v2756 = vpop.f32.mrb[0].mxu0
    %v2757 = vadd.f32 0.0, %v2756
    %v2758 = vpop.f32.mrb[0].mxu0
    %v2759 = vpop.f32.mrb[0].mxu0
    %v2760 = vadd.f32 0.0, %v2759
    %v2761 = vpop.f32.mrb[0].mxu0
    %2762 = vdwg.mxu0
    %v2763 = vadd.f32 %v1697, %v2741
    %v2764 = vadd.f32 %v1698, %v2744
    %v2765 = vadd.f32 %v1699, %v2749
    %v2766 = vadd.f32 %v1700, %v2752
    %v2767 = vadd.f32 %v1701, %v2757
    %v2768 = vadd.f32 %v1702, %v2760
    %s2769 = scalar_lea.vmem %s9, 1
    %v2770 = vld [vmem:[%s2769] sm:$0x1]
    %v2771 = vmul.f32 %v2763, %v2763
    %v2772 = vmul.f32 %v2764, %v2764
    %v2773 = vmul.f32 %v2765, %v2765
    %v2774 = vmul.f32 %v2766, %v2766
    %v2775 = vmul.f32 %v2767, %v2767
    %v2776 = vmul.f32 %v2768, %v2768
    %v2777 = vsel %vm290, %v2771, 0.0
    %2778 = vadd.xlane.f32.xlu0 %v2777
    %v2779 = vpop.xlane.xlu0 %2778
    %v2780 = vsel %vm290, %v2772, 0.0
    %2781 = vadd.xlane.f32.xlu0 %v2780
    %v2782 = vpop.xlane.xlu0 %2781
    %v2783 = vsel %vm290, %v2773, 0.0
    %2784 = vadd.xlane.f32.xlu0 %v2783
    %v2785 = vpop.xlane.xlu0 %2784
    %v2786 = vsel %vm290, %v2774, 0.0
    %2787 = vadd.xlane.f32.xlu0 %v2786
    %v2788 = vpop.xlane.xlu0 %2787
    %v2789 = vsel %vm290, %v2775, 0.0
    %2790 = vadd.xlane.f32.xlu0 %v2789
    %v2791 = vpop.xlane.xlu0 %2790
    %v2792 = vsel %vm290, %v2776, 0.0
    %2793 = vadd.xlane.f32.xlu0 %v2792
    %v2794 = vpop.xlane.xlu0 %2793
    %v2795 = vmul.f32 %v2779, %v309
    %v2796 = vmul.f32 %v2782, %v309
    %v2797 = vmul.f32 %v2785, %v309
    %v2798 = vmul.f32 %v2788, %v309
    %v2799 = vmul.f32 %v2791, %v309
    %v2800 = vmul.f32 %v2794, %v309
    %v2801 = vadd.f32 %v2795, 1e-06
    %v2802 = vadd.f32 %v2796, 1e-06
    %v2803 = vadd.f32 %v2797, 1e-06
    %v2804 = vadd.f32 %v2798, 1e-06
    %v2805 = vadd.f32 %v2799, 1e-06
    %v2806 = vadd.f32 %v2800, 1e-06
    %v2807 = vrsqrt.pop %v2801
    %v2808 = vrsqrt.pop %v2802
    %v2809 = vrsqrt.pop %v2803
    %v2810 = vrsqrt.pop %v2804
    %v2811 = vrsqrt.pop %v2805
    %v2812 = vrsqrt.pop %v2806
    %v2813 = vmul.f32 %v2763, %v2807
    %v2814 = vmul.f32 %v2764, %v2808
    %v2815 = vmul.f32 %v2765, %v2809
    %v2816 = vmul.f32 %v2766, %v2810
    %v2817 = vmul.f32 %v2767, %v2811
    %v2818 = vmul.f32 %v2768, %v2812
    %v2820 = vlaneseq
    %v2821 = vshrl.u32 %v2820, 7
    %v2822 = vsub.s32 0, %v2821
    %v2823 = vrot.slane %v2770, %v2822
    %v2825 = vmul.f32 %v2813, %v2823
    %v2826 = vmul.f32 %v2814, %v2823
    %v2827 = vmul.f32 %v2815, %v2823
    %v2828 = vmul.f32 %v2816, %v2823
    %v2829 = vmul.f32 %v2817, %v2823
    %v2830 = vmul.f32 %v2818, %v2823
    %v2831 = vpack.c.bf16 %v2826, %v2825
    %v2832 = vpack.c.bf16 %v2828, %v2827
    %v2833 = vpack.c.bf16 %v2830, %v2829
    %s2834 = scalar_lea.vmem %s10, 16
    %v2835 = vld [vmem:[%s2834] sm:$0xf]
    %v2836 = vld [vmem:[%s2834 + $0x4] sm:$0xf]
    %v2837 = vld [vmem:[%s2834 + $0x8] sm:$0xf]
    %v2838 = vld [vmem:[%s2834 + $0xc] sm:$0xf]
    %v2843 = vunpack.c.l.b16 %v2835
    %v2844 = vunpack.c.l.b16 %v2836
    %v2845 = vunpack.c.l.b16 %v2837
    %v2846 = vunpack.c.l.b16 %v2838
    %v2847 = vpack.c.b16 %v2844, %v2843
    %v2848 = vpack.c.b16 %v2846, %v2845
    %v2852 = vsel %vm290, %v2831, 0
    %v2855 = vsel %vm290, %v2832, 0
    %v2858 = vsel %vm290, %v2833, 0
    %2860 = vmatprep.subr.bf16.mxu0 0
    %2861 = vmatpush1.bf16.msra.mxu0 %v2847
    %2862 = vmatprep.subr.bf16.mxu0 0
    %2863 = vmatpush1.bf16.msra.mxu0 %v2848
    %2864 = vmatprep.subr.bf16.mxu0 0
    %2865 = vmatpush1.bf16.msra.mxu0 0
    %2866 = vmatprep.subr.bf16.mxu0 0
    %2867 = vmatpush1.bf16.msra.mxu0 0
    %2868 = vmatprep.subr.bf16.mxu0 0
    %2869 = vmatpush1.bf16.msra.mxu0 0
    %2870 = vmatprep.subr.bf16.mxu0 0
    %2871 = vmatpush1.bf16.msra.mxu0 0
    %2872 = vmatprep.subr.bf16.mxu0 0
    %2873 = vmatpush1.bf16.msra.mxu0 0
    %2874 = vmatprep.subr.bf16.mxu0 0
    %2875 = vmatpush1.bf16.msra.mxu0 0
    %2876 = vmatprep.subr.bf16.mxu0 0
    %2877 = vmatpush1.bf16.msra.mxu0 0
    %2878 = vmatprep.subr.bf16.mxu0 0
    %2879 = vmatpush1.bf16.msra.mxu0 0
    %2880 = vmatprep.subr.bf16.mxu0 0
    %2881 = vmatpush1.bf16.msra.mxu0 0
    %2882 = vmatprep.subr.bf16.mxu0 0
    %2883 = vmatpush1.bf16.msra.mxu0 0
    %2884 = vmatprep.subr.bf16.mxu0 0
    %2885 = vmatpush1.bf16.msra.mxu0 0
    %2886 = vmatprep.subr.bf16.mxu0 0
    %2887 = vmatpush1.bf16.msra.mxu0 0
    %2888 = vmatprep.subr.bf16.mxu0 0
    %2889 = vmatpush1.bf16.msra.mxu0 0
    %2890 = vmatprep.subr.bf16.mxu0 0
    %2891 = vmatpush1.bf16.msra.mxu0 0
    %2892 = vmatprep.mubr.bf16.mxu0 0
    %2893 = vmatmul.mubr.bf16.gmra.mrb[0].mxu0 %v2852
    %v2894 = vpop.f32.mrb[0].mxu0
    %v2895 = vadd.f32 0.0, %v2894
    %v2896 = vpop.f32.mrb[0].mxu0
    %v2897 = vpop.f32.mrb[0].mxu0
    %v2898 = vadd.f32 0.0, %v2897
    %v2899 = vpop.f32.mrb[0].mxu0
    %2900 = vmatprep.mubr.bf16.mxu0 0
    %2901 = vmatmul.mubr.bf16.gmra.mrb[0].mxu0 %v2855
    %v2902 = vpop.f32.mrb[0].mxu0
    %v2903 = vadd.f32 0.0, %v2902
    %v2904 = vpop.f32.mrb[0].mxu0
    %v2905 = vpop.f32.mrb[0].mxu0
    %v2906 = vadd.f32 0.0, %v2905
    %v2907 = vpop.f32.mrb[0].mxu0
    %2908 = vmatprep.mubr.bf16.mxu0 0
    %2909 = vmatmul.mubr.bf16.gmra.mrb[0].mxu0 %v2858
    %v2910 = vpop.f32.mrb[0].mxu0
    %v2911 = vadd.f32 0.0, %v2910
    %v2912 = vpop.f32.mrb[0].mxu0
    %v2913 = vpop.f32.mrb[0].mxu0
    %v2914 = vadd.f32 0.0, %v2913
    %v2915 = vpop.f32.mrb[0].mxu0
    %2916 = vdwg.mxu0
    %v2917 = vmax.f32 %v2895, 0.0
    %v2918 = vmax.f32 %v2898, 0.0
    %v2919 = vmax.f32 %v2903, 0.0
    %v2920 = vmax.f32 %v2906, 0.0
    %v2921 = vmax.f32 %v2911, 0.0
    %v2922 = vmax.f32 %v2914, 0.0
    %v2923 = vpack.c.bf16 %v2918, %v2917
    %v2924 = vpack.c.bf16 %v2920, %v2919
    %v2925 = vpack.c.bf16 %v2922, %v2921
    %s2926 = scalar_lea.vmem %s11, 32
    %v2927 = vld [vmem:[%s2926] sm:$0xf]
    %v2928 = vld [vmem:[%s2926 + $0x4] sm:$0xf]
    %v2929 = vld [vmem:[%s2926 + $0x8] sm:$0xf]
    %v2930 = vld [vmem:[%s2926 + $0xc] sm:$0xf]
    %v2931 = vld [vmem:[%s2926 + $0x10] sm:$0xf]
    %v2932 = vld [vmem:[%s2926 + $0x14] sm:$0xf]
    %v2933 = vld [vmem:[%s2926 + $0x18] sm:$0xf]
    %v2934 = vld [vmem:[%s2926 + $0x1c] sm:$0xf]
    %v2943 = vunpack.c.l.b16 %v2927
    %v2944 = vunpack.c.l.b16 %v2928
    %v2945 = vunpack.c.l.b16 %v2929
    %v2946 = vunpack.c.l.b16 %v2930
    %v2947 = vunpack.c.l.b16 %v2931
    %v2948 = vunpack.c.l.b16 %v2932
    %v2949 = vunpack.c.l.b16 %v2933
    %v2950 = vunpack.c.l.b16 %v2934
    %v2951 = vpack.c.b16 %v2944, %v2943
    %v2952 = vpack.c.b16 %v2946, %v2945
    %v2953 = vpack.c.b16 %v2948, %v2947
    %v2954 = vpack.c.b16 %v2950, %v2949
    %v2960 = vsel %vm1630, %v2923, 0
    %v2963 = vsel %vm1630, %v2924, 0
    %v2966 = vsel %vm1630, %v2925, 0
    %2968 = vmatprep.subr.bf16.mxu0 0
    %2969 = vmatpush1.bf16.msra.mxu0 %v2951
    %2970 = vmatprep.subr.bf16.mxu0 0
    %2971 = vmatpush1.bf16.msra.mxu0 %v2952
    %2972 = vmatprep.subr.bf16.mxu0 0
    %2973 = vmatpush1.bf16.msra.mxu0 %v2953
    %2974 = vmatprep.subr.bf16.mxu0 0
    %2975 = vmatpush1.bf16.msra.mxu0 %v2954
    %2976 = vmatprep.subr.bf16.mxu0 0
    %2977 = vmatpush1.bf16.msra.mxu0 0
    %2978 = vmatprep.subr.bf16.mxu0 0
    %2979 = vmatpush1.bf16.msra.mxu0 0
    %2980 = vmatprep.subr.bf16.mxu0 0
    %2981 = vmatpush1.bf16.msra.mxu0 0
    %2982 = vmatprep.subr.bf16.mxu0 0
    %2983 = vmatpush1.bf16.msra.mxu0 0
    %2984 = vmatprep.subr.bf16.mxu0 0
    %2985 = vmatpush1.bf16.msra.mxu0 0
    %2986 = vmatprep.subr.bf16.mxu0 0
    %2987 = vmatpush1.bf16.msra.mxu0 0
    %2988 = vmatprep.subr.bf16.mxu0 0
    %2989 = vmatpush1.bf16.msra.mxu0 0
    %2990 = vmatprep.subr.bf16.mxu0 0
    %2991 = vmatpush1.bf16.msra.mxu0 0
    %2992 = vmatprep.subr.bf16.mxu0 0
    %2993 = vmatpush1.bf16.msra.mxu0 0
    %2994 = vmatprep.subr.bf16.mxu0 0
    %2995 = vmatpush1.bf16.msra.mxu0 0
    %2996 = vmatprep.subr.bf16.mxu0 0
    %2997 = vmatpush1.bf16.msra.mxu0 0
    %2998 = vmatprep.subr.bf16.mxu0 0
    %2999 = vmatpush1.bf16.msra.mxu0 0
    %3000 = vmatprep.mubr.bf16.mxu0 0
    %3001 = vmatmul.mubr.bf16.gmra.mrb[0].mxu0 %v2960
    %v3002 = vpop.f32.mrb[0].mxu0
    %v3003 = vadd.f32 0.0, %v3002
    %v3004 = vpop.f32.mrb[0].mxu0
    %v3005 = vpop.f32.mrb[0].mxu0
    %v3006 = vadd.f32 0.0, %v3005
    %v3007 = vpop.f32.mrb[0].mxu0
    %3008 = vmatprep.mubr.bf16.mxu0 0
    %3009 = vmatmul.mubr.bf16.gmra.mrb[0].mxu0 %v2963
    %v3010 = vpop.f32.mrb[0].mxu0
    %v3011 = vadd.f32 0.0, %v3010
    %v3012 = vpop.f32.mrb[0].mxu0
    %v3013 = vpop.f32.mrb[0].mxu0
    %v3014 = vadd.f32 0.0, %v3013
    %v3015 = vpop.f32.mrb[0].mxu0
    %3016 = vmatprep.mubr.bf16.mxu0 0
    %3017 = vmatmul.mubr.bf16.gmra.mrb[0].mxu0 %v2966
    %v3018 = vpop.f32.mrb[0].mxu0
    %v3019 = vadd.f32 0.0, %v3018
    %v3020 = vpop.f32.mrb[0].mxu0
    %v3021 = vpop.f32.mrb[0].mxu0
    %v3022 = vadd.f32 0.0, %v3021
    %v3023 = vpop.f32.mrb[0].mxu0
    %3024 = vdwg.mxu0
    %v3025 = vadd.f32 %v2763, %v3003
    %v3026 = vadd.f32 %v2764, %v3006
    %v3027 = vadd.f32 %v2765, %v3011
    %v3028 = vadd.f32 %v2766, %v3014
    %v3029 = vadd.f32 %v2767, %v3019
    %v3030 = vadd.f32 %v2768, %v3022
    %v3031 = vld [vmem:[%s12] sm:$0x1]
    %v3032 = vmul.f32 %v3025, %v3025
    %v3033 = vmul.f32 %v3026, %v3026
    %v3034 = vmul.f32 %v3027, %v3027
    %v3035 = vmul.f32 %v3028, %v3028
    %v3036 = vmul.f32 %v3029, %v3029
    %v3037 = vmul.f32 %v3030, %v3030
    %v3038 = vsel %vm290, %v3032, 0.0
    %3039 = vadd.xlane.f32.xlu0 %v3038
    %v3040 = vpop.xlane.xlu0 %3039
    %v3041 = vsel %vm290, %v3033, 0.0
    %3042 = vadd.xlane.f32.xlu0 %v3041
    %v3043 = vpop.xlane.xlu0 %3042
    %v3044 = vsel %vm290, %v3034, 0.0
    %3045 = vadd.xlane.f32.xlu0 %v3044
    %v3046 = vpop.xlane.xlu0 %3045
    %v3047 = vsel %vm290, %v3035, 0.0
    %3048 = vadd.xlane.f32.xlu0 %v3047
    %v3049 = vpop.xlane.xlu0 %3048
    %v3050 = vsel %vm290, %v3036, 0.0
    %3051 = vadd.xlane.f32.xlu0 %v3050
    %v3052 = vpop.xlane.xlu0 %3051
    %v3053 = vsel %vm290, %v3037, 0.0
    %3054 = vadd.xlane.f32.xlu0 %v3053
    %v3055 = vpop.xlane.xlu0 %3054
    %v3056 = vmul.f32 %v3040, %v309
    %v3057 = vmul.f32 %v3043, %v309
    %v3058 = vmul.f32 %v3046, %v309
    %v3059 = vmul.f32 %v3049, %v309
    %v3060 = vmul.f32 %v3052, %v309
    %v3061 = vmul.f32 %v3055, %v309
    %v3062 = vadd.f32 %v3056, 1e-06
    %v3063 = vadd.f32 %v3057, 1e-06
    %v3064 = vadd.f32 %v3058, 1e-06
    %v3065 = vadd.f32 %v3059, 1e-06
    %v3066 = vadd.f32 %v3060, 1e-06
    %v3067 = vadd.f32 %v3061, 1e-06
    %v3068 = vrsqrt.pop %v3062
    %v3069 = vrsqrt.pop %v3063
    %v3070 = vrsqrt.pop %v3064
    %v3071 = vrsqrt.pop %v3065
    %v3072 = vrsqrt.pop %v3066
    %v3073 = vrsqrt.pop %v3067
    %v3074 = vmul.f32 %v3025, %v3068
    %v3075 = vmul.f32 %v3026, %v3069
    %v3076 = vmul.f32 %v3027, %v3070
    %v3077 = vmul.f32 %v3028, %v3071
    %v3078 = vmul.f32 %v3029, %v3072
    %v3079 = vmul.f32 %v3030, %v3073
    %v3081 = vlaneseq
    %v3082 = vshrl.u32 %v3081, 7
    %v3083 = vsub.s32 0, %v3082
    %v3084 = vrot.slane %v3031, %v3083
    %v3086 = vmul.f32 %v3074, %v3084
    %v3087 = vmul.f32 %v3075, %v3084
    %v3088 = vmul.f32 %v3076, %v3084
    %v3089 = vmul.f32 %v3077, %v3084
    %v3090 = vmul.f32 %v3078, %v3084
    %v3091 = vmul.f32 %v3079, %v3084
    %3092 = vst.msk [vmem:[#allocation7] sm:$0xff] %vm290, %v3086
    %3093 = vst.msk [vmem:[#allocation7 + $0x8] sm:$0xff] %vm290, %v3087
    %3094 = vst.msk [vmem:[#allocation7 + $0x10] sm:$0xff] %vm290, %v3088
    %3095 = vst.msk [vmem:[#allocation7 + $0x18] sm:$0xff] %vm290, %v3089
    %3096 = vst.msk [vmem:[#allocation7 + $0x20] sm:$0xff] %vm290, %v3090
    %3097 = vst.msk [vmem:[#allocation7 + $0x28] sm:$0xff] %vm290, %v3091
    %v3098 = vmul.f32 %v3086, %v3088
    %vm3099 = vcmask 253952
    %v3100 = vsel %vm3099, %v3098, 0.0
    %3101 = vadd.xlane.f32.xlu0 %v3100
    %v3102 = vpop.xlane.xlu0 %3101
    %v3103 = vmul.f32 %v3086, %v3090
    %v3104 = vsel %vm3099, %v3103, 0.0
    %3105 = vadd.xlane.f32.xlu0 %v3104
    %v3106 = vpop.xlane.xlu0 %3105
    %v3107 = vsub.f32 %v3102, %v3106
    %s3108 = sld [smem:[#allocation2]]
    %s3109 = sld [smem:[#allocation5]]
    %s3110 = ssub.f32 %s3108, %s3109
    %v3111 = vstv %s3110
    %v3112 = vsub.f32 %v3107, %v3111
    %v3113 = vmul.f32 %v3112, %v3112
    %v3114 = vadd.f32 %v3113, 0.0
    %v3115 = vmul.f32 %v3087, %v3089
    %v3116 = vsel %vm3099, %v3115, 0.0
    %3117 = vadd.xlane.f32.xlu0 %v3116
    %v3118 = vpop.xlane.xlu0 %3117
    %v3119 = vmul.f32 %v3087, %v3091
    %v3120 = vsel %vm3099, %v3119, 0.0
    %3121 = vadd.xlane.f32.xlu0 %v3120
    %v3122 = vpop.xlane.xlu0 %3121
    %v3123 = vsub.f32 %v3118, %v3122
    %s3124 = sld [smem:[#allocation2 + $0x1]]
    %s3125 = sld [smem:[#allocation5 + $0x1]]
    %s3126 = ssub.f32 %s3124, %s3125
    %v3127 = vstv %s3126
    %v3128 = vsub.f32 %v3123, %v3127
    %v3129 = vmul.f32 %v3128, %v3128
    %v3130 = vadd.f32 %v3114, %v3129
    %v3131 = vmul.f32 %v3130, 0.5
    %vm3132 = vcmask 0
    %3133 = vst.msk [vmem:[#allocation8] sm:$0x1] %vm3132, %v3131
    // Predicated region
    $region70: #{forward.1} parent=1 // pred_check
      _
    $region71: #{forward.1} parent=1 // pred_check_branch
      %3135 = sbr.rel (0) target = $region73
    $region72: #{forward.1} parent=1 // pred_region
      %s3137 = ssub.s32 768, 768
      %3138 = vsyncadd [#allocation3], %s3137
      %s3139 = sshll.u32 [#allocation7], 4
      %s3140 = int_to_ptr.vmem [resolvable:$true] %s3139
      %3145 = dma.vmem_to_hbm [thread:$0]  %s3140, 768, %s15, [#allocation3], 128, 128, 8
    $region73: #{forward.1} parent=1 // pred_fallthru
      _
    // Predicated region
    $region74: #{forward.1} parent=1 // pred_check
      _
    $region75: #{forward.1} parent=1 // pred_check_branch
      %3147 = sbr.rel (0) target = $region77
    $region76: #{forward.1} parent=1 // pred_region
      %s3149 = ssub.s32 16, 16
      %3150 = vsyncadd [#allocation9], %s3149
      %s3152 = sshll.u32 [#allocation8], 4
      %s3153 = int_to_ptr.vmem [resolvable:$true] %s3152
      %3155 = dma.vmem_to_hbm [thread:$0]  %s3153, 16, %s16, [#allocation9]
    $region77: #{forward.1} parent=1 // pred_fallthru
      _
    // Predicated region
    $region78: #{forward.1} parent=1 // pred_check
      _
    $region79: #{forward.1} parent=1 // pred_check_branch
      %3157 = sbr.rel (0) target = $region81
    $region80: #{forward.1} parent=1 // pred_region
      %3158 = dma.done [#allocation3], 768
    $region81: #{forward.1} parent=1 // pred_fallthru
      _
    // Predicated region
    $region82: #{forward.1} parent=1 // pred_check
      _
    $region83: #{forward.1} parent=1 // pred_check_branch
      %3160 = sbr.rel (0) target = $region85
    $region84: #{forward.1} parent=1 // pred_region
      %3161 = dma.done [#allocation9], 16
    $region85: #{forward.1} parent=1 // pred_fallthru
      _
    %3162 = vsyncpa [#allocation3], 1
    %3163 = vsyncpa [#allocation9], 1
    %3164 = vsyncpa [#allocation4], 1
    %3165 = vsyncpa [#allocation6], 1

</llo_original>
